<compile_context>
chip_gen: v5e
topology: v5e:2x2
jax: 0.10.0
libtpu: 0.0.40
codegen_flags: <defaults>
</compile_context>

<pallas_src>
import functools

import jax
import jax.numpy as jnp
from jax import lax
from jax.experimental import pallas as pl
from jax.experimental.pallas import tpu as pltpu


_PHASES = 8       # sublane phase count for the stride-1 conv decomposition
_KSIZE = 400      # LFB analysis window length (fixed by the module)
_STRIDE = 160     # hop of the Hann smoother
_PAD = 350        # padding of the Hann smoother
_EPS = 1e-5       # InstanceNorm1d eps


def _round_up(v, m):
    return ((v + m - 1) // m) * m


def _hann_window(n):
    i = jnp.arange(n, dtype=jnp.float32)
    return 0.5 * (1.0 - jnp.cos(2.0 * jnp.pi * i / n))


def _conv_power_kernel(x_ref, w_ref, b_ref, o_ref, q_ref, *,
                       ksize, dim_enc, phases):
    """Conv1d(1->2D, k, stride=1) + bias, then pairwise squared magnitude.

    x_ref: (1, L_pad) f32   one zero-padded batch row
    w_ref: (2D, K)    f32   filters reordered so rows [0:D] / [D:2D] are the
                            even / odd output channels of the torch Conv1d
    b_ref: (2D, 1)    f32   reordered bias
    o_ref: (D, T_pad)       |filterbank|^2 output
    q_ref: (phases, W_Q) f32 scratch holding phase-shifted copies of x
    """
    t_pad = o_ref.shape[-1]
    w_q = q_ref.shape[-1]
    d2 = w_ref.shape[0]

    # Phase-shifted copies of the input row (static slices only).
    for u in range(phases):
        q_ref[u:u + 1, :] = x_ref[:, u:u + w_q]

    # Stride-1 conv as K/phases skinny MXU matmuls over lane-dense tiles.
    acc = jnp.zeros((d2, t_pad), jnp.float32)
    for m in range(ksize // phases):
        off = m * phases
        wm = w_ref[:, off:off + phases]        # (2D, phases)
        qm = q_ref[:, off:off + t_pad]         # (phases, T_pad)
        acc = acc + jnp.dot(wm, qm, preferred_element_type=jnp.float32)
    conv = acc + b_ref[...]

    re = conv[:dim_enc, :]
    im = conv[dim_enc:, :]
    o_ref[...] = (re * re + im * im).astype(o_ref.dtype)


def _smooth_lognorm_kernel(p_ref, h_ref, o_ref, *, n_valid, eps, normalize):
    """Hann smoothing (as one matmul), log(1+|.|), InstanceNorm over time.

    p_ref: (TD, T_pad) f32   squared filterbank magnitudes
    h_ref: (T_pad, Lo_pad)   banded Hann-smoother matrix (zero outside the
                             valid t < T, s < Lo region)
    o_ref: (TD, Lo_pad)
    """
    sm = jnp.dot(p_ref[...], h_ref[...], preferred_element_type=jnp.float32)
    y = jnp.log(1.0 + jnp.abs(sm))            # padded columns stay exactly 0
    if normalize:
        # One-pass statistics over the n_valid real frames (padded columns are
        # exactly zero, so plain sums already only see the valid region).
        inv_n = jnp.float32(1.0 / n_valid)
        s1 = jnp.sum(y, axis=1, keepdims=True) * inv_n
        s2 = jnp.sum(y * y, axis=1, keepdims=True) * inv_n
        var = jnp.maximum(s2 - s1 * s1, 0.0)
        y = (y - s1) * lax.rsqrt(var + jnp.float32(eps))
    o_ref[...] = y.astype(o_ref.dtype)


def _build_smoother(han, t_valid, t_pad, lo, lo_pad, stride, padding):
    """Banded matrix H with H[t, s] = han[t + padding - stride*s] (else 0)."""
    k = han.shape[0]
    t_idx = jnp.arange(t_pad)[:, None]
    s_idx = jnp.arange(lo_pad)[None, :]
    tap = t_idx + padding - stride * s_idx
    valid = (tap >= 0) & (tap < k) & (t_idx < t_valid) & (s_idx < lo)
    taps = han[jnp.clip(tap, 0, k - 1)]
    return jnp.where(valid, taps, 0.0).astype(jnp.float32)


def lfb_encoder(x, conv_w, conv_b, han, *, normalize=True, eps=_EPS):
    """Forward pass of LFBEnconder.

    x:      (N, 1, L) input waveform
    conv_w: (2*D, 1, 400) Conv1d weight, conv_b: (2*D,) Conv1d bias
    han:    (400,) Hann window buffer
    returns (N, D, Lo) with Lo = floor((L-399 + 2*350 - 400)/160) + 1
    """
    n, c_in, l = x.shape
    if c_in != 1:
        raise ValueError("LFBEnconder expects a single input channel")
    d2, _, k = conv_w.shape
    d = d2 // 2
    if k % _PHASES != 0:
        raise ValueError("kernel size must be a multiple of the phase count")
    t = l - k + 1
    if t < 1:
        raise ValueError("input too short for the 400-tap analysis window")
    lo = (t + 2 * _PAD - k) // _STRIDE + 1

    # Lane-dense padded extents (multiples of 128).
    t_pad = _round_up(t, 128)
    w_q = t_pad + _round_up(k, 128)      # phase-buffer width
    l_pad = w_q + 128                    # covers w_q + (phases - 1) reads
    lo_pad = _round_up(lo, 128)

    # Hoist all casts / layout fixes out of the kernels.
    x_pad = jnp.pad(x.astype(jnp.float32), ((0, 0), (0, 0), (0, l_pad - l)))
    w2 = conv_w.reshape(d2, k).astype(jnp.float32)
    w_re = jnp.concatenate([w2[0::2], w2[1::2]], axis=0)          # (2D, K)
    b_re = jnp.concatenate([conv_b[0::2], conv_b[1::2]],
                           axis=0).astype(jnp.float32).reshape(d2, 1)

    # ---- stage 1: filterbank power -------------------------------------
    power = pl.pallas_call(
        functools.partial(_conv_power_kernel,
                          ksize=k, dim_enc=d, phases=_PHASES),
        out_shape=jax.ShapeDtypeStruct((n, d, t_pad), jnp.float32),
        grid_spec=pltpu.PrefetchScalarGridSpec(
            num_scalar_prefetch=0,
            grid=(n,),
            in_specs=[
                pl.BlockSpec((pl.Squeezed(), 1, l_pad), lambda i: (i, 0, 0)),
                pl.BlockSpec((d2, k), lambda i: (0, 0)),
                pl.BlockSpec((d2, 1), lambda i: (0, 0)),
            ],
            out_specs=pl.BlockSpec((pl.Squeezed(), d, t_pad),
                                   lambda i: (i, 0, 0)),
            scratch_shapes=[pltpu.VMEM((_PHASES, w_q), jnp.float32)],
        ),
        compiler_params=pltpu.CompilerParams(
            dimension_semantics=("parallel",)),
        cost_estimate=pl.CostEstimate(
            flops=2 * n * d2 * k * t_pad + 3 * n * d * t_pad,
            transcendentals=0,
            bytes_accessed=4 * (n * l_pad + d2 * (k + 1) + n * d * t_pad)),
    )(x_pad, w_re, b_re)
    # TODO(synk): for very long L, tile the output-time axis with a halo
    # (memory_space=pl.ANY + pltpu.make_async_copy) so the per-step phase
    # buffer stays bounded instead of holding the whole padded row in VMEM.

    # ---- stage 2: Hann smoothing + log(1+|.|) + InstanceNorm ------------
    h_mat = _build_smoother(han.reshape(-1).astype(jnp.float32),
                            t, t_pad, lo, lo_pad, _STRIDE, _PAD)
    td = 128 if d % 128 == 0 else d
    out_pad = pl.pallas_call(
        functools.partial(_smooth_lognorm_kernel,
                          n_valid=lo, eps=eps, normalize=normalize),
        out_shape=jax.ShapeDtypeStruct((n, d, lo_pad), x.dtype),
        grid_spec=pltpu.PrefetchScalarGridSpec(
            num_scalar_prefetch=0,
            grid=(n, d // td),
            in_specs=[
                pl.BlockSpec((pl.Squeezed(), td, t_pad),
                             lambda i, j: (i, j, 0)),
                pl.BlockSpec((t_pad, lo_pad), lambda i, j: (0, 0)),
            ],
            out_specs=pl.BlockSpec((pl.Squeezed(), td, lo_pad),
                                   lambda i, j: (i, j, 0)),
        ),
        compiler_params=pltpu.CompilerParams(
            dimension_semantics=("parallel", "parallel")),
        cost_estimate=pl.CostEstimate(
            flops=2 * n * d * t_pad * lo_pad + 8 * n * d * lo_pad,
            transcendentals=n * d * (lo_pad + 1),
            bytes_accessed=4 * (n * d * t_pad + t_pad * lo_pad
                                + n * d * lo_pad)),
    )(power, h_mat)

    return out_pad[:, :, :lo]


def lfb_encoder_ref(x, conv_w, conv_b, han, *, normalize=True, eps=_EPS):
    """Pure-JAX reference mirroring the PyTorch forward."""
    n = x.shape[0]
    d2 = conv_w.shape[0]
    d = d2 // 2
    conv = lax.conv_general_dilated(
        x.astype(jnp.float32), conv_w.astype(jnp.float32),
        window_strides=(1,), padding="VALID",
        dimension_numbers=("NCH", "OIH", "NCH"),
        precision=lax.Precision.HIGHEST)
    conv = conv + conv_b.astype(jnp.float32)[None, :, None]
    lc = conv.shape[-1]
    conv = conv.reshape(n, d, 2, lc)
    p = conv[:, :, 0, :] ** 2 + conv[:, :, 1, :] ** 2
    sm = lax.conv_general_dilated(
        p.reshape(n * d, 1, lc), han.astype(jnp.float32).reshape(1, 1, -1),
        window_strides=(_STRIDE,), padding=[(_PAD, _PAD)],
        dimension_numbers=("NCH", "OIH", "NCH"),
        precision=lax.Precision.HIGHEST)
    y = jnp.log(1.0 + jnp.abs(sm.reshape(n, d, -1)))
    if normalize:
        mean = jnp.mean(y, axis=2, keepdims=True)
        var = jnp.mean((y - mean) ** 2, axis=2, keepdims=True)
        y = (y - mean) * lax.rsqrt(var + eps)
    return y


if __name__ == "__main__":
    key = jax.random.PRNGKey(0)
    k_x, k_w, k_b = jax.random.split(key, 3)

    n, l = 2, 720            # -> 321 conv frames -> 4 smoothed frames
    dim_encoded = 8

    x = jax.random.normal(k_x, (n, 1, l), dtype=jnp.float32)
    conv_w = jax.random.normal(k_w, (2 * dim_encoded, 1, _KSIZE),
                               dtype=jnp.float32) / jnp.sqrt(float(_KSIZE))
    conv_b = 0.1 * jax.random.normal(k_b, (2 * dim_encoded,),
                                     dtype=jnp.float32)
    han = _hann_window(_KSIZE)

    # Round data/filters to bf16-representable f32 so MXU-vs-XLA precision
    # differences stay well inside the comparison tolerance.
    x = x.astype(jnp.bfloat16).astype(jnp.float32)
    conv_w = conv_w.astype(jnp.bfloat16).astype(jnp.float32)
    han = han.astype(jnp.bfloat16).astype(jnp.float32)

    out = lfb_encoder(x, conv_w, conv_b, han, normalize=True)
    out = jax.block_until_ready(out)

    ref = lfb_encoder_ref(x, conv_w, conv_b, han, normalize=True)
    lo = ((l - _KSIZE + 1) + 2 * _PAD - _KSIZE) // _STRIDE + 1
    assert out.shape == (n, dim_encoded, lo), out.shape
    err = float(jnp.max(jnp.abs(out - ref)))
    assert err < 2e-2, err
    print("KERNEL_OK")
</pallas_src>

<mosaic_0001>
module attributes {stable_mosaic.version = 11 : i64} {
  func.func @_conv_power_kernel(%arg0: i32, %arg1: memref<1x1x1024xf32, #tpu.memory_space<vmem>>, %arg2: memref<16x400xf32, #tpu.memory_space<vmem>>, %arg3: memref<16x1xf32, #tpu.memory_space<vmem>>, %arg4: memref<1x8x384xf32, #tpu.memory_space<vmem>>, %arg5: memref<8x896xf32, #tpu.memory_space<vmem>>) attributes {dimension_semantics = [#tpu.dimension_semantics<parallel>], iteration_bounds = array<i64: 2>, scalar_prefetch = 0 : i64, scratch_operands = 1 : i64, tpu.core_type = #tpu.core_type<tc>, window_params = [{transform_indices = @transform_0, window_bounds = array<i64: 1, 1, 1024>}, {pipeline_mode = #tpu.pipeline_mode<synchronous>, transform_indices = @transform_1, window_bounds = array<i64: 16, 400>}, {pipeline_mode = #tpu.pipeline_mode<synchronous>, transform_indices = @transform_2, window_bounds = array<i64: 16, 1>}, {transform_indices = @transform_3, window_bounds = array<i64: 1, 8, 384>}]} {
    %c0 = arith.constant 0 : index
    %c0_0 = arith.constant 0 : index
    %c0_1 = arith.constant 0 : index
    %0 = vector.load %arg1[%c0, %c0_0, %c0_1] : memref<1x1x1024xf32, #tpu.memory_space<vmem>>, vector<1x1x896xf32>
    %1 = vector.shape_cast %0 : vector<1x1x896xf32> to vector<1x896xf32>
    %c0_2 = arith.constant 0 : index
    %c0_3 = arith.constant 0 : index
    %2 = vector.load %arg5[%c0_2, %c0_3] : memref<8x896xf32, #tpu.memory_space<vmem>>, vector<1x896xf32>
    tpu.vector_store %arg5[%c0_2, %c0_3], %1 {strides = array<i32>} : memref<8x896xf32, #tpu.memory_space<vmem>>, vector<1x896xf32>,
    %c0_4 = arith.constant 0 : index
    %c0_5 = arith.constant 0 : index
    %c1 = arith.constant 1 : index
    %3 = vector.load %arg1[%c0_4, %c0_5, %c1] : memref<1x1x1024xf32, #tpu.memory_space<vmem>>, vector<1x1x896xf32>
    %4 = vector.shape_cast %3 : vector<1x1x896xf32> to vector<1x896xf32>
    %c1_6 = arith.constant 1 : index
    %c0_7 = arith.constant 0 : index
    %5 = vector.load %arg5[%c1_6, %c0_7] : memref<8x896xf32, #tpu.memory_space<vmem>>, vector<1x896xf32>
    tpu.vector_store %arg5[%c1_6, %c0_7], %4 {strides = array<i32>} : memref<8x896xf32, #tpu.memory_space<vmem>>, vector<1x896xf32>,
    %c0_8 = arith.constant 0 : index
    %c0_9 = arith.constant 0 : index
    %c2 = arith.constant 2 : index
    %6 = vector.load %arg1[%c0_8, %c0_9, %c2] : memref<1x1x1024xf32, #tpu.memory_space<vmem>>, vector<1x1x896xf32>
    %7 = vector.shape_cast %6 : vector<1x1x896xf32> to vector<1x896xf32>
    %c2_10 = arith.constant 2 : index
    %c0_11 = arith.constant 0 : index
    %8 = vector.load %arg5[%c2_10, %c0_11] : memref<8x896xf32, #tpu.memory_space<vmem>>, vector<1x896xf32>
    tpu.vector_store %arg5[%c2_10, %c0_11], %7 {strides = array<i32>} : memref<8x896xf32, #tpu.memory_space<vmem>>, vector<1x896xf32>,
    %c0_12 = arith.constant 0 : index
    %c0_13 = arith.constant 0 : index
    %c3 = arith.constant 3 : index
    %9 = vector.load %arg1[%c0_12, %c0_13, %c3] : memref<1x1x1024xf32, #tpu.memory_space<vmem>>, vector<1x1x896xf32>
    %10 = vector.shape_cast %9 : vector<1x1x896xf32> to vector<1x896xf32>
    %c3_14 = arith.constant 3 : index
    %c0_15 = arith.constant 0 : index
    %11 = vector.load %arg5[%c3_14, %c0_15] : memref<8x896xf32, #tpu.memory_space<vmem>>, vector<1x896xf32>
    tpu.vector_store %arg5[%c3_14, %c0_15], %10 {strides = array<i32>} : memref<8x896xf32, #tpu.memory_space<vmem>>, vector<1x896xf32>,
    %c0_16 = arith.constant 0 : index
    %c0_17 = arith.constant 0 : index
    %c4 = arith.constant 4 : index
    %12 = vector.load %arg1[%c0_16, %c0_17, %c4] : memref<1x1x1024xf32, #tpu.memory_space<vmem>>, vector<1x1x896xf32>
    %13 = vector.shape_cast %12 : vector<1x1x896xf32> to vector<1x896xf32>
    %c4_18 = arith.constant 4 : index
    %c0_19 = arith.constant 0 : index
    %14 = vector.load %arg5[%c4_18, %c0_19] : memref<8x896xf32, #tpu.memory_space<vmem>>, vector<1x896xf32>
    tpu.vector_store %arg5[%c4_18, %c0_19], %13 {strides = array<i32>} : memref<8x896xf32, #tpu.memory_space<vmem>>, vector<1x896xf32>,
    %c0_20 = arith.constant 0 : index
    %c0_21 = arith.constant 0 : index
    %c5 = arith.constant 5 : index
    %15 = vector.load %arg1[%c0_20, %c0_21, %c5] : memref<1x1x1024xf32, #tpu.memory_space<vmem>>, vector<1x1x896xf32>
    %16 = vector.shape_cast %15 : vector<1x1x896xf32> to vector<1x896xf32>
    %c5_22 = arith.constant 5 : index
    %c0_23 = arith.constant 0 : index
    %17 = vector.load %arg5[%c5_22, %c0_23] : memref<8x896xf32, #tpu.memory_space<vmem>>, vector<1x896xf32>
    tpu.vector_store %arg5[%c5_22, %c0_23], %16 {strides = array<i32>} : memref<8x896xf32, #tpu.memory_space<vmem>>, vector<1x896xf32>,
    %c0_24 = arith.constant 0 : index
    %c0_25 = arith.constant 0 : index
    %c6 = arith.constant 6 : index
    %18 = vector.load %arg1[%c0_24, %c0_25, %c6] : memref<1x1x1024xf32, #tpu.memory_space<vmem>>, vector<1x1x896xf32>
    %19 = vector.shape_cast %18 : vector<1x1x896xf32> to vector<1x896xf32>
    %c6_26 = arith.constant 6 : index
    %c0_27 = arith.constant 0 : index
    %20 = vector.load %arg5[%c6_26, %c0_27] : memref<8x896xf32, #tpu.memory_space<vmem>>, vector<1x896xf32>
    tpu.vector_store %arg5[%c6_26, %c0_27], %19 {strides = array<i32>} : memref<8x896xf32, #tpu.memory_space<vmem>>, vector<1x896xf32>,
    %c0_28 = arith.constant 0 : index
    %c0_29 = arith.constant 0 : index
    %c7 = arith.constant 7 : index
    %21 = vector.load %arg1[%c0_28, %c0_29, %c7] : memref<1x1x1024xf32, #tpu.memory_space<vmem>>, vector<1x1x896xf32>
    %22 = vector.shape_cast %21 : vector<1x1x896xf32> to vector<1x896xf32>
    %c7_30 = arith.constant 7 : index
    %c0_31 = arith.constant 0 : index
    %23 = vector.load %arg5[%c7_30, %c0_31] : memref<8x896xf32, #tpu.memory_space<vmem>>, vector<1x896xf32>
    tpu.vector_store %arg5[%c7_30, %c0_31], %22 {strides = array<i32>} : memref<8x896xf32, #tpu.memory_space<vmem>>, vector<1x896xf32>,
    %cst = arith.constant 0.000000e+00 : f32
    %24 = vector.broadcast %cst : f32 to vector<16x384xf32>
    %c0_32 = arith.constant 0 : index
    %c0_33 = arith.constant 0 : index
    %25 = vector.load %arg2[%c0_32, %c0_33] : memref<16x400xf32, #tpu.memory_space<vmem>>, vector<16x8xf32>
    %c0_34 = arith.constant 0 : index
    %c0_35 = arith.constant 0 : index
    %26 = vector.load %arg5[%c0_34, %c0_35] : memref<8x896xf32, #tpu.memory_space<vmem>>, vector<8x384xf32>
    %cst_36 = arith.constant dense<0.000000e+00> : vector<16x384xf32>
    %27 = tpu.matmul %25, %26, %cst_36 {dimension_numbers = #tpu.dot_dimension_numbers<[1], [0], [0], [1], [0, 0, 1, 1], [], []>} : vector<16x8xf32>, vector<8x384xf32>, vector<16x384xf32> -> vector<16x384xf32>
    %28 = arith.addf %24, %27 : vector<16x384xf32>
    %c0_37 = arith.constant 0 : index
    %c8 = arith.constant 8 : index
    %29 = vector.load %arg2[%c0_37, %c8] : memref<16x400xf32, #tpu.memory_space<vmem>>, vector<16x8xf32>
    %c0_38 = arith.constant 0 : index
    %c8_39 = arith.constant 8 : index
    %30 = vector.load %arg5[%c0_38, %c8_39] : memref<8x896xf32, #tpu.memory_space<vmem>>, vector<8x384xf32>
    %cst_40 = arith.constant dense<0.000000e+00> : vector<16x384xf32>
    %31 = tpu.matmul %29, %30, %cst_40 {dimension_numbers = #tpu.dot_dimension_numbers<[1], [0], [0], [1], [0, 0, 1, 1], [], []>} : vector<16x8xf32>, vector<8x384xf32>, vector<16x384xf32> -> vector<16x384xf32>
    %32 = arith.addf %28, %31 : vector<16x384xf32>
    %c0_41 = arith.constant 0 : index
    %c16 = arith.constant 16 : index
    %33 = vector.load %arg2[%c0_41, %c16] : memref<16x400xf32, #tpu.memory_space<vmem>>, vector<16x8xf32>
    %c0_42 = arith.constant 0 : index
    %c16_43 = arith.constant 16 : index
    %34 = vector.load %arg5[%c0_42, %c16_43] : memref<8x896xf32, #tpu.memory_space<vmem>>, vector<8x384xf32>
    %cst_44 = arith.constant dense<0.000000e+00> : vector<16x384xf32>
    %35 = tpu.matmul %33, %34, %cst_44 {dimension_numbers = #tpu.dot_dimension_numbers<[1], [0], [0], [1], [0, 0, 1, 1], [], []>} : vector<16x8xf32>, vector<8x384xf32>, vector<16x384xf32> -> vector<16x384xf32>
    %36 = arith.addf %32, %35 : vector<16x384xf32>
    %c0_45 = arith.constant 0 : index
    %c24 = arith.constant 24 : index
    %37 = vector.load %arg2[%c0_45, %c24] : memref<16x400xf32, #tpu.memory_space<vmem>>, vector<16x8xf32>
    %c0_46 = arith.constant 0 : index
    %c24_47 = arith.constant 24 : index
    %38 = vector.load %arg5[%c0_46, %c24_47] : memref<8x896xf32, #tpu.memory_space<vmem>>, vector<8x384xf32>
    %cst_48 = arith.constant dense<0.000000e+00> : vector<16x384xf32>
    %39 = tpu.matmul %37, %38, %cst_48 {dimension_numbers = #tpu.dot_dimension_numbers<[1], [0], [0], [1], [0, 0, 1, 1], [], []>} : vector<16x8xf32>, vector<8x384xf32>, vector<16x384xf32> -> vector<16x384xf32>
    %40 = arith.addf %36, %39 : vector<16x384xf32>
    %c0_49 = arith.constant 0 : index
    %c32 = arith.constant 32 : index
    %41 = vector.load %arg2[%c0_49, %c32] : memref<16x400xf32, #tpu.memory_space<vmem>>, vector<16x8xf32>
    %c0_50 = arith.constant 0 : index
    %c32_51 = arith.constant 32 : index
    %42 = vector.load %arg5[%c0_50, %c32_51] : memref<8x896xf32, #tpu.memory_space<vmem>>, vector<8x384xf32>
    %cst_52 = arith.constant dense<0.000000e+00> : vector<16x384xf32>
    %43 = tpu.matmul %41, %42, %cst_52 {dimension_numbers = #tpu.dot_dimension_numbers<[1], [0], [0], [1], [0, 0, 1, 1], [], []>} : vector<16x8xf32>, vector<8x384xf32>, vector<16x384xf32> -> vector<16x384xf32>
    %44 = arith.addf %40, %43 : vector<16x384xf32>
    %c0_53 = arith.constant 0 : index
    %c40 = arith.constant 40 : index
    %45 = vector.load %arg2[%c0_53, %c40] : memref<16x400xf32, #tpu.memory_space<vmem>>, vector<16x8xf32>
    %c0_54 = arith.constant 0 : index
    %c40_55 = arith.constant 40 : index
    %46 = vector.load %arg5[%c0_54, %c40_55] : memref<8x896xf32, #tpu.memory_space<vmem>>, vector<8x384xf32>
    %cst_56 = arith.constant dense<0.000000e+00> : vector<16x384xf32>
    %47 = tpu.matmul %45, %46, %cst_56 {dimension_numbers = #tpu.dot_dimension_numbers<[1], [0], [0], [1], [0, 0, 1, 1], [], []>} : vector<16x8xf32>, vector<8x384xf32>, vector<16x384xf32> -> vector<16x384xf32>
    %48 = arith.addf %44, %47 : vector<16x384xf32>
    %c0_57 = arith.constant 0 : index
    %c48 = arith.constant 48 : index
    %49 = vector.load %arg2[%c0_57, %c48] : memref<16x400xf32, #tpu.memory_space<vmem>>, vector<16x8xf32>
    %c0_58 = arith.constant 0 : index
    %c48_59 = arith.constant 48 : index
    %50 = vector.load %arg5[%c0_58, %c48_59] : memref<8x896xf32, #tpu.memory_space<vmem>>, vector<8x384xf32>
    %cst_60 = arith.constant dense<0.000000e+00> : vector<16x384xf32>
    %51 = tpu.matmul %49, %50, %cst_60 {dimension_numbers = #tpu.dot_dimension_numbers<[1], [0], [0], [1], [0, 0, 1, 1], [], []>} : vector<16x8xf32>, vector<8x384xf32>, vector<16x384xf32> -> vector<16x384xf32>
    %52 = arith.addf %48, %51 : vector<16x384xf32>
    %c0_61 = arith.constant 0 : index
    %c56 = arith.constant 56 : index
    %53 = vector.load %arg2[%c0_61, %c56] : memref<16x400xf32, #tpu.memory_space<vmem>>, vector<16x8xf32>
    %c0_62 = arith.constant 0 : index
    %c56_63 = arith.constant 56 : index
    %54 = vector.load %arg5[%c0_62, %c56_63] : memref<8x896xf32, #tpu.memory_space<vmem>>, vector<8x384xf32>
    %cst_64 = arith.constant dense<0.000000e+00> : vector<16x384xf32>
    %55 = tpu.matmul %53, %54, %cst_64 {dimension_numbers = #tpu.dot_dimension_numbers<[1], [0], [0], [1], [0, 0, 1, 1], [], []>} : vector<16x8xf32>, vector<8x384xf32>, vector<16x384xf32> -> vector<16x384xf32>
    %56 = arith.addf %52, %55 : vector<16x384xf32>
    %c0_65 = arith.constant 0 : index
    %c64 = arith.constant 64 : index
    %57 = vector.load %arg2[%c0_65, %c64] : memref<16x400xf32, #tpu.memory_space<vmem>>, vector<16x8xf32>
    %c0_66 = arith.constant 0 : index
    %c64_67 = arith.constant 64 : index
    %58 = vector.load %arg5[%c0_66, %c64_67] : memref<8x896xf32, #tpu.memory_space<vmem>>, vector<8x384xf32>
    %cst_68 = arith.constant dense<0.000000e+00> : vector<16x384xf32>
    %59 = tpu.matmul %57, %58, %cst_68 {dimension_numbers = #tpu.dot_dimension_numbers<[1], [0], [0], [1], [0, 0, 1, 1], [], []>} : vector<16x8xf32>, vector<8x384xf32>, vector<16x384xf32> -> vector<16x384xf32>
    %60 = arith.addf %56, %59 : vector<16x384xf32>
    %c0_69 = arith.constant 0 : index
    %c72 = arith.constant 72 : index
    %61 = vector.load %arg2[%c0_69, %c72] : memref<16x400xf32, #tpu.memory_space<vmem>>, vector<16x8xf32>
    %c0_70 = arith.constant 0 : index
    %c72_71 = arith.constant 72 : index
    %62 = vector.load %arg5[%c0_70, %c72_71] : memref<8x896xf32, #tpu.memory_space<vmem>>, vector<8x384xf32>
    %cst_72 = arith.constant dense<0.000000e+00> : vector<16x384xf32>
    %63 = tpu.matmul %61, %62, %cst_72 {dimension_numbers = #tpu.dot_dimension_numbers<[1], [0], [0], [1], [0, 0, 1, 1], [], []>} : vector<16x8xf32>, vector<8x384xf32>, vector<16x384xf32> -> vector<16x384xf32>
    %64 = arith.addf %60, %63 : vector<16x384xf32>
    %c0_73 = arith.constant 0 : index
    %c80 = arith.constant 80 : index
    %65 = vector.load %arg2[%c0_73, %c80] : memref<16x400xf32, #tpu.memory_space<vmem>>, vector<16x8xf32>
    %c0_74 = arith.constant 0 : index
    %c80_75 = arith.constant 80 : index
    %66 = vector.load %arg5[%c0_74, %c80_75] : memref<8x896xf32, #tpu.memory_space<vmem>>, vector<8x384xf32>
    %cst_76 = arith.constant dense<0.000000e+00> : vector<16x384xf32>
    %67 = tpu.matmul %65, %66, %cst_76 {dimension_numbers = #tpu.dot_dimension_numbers<[1], [0], [0], [1], [0, 0, 1, 1], [], []>} : vector<16x8xf32>, vector<8x384xf32>, vector<16x384xf32> -> vector<16x384xf32>
    %68 = arith.addf %64, %67 : vector<16x384xf32>
    %c0_77 = arith.constant 0 : index
    %c88 = arith.constant 88 : index
    %69 = vector.load %arg2[%c0_77, %c88] : memref<16x400xf32, #tpu.memory_space<vmem>>, vector<16x8xf32>
    %c0_78 = arith.constant 0 : index
    %c88_79 = arith.constant 88 : index
    %70 = vector.load %arg5[%c0_78, %c88_79] : memref<8x896xf32, #tpu.memory_space<vmem>>, vector<8x384xf32>
    %cst_80 = arith.constant dense<0.000000e+00> : vector<16x384xf32>
    %71 = tpu.matmul %69, %70, %cst_80 {dimension_numbers = #tpu.dot_dimension_numbers<[1], [0], [0], [1], [0, 0, 1, 1], [], []>} : vector<16x8xf32>, vector<8x384xf32>, vector<16x384xf32> -> vector<16x384xf32>
    %72 = arith.addf %68, %71 : vector<16x384xf32>
    %c0_81 = arith.constant 0 : index
    %c96 = arith.constant 96 : index
    %73 = vector.load %arg2[%c0_81, %c96] : memref<16x400xf32, #tpu.memory_space<vmem>>, vector<16x8xf32>
    %c0_82 = arith.constant 0 : index
    %c96_83 = arith.constant 96 : index
    %74 = vector.load %arg5[%c0_82, %c96_83] : memref<8x896xf32, #tpu.memory_space<vmem>>, vector<8x384xf32>
    %cst_84 = arith.constant dense<0.000000e+00> : vector<16x384xf32>
    %75 = tpu.matmul %73, %74, %cst_84 {dimension_numbers = #tpu.dot_dimension_numbers<[1], [0], [0], [1], [0, 0, 1, 1], [], []>} : vector<16x8xf32>, vector<8x384xf32>, vector<16x384xf32> -> vector<16x384xf32>
    %76 = arith.addf %72, %75 : vector<16x384xf32>
    %c0_85 = arith.constant 0 : index
    %c104 = arith.constant 104 : index
    %77 = vector.load %arg2[%c0_85, %c104] : memref<16x400xf32, #tpu.memory_space<vmem>>, vector<16x8xf32>
    %c0_86 = arith.constant 0 : index
    %c104_87 = arith.constant 104 : index
    %78 = vector.load %arg5[%c0_86, %c104_87] : memref<8x896xf32, #tpu.memory_space<vmem>>, vector<8x384xf32>
    %cst_88 = arith.constant dense<0.000000e+00> : vector<16x384xf32>
    %79 = tpu.matmul %77, %78, %cst_88 {dimension_numbers = #tpu.dot_dimension_numbers<[1], [0], [0], [1], [0, 0, 1, 1], [], []>} : vector<16x8xf32>, vector<8x384xf32>, vector<16x384xf32> -> vector<16x384xf32>
    %80 = arith.addf %76, %79 : vector<16x384xf32>
    %c0_89 = arith.constant 0 : index
    %c112 = arith.constant 112 : index
    %81 = vector.load %arg2[%c0_89, %c112] : memref<16x400xf32, #tpu.memory_space<vmem>>, vector<16x8xf32>
    %c0_90 = arith.constant 0 : index
    %c112_91 = arith.constant 112 : index
    %82 = vector.load %arg5[%c0_90, %c112_91] : memref<8x896xf32, #tpu.memory_space<vmem>>, vector<8x384xf32>
    %cst_92 = arith.constant dense<0.000000e+00> : vector<16x384xf32>
    %83 = tpu.matmul %81, %82, %cst_92 {dimension_numbers = #tpu.dot_dimension_numbers<[1], [0], [0], [1], [0, 0, 1, 1], [], []>} : vector<16x8xf32>, vector<8x384xf32>, vector<16x384xf32> -> vector<16x384xf32>
    %84 = arith.addf %80, %83 : vector<16x384xf32>
    %c0_93 = arith.constant 0 : index
    %c120 = arith.constant 120 : index
    %85 = vector.load %arg2[%c0_93, %c120] : memref<16x400xf32, #tpu.memory_space<vmem>>, vector<16x8xf32>
    %c0_94 = arith.constant 0 : index
    %c120_95 = arith.constant 120 : index
    %86 = vector.load %arg5[%c0_94, %c120_95] : memref<8x896xf32, #tpu.memory_space<vmem>>, vector<8x384xf32>
    %cst_96 = arith.constant dense<0.000000e+00> : vector<16x384xf32>
    %87 = tpu.matmul %85, %86, %cst_96 {dimension_numbers = #tpu.dot_dimension_numbers<[1], [0], [0], [1], [0, 0, 1, 1], [], []>} : vector<16x8xf32>, vector<8x384xf32>, vector<16x384xf32> -> vector<16x384xf32>
    %88 = arith.addf %84, %87 : vector<16x384xf32>
    %c0_97 = arith.constant 0 : index
    %c128 = arith.constant 128 : index
    %89 = vector.load %arg2[%c0_97, %c128] : memref<16x400xf32, #tpu.memory_space<vmem>>, vector<16x8xf32>
    %c0_98 = arith.constant 0 : index
    %c128_99 = arith.constant 128 : index
    %90 = vector.load %arg5[%c0_98, %c128_99] : memref<8x896xf32, #tpu.memory_space<vmem>>, vector<8x384xf32>
    %cst_100 = arith.constant dense<0.000000e+00> : vector<16x384xf32>
    %91 = tpu.matmul %89, %90, %cst_100 {dimension_numbers = #tpu.dot_dimension_numbers<[1], [0], [0], [1], [0, 0, 1, 1], [], []>} : vector<16x8xf32>, vector<8x384xf32>, vector<16x384xf32> -> vector<16x384xf32>
    %92 = arith.addf %88, %91 : vector<16x384xf32>
    %c0_101 = arith.constant 0 : index
    %c136 = arith.constant 136 : index
    %93 = vector.load %arg2[%c0_101, %c136] : memref<16x400xf32, #tpu.memory_space<vmem>>, vector<16x8xf32>
    %c0_102 = arith.constant 0 : index
    %c136_103 = arith.constant 136 : index
    %94 = vector.load %arg5[%c0_102, %c136_103] : memref<8x896xf32, #tpu.memory_space<vmem>>, vector<8x384xf32>
    %cst_104 = arith.constant dense<0.000000e+00> : vector<16x384xf32>
    %95 = tpu.matmul %93, %94, %cst_104 {dimension_numbers = #tpu.dot_dimension_numbers<[1], [0], [0], [1], [0, 0, 1, 1], [], []>} : vector<16x8xf32>, vector<8x384xf32>, vector<16x384xf32> -> vector<16x384xf32>
    %96 = arith.addf %92, %95 : vector<16x384xf32>
    %c0_105 = arith.constant 0 : index
    %c144 = arith.constant 144 : index
    %97 = vector.load %arg2[%c0_105, %c144] : memref<16x400xf32, #tpu.memory_space<vmem>>, vector<16x8xf32>
    %c0_106 = arith.constant 0 : index
    %c144_107 = arith.constant 144 : index
    %98 = vector.load %arg5[%c0_106, %c144_107] : memref<8x896xf32, #tpu.memory_space<vmem>>, vector<8x384xf32>
    %cst_108 = arith.constant dense<0.000000e+00> : vector<16x384xf32>
    %99 = tpu.matmul %97, %98, %cst_108 {dimension_numbers = #tpu.dot_dimension_numbers<[1], [0], [0], [1], [0, 0, 1, 1], [], []>} : vector<16x8xf32>, vector<8x384xf32>, vector<16x384xf32> -> vector<16x384xf32>
    %100 = arith.addf %96, %99 : vector<16x384xf32>
    %c0_109 = arith.constant 0 : index
    %c152 = arith.constant 152 : index
    %101 = vector.load %arg2[%c0_109, %c152] : memref<16x400xf32, #tpu.memory_space<vmem>>, vector<16x8xf32>
    %c0_110 = arith.constant 0 : index
    %c152_111 = arith.constant 152 : index
    %102 = vector.load %arg5[%c0_110, %c152_111] : memref<8x896xf32, #tpu.memory_space<vmem>>, vector<8x384xf32>
    %cst_112 = arith.constant dense<0.000000e+00> : vector<16x384xf32>
    %103 = tpu.matmul %101, %102, %cst_112 {dimension_numbers = #tpu.dot_dimension_numbers<[1], [0], [0], [1], [0, 0, 1, 1], [], []>} : vector<16x8xf32>, vector<8x384xf32>, vector<16x384xf32> -> vector<16x384xf32>
    %104 = arith.addf %100, %103 : vector<16x384xf32>
    %c0_113 = arith.constant 0 : index
    %c160 = arith.constant 160 : index
    %105 = vector.load %arg2[%c0_113, %c160] : memref<16x400xf32, #tpu.memory_space<vmem>>, vector<16x8xf32>
    %c0_114 = arith.constant 0 : index
    %c160_115 = arith.constant 160 : index
    %106 = vector.load %arg5[%c0_114, %c160_115] : memref<8x896xf32, #tpu.memory_space<vmem>>, vector<8x384xf32>
    %cst_116 = arith.constant dense<0.000000e+00> : vector<16x384xf32>
    %107 = tpu.matmul %105, %106, %cst_116 {dimension_numbers = #tpu.dot_dimension_numbers<[1], [0], [0], [1], [0, 0, 1, 1], [], []>} : vector<16x8xf32>, vector<8x384xf32>, vector<16x384xf32> -> vector<16x384xf32>
    %108 = arith.addf %104, %107 : vector<16x384xf32>
    %c0_117 = arith.constant 0 : index
    %c168 = arith.constant 168 : index
    %109 = vector.load %arg2[%c0_117, %c168] : memref<16x400xf32, #tpu.memory_space<vmem>>, vector<16x8xf32>
    %c0_118 = arith.constant 0 : index
    %c168_119 = arith.constant 168 : index
    %110 = vector.load %arg5[%c0_118, %c168_119] : memref<8x896xf32, #tpu.memory_space<vmem>>, vector<8x384xf32>
    %cst_120 = arith.constant dense<0.000000e+00> : vector<16x384xf32>
    %111 = tpu.matmul %109, %110, %cst_120 {dimension_numbers = #tpu.dot_dimension_numbers<[1], [0], [0], [1], [0, 0, 1, 1], [], []>} : vector<16x8xf32>, vector<8x384xf32>, vector<16x384xf32> -> vector<16x384xf32>
    %112 = arith.addf %108, %111 : vector<16x384xf32>
    %c0_121 = arith.constant 0 : index
    %c176 = arith.constant 176 : index
    %113 = vector.load %arg2[%c0_121, %c176] : memref<16x400xf32, #tpu.memory_space<vmem>>, vector<16x8xf32>
    %c0_122 = arith.constant 0 : index
    %c176_123 = arith.constant 176 : index
    %114 = vector.load %arg5[%c0_122, %c176_123] : memref<8x896xf32, #tpu.memory_space<vmem>>, vector<8x384xf32>
    %cst_124 = arith.constant dense<0.000000e+00> : vector<16x384xf32>
    %115 = tpu.matmul %113, %114, %cst_124 {dimension_numbers = #tpu.dot_dimension_numbers<[1], [0], [0], [1], [0, 0, 1, 1], [], []>} : vector<16x8xf32>, vector<8x384xf32>, vector<16x384xf32> -> vector<16x384xf32>
    %116 = arith.addf %112, %115 : vector<16x384xf32>
    %c0_125 = arith.constant 0 : index
    %c184 = arith.constant 184 : index
    %117 = vector.load %arg2[%c0_125, %c184] : memref<16x400xf32, #tpu.memory_space<vmem>>, vector<16x8xf32>
    %c0_126 = arith.constant 0 : index
    %c184_127 = arith.constant 184 : index
    %118 = vector.load %arg5[%c0_126, %c184_127] : memref<8x896xf32, #tpu.memory_space<vmem>>, vector<8x384xf32>
    %cst_128 = arith.constant dense<0.000000e+00> : vector<16x384xf32>
    %119 = tpu.matmul %117, %118, %cst_128 {dimension_numbers = #tpu.dot_dimension_numbers<[1], [0], [0], [1], [0, 0, 1, 1], [], []>} : vector<16x8xf32>, vector<8x384xf32>, vector<16x384xf32> -> vector<16x384xf32>
    %120 = arith.addf %116, %119 : vector<16x384xf32>
    %c0_129 = arith.constant 0 : index
    %c192 = arith.constant 192 : index
    %121 = vector.load %arg2[%c0_129, %c192] : memref<16x400xf32, #tpu.memory_space<vmem>>, vector<16x8xf32>
    %c0_130 = arith.constant 0 : index
    %c192_131 = arith.constant 192 : index
    %122 = vector.load %arg5[%c0_130, %c192_131] : memref<8x896xf32, #tpu.memory_space<vmem>>, vector<8x384xf32>
    %cst_132 = arith.constant dense<0.000000e+00> : vector<16x384xf32>
    %123 = tpu.matmul %121, %122, %cst_132 {dimension_numbers = #tpu.dot_dimension_numbers<[1], [0], [0], [1], [0, 0, 1, 1], [], []>} : vector<16x8xf32>, vector<8x384xf32>, vector<16x384xf32> -> vector<16x384xf32>
    %124 = arith.addf %120, %123 : vector<16x384xf32>
    %c0_133 = arith.constant 0 : index
    %c200 = arith.constant 200 : index
    %125 = vector.load %arg2[%c0_133, %c200] : memref<16x400xf32, #tpu.memory_space<vmem>>, vector<16x8xf32>
    %c0_134 = arith.constant 0 : index
    %c200_135 = arith.constant 200 : index
    %126 = vector.load %arg5[%c0_134, %c200_135] : memref<8x896xf32, #tpu.memory_space<vmem>>, vector<8x384xf32>
    %cst_136 = arith.constant dense<0.000000e+00> : vector<16x384xf32>
    %127 = tpu.matmul %125, %126, %cst_136 {dimension_numbers = #tpu.dot_dimension_numbers<[1], [0], [0], [1], [0, 0, 1, 1], [], []>} : vector<16x8xf32>, vector<8x384xf32>, vector<16x384xf32> -> vector<16x384xf32>
    %128 = arith.addf %124, %127 : vector<16x384xf32>
    %c0_137 = arith.constant 0 : index
    %c208 = arith.constant 208 : index
    %129 = vector.load %arg2[%c0_137, %c208] : memref<16x400xf32, #tpu.memory_space<vmem>>, vector<16x8xf32>
    %c0_138 = arith.constant 0 : index
    %c208_139 = arith.constant 208 : index
    %130 = vector.load %arg5[%c0_138, %c208_139] : memref<8x896xf32, #tpu.memory_space<vmem>>, vector<8x384xf32>
    %cst_140 = arith.constant dense<0.000000e+00> : vector<16x384xf32>
    %131 = tpu.matmul %129, %130, %cst_140 {dimension_numbers = #tpu.dot_dimension_numbers<[1], [0], [0], [1], [0, 0, 1, 1], [], []>} : vector<16x8xf32>, vector<8x384xf32>, vector<16x384xf32> -> vector<16x384xf32>
    %132 = arith.addf %128, %131 : vector<16x384xf32>
    %c0_141 = arith.constant 0 : index
    %c216 = arith.constant 216 : index
    %133 = vector.load %arg2[%c0_141, %c216] : memref<16x400xf32, #tpu.memory_space<vmem>>, vector<16x8xf32>
    %c0_142 = arith.constant 0 : index
    %c216_143 = arith.constant 216 : index
    %134 = vector.load %arg5[%c0_142, %c216_143] : memref<8x896xf32, #tpu.memory_space<vmem>>, vector<8x384xf32>
    %cst_144 = arith.constant dense<0.000000e+00> : vector<16x384xf32>
    %135 = tpu.matmul %133, %134, %cst_144 {dimension_numbers = #tpu.dot_dimension_numbers<[1], [0], [0], [1], [0, 0, 1, 1], [], []>} : vector<16x8xf32>, vector<8x384xf32>, vector<16x384xf32> -> vector<16x384xf32>
    %136 = arith.addf %132, %135 : vector<16x384xf32>
    %c0_145 = arith.constant 0 : index
    %c224 = arith.constant 224 : index
    %137 = vector.load %arg2[%c0_145, %c224] : memref<16x400xf32, #tpu.memory_space<vmem>>, vector<16x8xf32>
    %c0_146 = arith.constant 0 : index
    %c224_147 = arith.constant 224 : index
    %138 = vector.load %arg5[%c0_146, %c224_147] : memref<8x896xf32, #tpu.memory_space<vmem>>, vector<8x384xf32>
    %cst_148 = arith.constant dense<0.000000e+00> : vector<16x384xf32>
    %139 = tpu.matmul %137, %138, %cst_148 {dimension_numbers = #tpu.dot_dimension_numbers<[1], [0], [0], [1], [0, 0, 1, 1], [], []>} : vector<16x8xf32>, vector<8x384xf32>, vector<16x384xf32> -> vector<16x384xf32>
    %140 = arith.addf %136, %139 : vector<16x384xf32>
    %c0_149 = arith.constant 0 : index
    %c232 = arith.constant 232 : index
    %141 = vector.load %arg2[%c0_149, %c232] : memref<16x400xf32, #tpu.memory_space<vmem>>, vector<16x8xf32>
    %c0_150 = arith.constant 0 : index
    %c232_151 = arith.constant 232 : index
    %142 = vector.load %arg5[%c0_150, %c232_151] : memref<8x896xf32, #tpu.memory_space<vmem>>, vector<8x384xf32>
    %cst_152 = arith.constant dense<0.000000e+00> : vector<16x384xf32>
    %143 = tpu.matmul %141, %142, %cst_152 {dimension_numbers = #tpu.dot_dimension_numbers<[1], [0], [0], [1], [0, 0, 1, 1], [], []>} : vector<16x8xf32>, vector<8x384xf32>, vector<16x384xf32> -> vector<16x384xf32>
    %144 = arith.addf %140, %143 : vector<16x384xf32>
    %c0_153 = arith.constant 0 : index
    %c240 = arith.constant 240 : index
    %145 = vector.load %arg2[%c0_153, %c240] : memref<16x400xf32, #tpu.memory_space<vmem>>, vector<16x8xf32>
    %c0_154 = arith.constant 0 : index
    %c240_155 = arith.constant 240 : index
    %146 = vector.load %arg5[%c0_154, %c240_155] : memref<8x896xf32, #tpu.memory_space<vmem>>, vector<8x384xf32>
    %cst_156 = arith.constant dense<0.000000e+00> : vector<16x384xf32>
    %147 = tpu.matmul %145, %146, %cst_156 {dimension_numbers = #tpu.dot_dimension_numbers<[1], [0], [0], [1], [0, 0, 1, 1], [], []>} : vector<16x8xf32>, vector<8x384xf32>, vector<16x384xf32> -> vector<16x384xf32>
    %148 = arith.addf %144, %147 : vector<16x384xf32>
    %c0_157 = arith.constant 0 : index
    %c248 = arith.constant 248 : index
    %149 = vector.load %arg2[%c0_157, %c248] : memref<16x400xf32, #tpu.memory_space<vmem>>, vector<16x8xf32>
    %c0_158 = arith.constant 0 : index
    %c248_159 = arith.constant 248 : index
    %150 = vector.load %arg5[%c0_158, %c248_159] : memref<8x896xf32, #tpu.memory_space<vmem>>, vector<8x384xf32>
    %cst_160 = arith.constant dense<0.000000e+00> : vector<16x384xf32>
    %151 = tpu.matmul %149, %150, %cst_160 {dimension_numbers = #tpu.dot_dimension_numbers<[1], [0], [0], [1], [0, 0, 1, 1], [], []>} : vector<16x8xf32>, vector<8x384xf32>, vector<16x384xf32> -> vector<16x384xf32>
    %152 = arith.addf %148, %151 : vector<16x384xf32>
    %c0_161 = arith.constant 0 : index
    %c256 = arith.constant 256 : index
    %153 = vector.load %arg2[%c0_161, %c256] : memref<16x400xf32, #tpu.memory_space<vmem>>, vector<16x8xf32>
    %c0_162 = arith.constant 0 : index
    %c256_163 = arith.constant 256 : index
    %154 = vector.load %arg5[%c0_162, %c256_163] : memref<8x896xf32, #tpu.memory_space<vmem>>, vector<8x384xf32>
    %cst_164 = arith.constant dense<0.000000e+00> : vector<16x384xf32>
    %155 = tpu.matmul %153, %154, %cst_164 {dimension_numbers = #tpu.dot_dimension_numbers<[1], [0], [0], [1], [0, 0, 1, 1], [], []>} : vector<16x8xf32>, vector<8x384xf32>, vector<16x384xf32> -> vector<16x384xf32>
    %156 = arith.addf %152, %155 : vector<16x384xf32>
    %c0_165 = arith.constant 0 : index
    %c264 = arith.constant 264 : index
    %157 = vector.load %arg2[%c0_165, %c264] : memref<16x400xf32, #tpu.memory_space<vmem>>, vector<16x8xf32>
    %c0_166 = arith.constant 0 : index
    %c264_167 = arith.constant 264 : index
    %158 = vector.load %arg5[%c0_166, %c264_167] : memref<8x896xf32, #tpu.memory_space<vmem>>, vector<8x384xf32>
    %cst_168 = arith.constant dense<0.000000e+00> : vector<16x384xf32>
    %159 = tpu.matmul %157, %158, %cst_168 {dimension_numbers = #tpu.dot_dimension_numbers<[1], [0], [0], [1], [0, 0, 1, 1], [], []>} : vector<16x8xf32>, vector<8x384xf32>, vector<16x384xf32> -> vector<16x384xf32>
    %160 = arith.addf %156, %159 : vector<16x384xf32>
    %c0_169 = arith.constant 0 : index
    %c272 = arith.constant 272 : index
    %161 = vector.load %arg2[%c0_169, %c272] : memref<16x400xf32, #tpu.memory_space<vmem>>, vector<16x8xf32>
    %c0_170 = arith.constant 0 : index
    %c272_171 = arith.constant 272 : index
    %162 = vector.load %arg5[%c0_170, %c272_171] : memref<8x896xf32, #tpu.memory_space<vmem>>, vector<8x384xf32>
    %cst_172 = arith.constant dense<0.000000e+00> : vector<16x384xf32>
    %163 = tpu.matmul %161, %162, %cst_172 {dimension_numbers = #tpu.dot_dimension_numbers<[1], [0], [0], [1], [0, 0, 1, 1], [], []>} : vector<16x8xf32>, vector<8x384xf32>, vector<16x384xf32> -> vector<16x384xf32>
    %164 = arith.addf %160, %163 : vector<16x384xf32>
    %c0_173 = arith.constant 0 : index
    %c280 = arith.constant 280 : index
    %165 = vector.load %arg2[%c0_173, %c280] : memref<16x400xf32, #tpu.memory_space<vmem>>, vector<16x8xf32>
    %c0_174 = arith.constant 0 : index
    %c280_175 = arith.constant 280 : index
    %166 = vector.load %arg5[%c0_174, %c280_175] : memref<8x896xf32, #tpu.memory_space<vmem>>, vector<8x384xf32>
    %cst_176 = arith.constant dense<0.000000e+00> : vector<16x384xf32>
    %167 = tpu.matmul %165, %166, %cst_176 {dimension_numbers = #tpu.dot_dimension_numbers<[1], [0], [0], [1], [0, 0, 1, 1], [], []>} : vector<16x8xf32>, vector<8x384xf32>, vector<16x384xf32> -> vector<16x384xf32>
    %168 = arith.addf %164, %167 : vector<16x384xf32>
    %c0_177 = arith.constant 0 : index
    %c288 = arith.constant 288 : index
    %169 = vector.load %arg2[%c0_177, %c288] : memref<16x400xf32, #tpu.memory_space<vmem>>, vector<16x8xf32>
    %c0_178 = arith.constant 0 : index
    %c288_179 = arith.constant 288 : index
    %170 = vector.load %arg5[%c0_178, %c288_179] : memref<8x896xf32, #tpu.memory_space<vmem>>, vector<8x384xf32>
    %cst_180 = arith.constant dense<0.000000e+00> : vector<16x384xf32>
    %171 = tpu.matmul %169, %170, %cst_180 {dimension_numbers = #tpu.dot_dimension_numbers<[1], [0], [0], [1], [0, 0, 1, 1], [], []>} : vector<16x8xf32>, vector<8x384xf32>, vector<16x384xf32> -> vector<16x384xf32>
    %172 = arith.addf %168, %171 : vector<16x384xf32>
    %c0_181 = arith.constant 0 : index
    %c296 = arith.constant 296 : index
    %173 = vector.load %arg2[%c0_181, %c296] : memref<16x400xf32, #tpu.memory_space<vmem>>, vector<16x8xf32>
    %c0_182 = arith.constant 0 : index
    %c296_183 = arith.constant 296 : index
    %174 = vector.load %arg5[%c0_182, %c296_183] : memref<8x896xf32, #tpu.memory_space<vmem>>, vector<8x384xf32>
    %cst_184 = arith.constant dense<0.000000e+00> : vector<16x384xf32>
    %175 = tpu.matmul %173, %174, %cst_184 {dimension_numbers = #tpu.dot_dimension_numbers<[1], [0], [0], [1], [0, 0, 1, 1], [], []>} : vector<16x8xf32>, vector<8x384xf32>, vector<16x384xf32> -> vector<16x384xf32>
    %176 = arith.addf %172, %175 : vector<16x384xf32>
    %c0_185 = arith.constant 0 : index
    %c304 = arith.constant 304 : index
    %177 = vector.load %arg2[%c0_185, %c304] : memref<16x400xf32, #tpu.memory_space<vmem>>, vector<16x8xf32>
    %c0_186 = arith.constant 0 : index
    %c304_187 = arith.constant 304 : index
    %178 = vector.load %arg5[%c0_186, %c304_187] : memref<8x896xf32, #tpu.memory_space<vmem>>, vector<8x384xf32>
    %cst_188 = arith.constant dense<0.000000e+00> : vector<16x384xf32>
    %179 = tpu.matmul %177, %178, %cst_188 {dimension_numbers = #tpu.dot_dimension_numbers<[1], [0], [0], [1], [0, 0, 1, 1], [], []>} : vector<16x8xf32>, vector<8x384xf32>, vector<16x384xf32> -> vector<16x384xf32>
    %180 = arith.addf %176, %179 : vector<16x384xf32>
    %c0_189 = arith.constant 0 : index
    %c312 = arith.constant 312 : index
    %181 = vector.load %arg2[%c0_189, %c312] : memref<16x400xf32, #tpu.memory_space<vmem>>, vector<16x8xf32>
    %c0_190 = arith.constant 0 : index
    %c312_191 = arith.constant 312 : index
    %182 = vector.load %arg5[%c0_190, %c312_191] : memref<8x896xf32, #tpu.memory_space<vmem>>, vector<8x384xf32>
    %cst_192 = arith.constant dense<0.000000e+00> : vector<16x384xf32>
    %183 = tpu.matmul %181, %182, %cst_192 {dimension_numbers = #tpu.dot_dimension_numbers<[1], [0], [0], [1], [0, 0, 1, 1], [], []>} : vector<16x8xf32>, vector<8x384xf32>, vector<16x384xf32> -> vector<16x384xf32>
    %184 = arith.addf %180, %183 : vector<16x384xf32>
    %c0_193 = arith.constant 0 : index
    %c320 = arith.constant 320 : index
    %185 = vector.load %arg2[%c0_193, %c320] : memref<16x400xf32, #tpu.memory_space<vmem>>, vector<16x8xf32>
    %c0_194 = arith.constant 0 : index
    %c320_195 = arith.constant 320 : index
    %186 = vector.load %arg5[%c0_194, %c320_195] : memref<8x896xf32, #tpu.memory_space<vmem>>, vector<8x384xf32>
    %cst_196 = arith.constant dense<0.000000e+00> : vector<16x384xf32>
    %187 = tpu.matmul %185, %186, %cst_196 {dimension_numbers = #tpu.dot_dimension_numbers<[1], [0], [0], [1], [0, 0, 1, 1], [], []>} : vector<16x8xf32>, vector<8x384xf32>, vector<16x384xf32> -> vector<16x384xf32>
    %188 = arith.addf %184, %187 : vector<16x384xf32>
    %c0_197 = arith.constant 0 : index
    %c328 = arith.constant 328 : index
    %189 = vector.load %arg2[%c0_197, %c328] : memref<16x400xf32, #tpu.memory_space<vmem>>, vector<16x8xf32>
    %c0_198 = arith.constant 0 : index
    %c328_199 = arith.constant 328 : index
    %190 = vector.load %arg5[%c0_198, %c328_199] : memref<8x896xf32, #tpu.memory_space<vmem>>, vector<8x384xf32>
    %cst_200 = arith.constant dense<0.000000e+00> : vector<16x384xf32>
    %191 = tpu.matmul %189, %190, %cst_200 {dimension_numbers = #tpu.dot_dimension_numbers<[1], [0], [0], [1], [0, 0, 1, 1], [], []>} : vector<16x8xf32>, vector<8x384xf32>, vector<16x384xf32> -> vector<16x384xf32>
    %192 = arith.addf %188, %191 : vector<16x384xf32>
    %c0_201 = arith.constant 0 : index
    %c336 = arith.constant 336 : index
    %193 = vector.load %arg2[%c0_201, %c336] : memref<16x400xf32, #tpu.memory_space<vmem>>, vector<16x8xf32>
    %c0_202 = arith.constant 0 : index
    %c336_203 = arith.constant 336 : index
    %194 = vector.load %arg5[%c0_202, %c336_203] : memref<8x896xf32, #tpu.memory_space<vmem>>, vector<8x384xf32>
    %cst_204 = arith.constant dense<0.000000e+00> : vector<16x384xf32>
    %195 = tpu.matmul %193, %194, %cst_204 {dimension_numbers = #tpu.dot_dimension_numbers<[1], [0], [0], [1], [0, 0, 1, 1], [], []>} : vector<16x8xf32>, vector<8x384xf32>, vector<16x384xf32> -> vector<16x384xf32>
    %196 = arith.addf %192, %195 : vector<16x384xf32>
    %c0_205 = arith.constant 0 : index
    %c344 = arith.constant 344 : index
    %197 = vector.load %arg2[%c0_205, %c344] : memref<16x400xf32, #tpu.memory_space<vmem>>, vector<16x8xf32>
    %c0_206 = arith.constant 0 : index
    %c344_207 = arith.constant 344 : index
    %198 = vector.load %arg5[%c0_206, %c344_207] : memref<8x896xf32, #tpu.memory_space<vmem>>, vector<8x384xf32>
    %cst_208 = arith.constant dense<0.000000e+00> : vector<16x384xf32>
    %199 = tpu.matmul %197, %198, %cst_208 {dimension_numbers = #tpu.dot_dimension_numbers<[1], [0], [0], [1], [0, 0, 1, 1], [], []>} : vector<16x8xf32>, vector<8x384xf32>, vector<16x384xf32> -> vector<16x384xf32>
    %200 = arith.addf %196, %199 : vector<16x384xf32>
    %c0_209 = arith.constant 0 : index
    %c352 = arith.constant 352 : index
    %201 = vector.load %arg2[%c0_209, %c352] : memref<16x400xf32, #tpu.memory_space<vmem>>, vector<16x8xf32>
    %c0_210 = arith.constant 0 : index
    %c352_211 = arith.constant 352 : index
    %202 = vector.load %arg5[%c0_210, %c352_211] : memref<8x896xf32, #tpu.memory_space<vmem>>, vector<8x384xf32>
    %cst_212 = arith.constant dense<0.000000e+00> : vector<16x384xf32>
    %203 = tpu.matmul %201, %202, %cst_212 {dimension_numbers = #tpu.dot_dimension_numbers<[1], [0], [0], [1], [0, 0, 1, 1], [], []>} : vector<16x8xf32>, vector<8x384xf32>, vector<16x384xf32> -> vector<16x384xf32>
    %204 = arith.addf %200, %203 : vector<16x384xf32>
    %c0_213 = arith.constant 0 : index
    %c360 = arith.constant 360 : index
    %205 = vector.load %arg2[%c0_213, %c360] : memref<16x400xf32, #tpu.memory_space<vmem>>, vector<16x8xf32>
    %c0_214 = arith.constant 0 : index
    %c360_215 = arith.constant 360 : index
    %206 = vector.load %arg5[%c0_214, %c360_215] : memref<8x896xf32, #tpu.memory_space<vmem>>, vector<8x384xf32>
    %cst_216 = arith.constant dense<0.000000e+00> : vector<16x384xf32>
    %207 = tpu.matmul %205, %206, %cst_216 {dimension_numbers = #tpu.dot_dimension_numbers<[1], [0], [0], [1], [0, 0, 1, 1], [], []>} : vector<16x8xf32>, vector<8x384xf32>, vector<16x384xf32> -> vector<16x384xf32>
    %208 = arith.addf %204, %207 : vector<16x384xf32>
    %c0_217 = arith.constant 0 : index
    %c368 = arith.constant 368 : index
    %209 = vector.load %arg2[%c0_217, %c368] : memref<16x400xf32, #tpu.memory_space<vmem>>, vector<16x8xf32>
    %c0_218 = arith.constant 0 : index
    %c368_219 = arith.constant 368 : index
    %210 = vector.load %arg5[%c0_218, %c368_219] : memref<8x896xf32, #tpu.memory_space<vmem>>, vector<8x384xf32>
    %cst_220 = arith.constant dense<0.000000e+00> : vector<16x384xf32>
    %211 = tpu.matmul %209, %210, %cst_220 {dimension_numbers = #tpu.dot_dimension_numbers<[1], [0], [0], [1], [0, 0, 1, 1], [], []>} : vector<16x8xf32>, vector<8x384xf32>, vector<16x384xf32> -> vector<16x384xf32>
    %212 = arith.addf %208, %211 : vector<16x384xf32>
    %c0_221 = arith.constant 0 : index
    %c376 = arith.constant 376 : index
    %213 = vector.load %arg2[%c0_221, %c376] : memref<16x400xf32, #tpu.memory_space<vmem>>, vector<16x8xf32>
    %c0_222 = arith.constant 0 : index
    %c376_223 = arith.constant 376 : index
    %214 = vector.load %arg5[%c0_222, %c376_223] : memref<8x896xf32, #tpu.memory_space<vmem>>, vector<8x384xf32>
    %cst_224 = arith.constant dense<0.000000e+00> : vector<16x384xf32>
    %215 = tpu.matmul %213, %214, %cst_224 {dimension_numbers = #tpu.dot_dimension_numbers<[1], [0], [0], [1], [0, 0, 1, 1], [], []>} : vector<16x8xf32>, vector<8x384xf32>, vector<16x384xf32> -> vector<16x384xf32>
    %216 = arith.addf %212, %215 : vector<16x384xf32>
    %c0_225 = arith.constant 0 : index
    %c384 = arith.constant 384 : index
    %217 = vector.load %arg2[%c0_225, %c384] : memref<16x400xf32, #tpu.memory_space<vmem>>, vector<16x8xf32>
    %c0_226 = arith.constant 0 : index
    %c384_227 = arith.constant 384 : index
    %218 = vector.load %arg5[%c0_226, %c384_227] : memref<8x896xf32, #tpu.memory_space<vmem>>, vector<8x384xf32>
    %cst_228 = arith.constant dense<0.000000e+00> : vector<16x384xf32>
    %219 = tpu.matmul %217, %218, %cst_228 {dimension_numbers = #tpu.dot_dimension_numbers<[1], [0], [0], [1], [0, 0, 1, 1], [], []>} : vector<16x8xf32>, vector<8x384xf32>, vector<16x384xf32> -> vector<16x384xf32>
    %220 = arith.addf %216, %219 : vector<16x384xf32>
    %c0_229 = arith.constant 0 : index
    %c392 = arith.constant 392 : index
    %221 = vector.load %arg2[%c0_229, %c392] : memref<16x400xf32, #tpu.memory_space<vmem>>, vector<16x8xf32>
    %c0_230 = arith.constant 0 : index
    %c392_231 = arith.constant 392 : index
    %222 = vector.load %arg5[%c0_230, %c392_231] : memref<8x896xf32, #tpu.memory_space<vmem>>, vector<8x384xf32>
    %cst_232 = arith.constant dense<0.000000e+00> : vector<16x384xf32>
    %223 = tpu.matmul %221, %222, %cst_232 {dimension_numbers = #tpu.dot_dimension_numbers<[1], [0], [0], [1], [0, 0, 1, 1], [], []>} : vector<16x8xf32>, vector<8x384xf32>, vector<16x384xf32> -> vector<16x384xf32>
    %224 = arith.addf %220, %223 : vector<16x384xf32>
    %c0_233 = arith.constant 0 : index
    %c0_234 = arith.constant 0 : index
    %225 = vector.load %arg3[%c0_233, %c0_234] : memref<16x1xf32, #tpu.memory_space<vmem>>, vector<16x1xf32>
    %226 = vector.broadcast %225 : vector<16x1xf32> to vector<16x384xf32>
    %227 = arith.addf %224, %226 : vector<16x384xf32>
    %228 = vector.extract_strided_slice %227 {offsets = [0, 0], sizes = [8, 384], strides = [1, 1]} : vector<16x384xf32> to vector<8x384xf32>
    %229 = vector.extract_strided_slice %227 {offsets = [8, 0], sizes = [8, 384], strides = [1, 1]} : vector<16x384xf32> to vector<8x384xf32>
    %230 = arith.mulf %228, %228 : vector<8x384xf32>
    %231 = arith.mulf %229, %229 : vector<8x384xf32>
    %232 = arith.addf %230, %231 : vector<8x384xf32>
    %c0_235 = arith.constant 0 : index
    %c0_236 = arith.constant 0 : index
    %c0_237 = arith.constant 0 : index
    %233 = vector.load %arg4[%c0_235, %c0_236, %c0_237] : memref<1x8x384xf32, #tpu.memory_space<vmem>>, vector<1x8x384xf32>
    %234 = vector.shape_cast %233 : vector<1x8x384xf32> to vector<8x384xf32>
    %235 = vector.shape_cast %232 : vector<8x384xf32> to vector<1x8x384xf32>
    tpu.vector_store %arg4[%c0_235, %c0_236, %c0_237], %235 {strides = array<i32>} : memref<1x8x384xf32, #tpu.memory_space<vmem>>, vector<1x8x384xf32>,
    return
  }
  func.func @transform_0(%arg0: i32) -> (i32, i32, i32) {
    %c0_i32 = arith.constant 0 : i32
    %c0_i32_0 = arith.constant 0 : i32
    %c0_i32_1 = arith.constant 0 : i32
    return %arg0, %c0_i32, %c0_i32_0 : i32, i32, i32
  }
  func.func @transform_1(%arg0: i32) -> (i32, i32) {
    %c0_i32 = arith.constant 0 : i32
    %c0_i32_0 = arith.constant 0 : i32
    %c0_i32_1 = arith.constant 0 : i32
    return %c0_i32, %c0_i32_0 : i32, i32
  }
  func.func @transform_2(%arg0: i32) -> (i32, i32) {
    %c0_i32 = arith.constant 0 : i32
    %c0_i32_0 = arith.constant 0 : i32
    %c0_i32_1 = arith.constant 0 : i32
    return %c0_i32, %c0_i32_0 : i32, i32
  }
  func.func @transform_3(%arg0: i32) -> (i32, i32, i32) {
    %c0_i32 = arith.constant 0 : i32
    %c0_i32_0 = arith.constant 0 : i32
    %c0_i32_1 = arith.constant 0 : i32
    return %arg0, %c0_i32, %c0_i32_0 : i32, i32, i32
  }
}

</mosaic_0001>

<llo_original>
// kernel: tpu_custom_call.1
$region0: #{tpu_custom_call.1}
  #allocation0 [shape = 'u32[]', space=smem, size = 0x4, offset = 0x4, fixed_abs, tag = 'smem constant byte address 0x4 - core index']
  #allocation1 [shape = 'u32[72,128]{1,0:T(1,128)}', space=vmem, size = 0x9000, scoped, tag = 'internal scratch']
  #allocation2 [shape = 'f32[8,896]{1,0:T(8,128)}', space=vmem, size = 0x7000, scoped, tag = 'scratch operand']
  %s0 = inlined_call_operand.vmem [shape: f32[2,1,1024], index: 0, kind: input, shape index: {}]
  %s1 = inlined_call_operand.hbm [shape: f32[16,400], index: 1, kind: input, shape index: {}]
  %s2 = inlined_call_operand.vmem [shape: f32[16,1], index: 2, kind: input, shape index: {}]
  %s3 = inlined_call_operand.hbm [shape: f32[2,8,384], index: 3, kind: output, shape index: {}]
  %s4 = sld [smem:[#allocation0]]
  $region49: #{tpu_custom_call.1} parent=0
    _
  %s6 = ssub.s32 1, %s4
  %s7 = scalar_select 0, %s6, %s4
  $region1: #{tpu_custom_call.1} parent=0
    #allocation3 [shape = 'u8[32768]{0}', space=vmem, size = 0x8000, scoped, tag = 'input window, operand 1, single buffered']
    #allocation4 [shape = 's32[2]{0}', space=sflag, size = 0x8, scoped, tag = 'scoped memory for tpu_custom_call.1']
    #allocation5 [shape = 's32[2]{0}', space=sflag, size = 0x8, scoped, tag = 'scoped memory for tpu_custom_call.1']
    #allocation6 [shape = 'u8[24576]{0}', space=vmem, size = 0x6000, scoped, tag = 'output window, operand 0']
    %8 = vsyncpa [#allocation4], 0
    %9 = vsyncpa [#allocation5], 0
    %s10 = scalar_lea.sflag [#allocation5], 1
    %11 = vsyncpa %s10, 0
    loop: start=0, step=1, limit=4
    $region2: #{tpu_custom_call.1} parent=1 // loop_pre_header
      _
    $region3: #{tpu_custom_call.1} parent=1 // loop_header
      %s13 = sphi 0, %s17
      %p14 = scmp.ge.s32.totalorder %s13, 4
      %s23 = sphi 0, %s25
      %s26 = sphi 0, %s23
      %s27 = sphi 0, %s26
      %s43 = sphi 0, %s27
      %s47 = sphi 0, %s47
      %s49 = sphi 0, %s47
      %s50 = sphi 0, %s49
      %s64 = sphi 0, %s50
      %s68 = sphi 0, %s68
      %s70 = sphi 0, %s68
      %s71 = sphi 0, %s70
      %s85 = sphi 0, %s71
      %s91 = sphi 0, %s93
      %s94 = sphi 0, %s91
      %s95 = sphi 0, %s94
      %s111 = sphi 0, %s95
    $region4: #{tpu_custom_call.1} parent=1 // loop_header_branch
      %16 = sbr.rel (%p14) target = $region8
    $region5: #{tpu_custom_call.1} parent=1 // loop_body
      %s18 = ssub.s32 %s13, 1
      %s19 = ssub.s32 %s13, 2
      %s20 = sadd.s32 %s13, 1
      %s21 = ssub.s32 %s13, %s20
      %p22 = scmp.eq.s32.totalorder %s21, 0
      %s24 = sadd.s32 %s23, 1
      %s25 = scalar_select %p22, %s23, %s24
      %p28 = pneg %p22
      %p29 = scmp.eq.s32.totalorder %s13, 1
      %p30 = por %p28, %p29
      %p31 = scmp.ne.s32.totalorder %s23, %s26
      %p32 = scmp.eq.s32.totalorder %s13, 0
      %p33 = por %p31, %p32
      %p34 = scmp.ne.s32.totalorder %s23, %s26
      %p35 = scmp.eq.s32.totalorder %s18, 1
      %p36 = por %p34, %p35
      %p37 = scmp.ne.s32.totalorder %s26, %s27
      %p38 = scmp.eq.s32.totalorder %s18, 0
      %p39 = por %p37, %p38
      %p40 = scmp.ne.s32.totalorder %s26, %s27
      %p41 = scmp.eq.s32.totalorder %s19, 1
      %p42 = por %p40, %p41
      %p44 = scmp.ne.s32.totalorder %s27, %s43
      %p45 = scmp.eq.s32.totalorder %s19, 0
      %p46 = por %p44, %p45
      %s48 = sadd.s32 %s47, 1
      %p51 = scmp.eq.s32.totalorder %s13, 1
      %p52 = scmp.ne.s32.totalorder %s47, %s49
      %p53 = scmp.eq.s32.totalorder %s13, 0
      %p54 = por %p52, %p53
      %p55 = scmp.ne.s32.totalorder %s47, %s49
      %p56 = scmp.eq.s32.totalorder %s18, 1
      %p57 = por %p55, %p56
      %p58 = scmp.ne.s32.totalorder %s49, %s50
      %p59 = scmp.eq.s32.totalorder %s18, 0
      %p60 = por %p58, %p59
      %p61 = scmp.ne.s32.totalorder %s49, %s50
      %p62 = scmp.eq.s32.totalorder %s19, 1
      %p63 = por %p61, %p62
      %p65 = scmp.ne.s32.totalorder %s50, %s64
      %p66 = scmp.eq.s32.totalorder %s19, 0
      %p67 = por %p65, %p66
      %s69 = sadd.s32 %s68, 1
      %p72 = scmp.eq.s32.totalorder %s13, 1
      %p73 = scmp.ne.s32.totalorder %s68, %s70
      %p74 = scmp.eq.s32.totalorder %s13, 0
      %p75 = por %p73, %p74
      %p76 = scmp.ne.s32.totalorder %s68, %s70
      %p77 = scmp.eq.s32.totalorder %s18, 1
      %p78 = por %p76, %p77
      %p79 = scmp.ne.s32.totalorder %s70, %s71
      %p80 = scmp.eq.s32.totalorder %s18, 0
      %p81 = por %p79, %p80
      %p82 = scmp.ne.s32.totalorder %s70, %s71
      %p83 = scmp.eq.s32.totalorder %s19, 1
      %p84 = por %p82, %p83
      %p86 = scmp.ne.s32.totalorder %s71, %s85
      %p87 = scmp.eq.s32.totalorder %s19, 0
      %p88 = por %p86, %p87
      %s89 = ssub.s32 %s13, %s20
      %p90 = scmp.eq.s32.totalorder %s89, 0
      %s92 = sadd.s32 %s91, 1
      %s93 = scalar_select %p90, %s91, %s92
      %p96 = pneg %p90
      %p97 = scmp.eq.s32.totalorder %s13, 1
      %p98 = por %p96, %p97
      %p99 = scmp.ne.s32.totalorder %s91, %s94
      %p100 = scmp.eq.s32.totalorder %s13, 0
      %p101 = por %p99, %p100
      %p102 = scmp.ne.s32.totalorder %s91, %s94
      %p103 = scmp.eq.s32.totalorder %s18, 1
      %p104 = por %p102, %p103
      %p105 = scmp.ne.s32.totalorder %s94, %s95
      %p106 = scmp.eq.s32.totalorder %s18, 0
      %p107 = por %p105, %p106
      %p108 = scmp.ne.s32.totalorder %s94, %s95
      %p109 = scmp.eq.s32.totalorder %s19, 1
      %p110 = por %p108, %p109
      %p112 = scmp.ne.s32.totalorder %s95, %s111
      %p113 = scmp.eq.s32.totalorder %s19, 0
      %p114 = por %p112, %p113
      %p115 = scmp.le.s32.totalorder 1, %s13
      %p116 = scmp.lt.s32.totalorder %s13, 3
      %p117 = pnand %p115, %p116
      %p118 = pneg %p117
      // Predicated region
      $region9: #{tpu_custom_call.1} parent=5 // pred_check
        _
      $region10: #{tpu_custom_call.1} parent=5 // pred_check_branch
        %120 = sbr.rel (%p117) target = $region12
      $region11: #{tpu_custom_call.1} parent=5 // pred_region
        %s121 = ssub.s32 %s13, 1
        // Predicated region
        $region13: #{tpu_custom_call.1} parent=11 // pred_check
          %p122 = pneg %p60
        $region14: #{tpu_custom_call.1} parent=11 // pred_check_branch
          %124 = sbr.rel (%p122) target = $region16
        $region15: #{tpu_custom_call.1} parent=11 // pred_region
          %126 = vsyncadd [#allocation4], 0
          %s127 = sshll.u32 %s1, 4
          %s128 = int_to_ptr.hbm [resolvable:$true] %s127
          %s129 = sshll.u32 [#allocation3], 4
          %s130 = int_to_ptr.vmem [resolvable:$true] %s129
          %135 = dma.hbm_to_vmem [thread:$0]  %s128, 1024, %s130, [#allocation4], 512, 512, 32
        $region16: #{tpu_custom_call.1} parent=11 // pred_fallthru
          _
        // Predicated region
        $region17: #{tpu_custom_call.1} parent=11 // pred_check
          %p136 = pneg %p81
        $region18: #{tpu_custom_call.1} parent=11 // pred_check_branch
          %138 = sbr.rel (%p136) target = $region20
        $region19: #{tpu_custom_call.1} parent=11 // pred_region
          _
        $region20: #{tpu_custom_call.1} parent=11 // pred_fallthru
          _
      $region12: #{tpu_custom_call.1} parent=5 // pred_fallthru
        _
      %p139 = scmp.lt.s32.totalorder %s13, 2
      // Predicated region
      $region21: #{tpu_custom_call.1} parent=5 // pred_check
        %p140 = pneg %p139
      $region22: #{tpu_custom_call.1} parent=5 // pred_check_branch
        %142 = sbr.rel (%p140) target = $region24
      $region23: #{tpu_custom_call.1} parent=5 // pred_region
        // Predicated region
        $region25: #{tpu_custom_call.1} parent=23 // pred_check
          %p143 = pneg %p33
        $region26: #{tpu_custom_call.1} parent=23 // pred_check_branch
          %145 = sbr.rel (%p143) target = $region28
        $region27: #{tpu_custom_call.1} parent=23 // pred_region
          %p146 = scmp.lt.s32.totalorder %s13, 1
          %s147 = scalar_select %p146, %s13, 1
          %s148 = smul.addr %s147, 8
          %s149 = scalar_lea.vmem %s0, %s148
        $region28: #{tpu_custom_call.1} parent=23 // pred_fallthru
          _
      $region24: #{tpu_custom_call.1} parent=5 // pred_fallthru
        _
      %p150 = scmp.le.s32.totalorder 1, %s13
      %p151 = scmp.lt.s32.totalorder %s13, 3
      %p152 = pnand %p150, %p151
      %p153 = pneg %p152
      // Predicated region
      $region29: #{tpu_custom_call.1} parent=5 // pred_check
        _
      $region30: #{tpu_custom_call.1} parent=5 // pred_check_branch
        %155 = sbr.rel (%p152) target = $region32
      $region31: #{tpu_custom_call.1} parent=5 // pred_region
        %s156 = ssub.s32 %s13, 1
        // Predicated region
        $region33: #{tpu_custom_call.1} parent=31 // pred_check
          %p157 = pneg %p60
        $region34: #{tpu_custom_call.1} parent=31 // pred_check_branch
          %159 = sbr.rel (%p157) target = $region36
        $region35: #{tpu_custom_call.1} parent=31 // pred_region
          %161 = dma.done [#allocation4], 1024
        $region36: #{tpu_custom_call.1} parent=31 // pred_fallthru
          _
        %p162 = scmp.lt.s32.totalorder %s18, 1
        %s163 = scalar_select %p162, %s18, 1
        %s164 = smul.addr %s163, 8
        %s165 = scalar_lea.vmem %s0, %s164
        %p166 = pneg %p39
        %p167 = pneg %p36
        %p168 = pneg %p60
        %p169 = pneg %p57
        %p170 = pneg %p81
        %p171 = pneg %p78
        %p172 = pneg %p107
        %p173 = pneg %p104
        %s174 = sand.u32 %s94, 1
        %s175 = scalar_lea.sflag [#allocation5], %s174
        %s176 = sand.u32 %s94, 1
        %s177 = smul.addr %s176, 24
        %s178 = scalar_lea.vmem [#allocation6], %s177
        %p179 = scmp.lt.s32.totalorder %s18, 1
        %s180 = scalar_select %p179, %s18, 1
        %s181 = smul.addr %s180, 8
        %s182 = scalar_lea.vmem %s0, %s181
        %v183 = vld [vmem:[%s182] sm:$0xff]
        %v184 = vlaneseq
        %vm185 = vcmp.ge.s32.totalorder %v184, 0
        %vm186 = vcmp.lt.s32.totalorder %v184, 896
        %vm187 = vmand %vm185, %vm186
        %188 = vst.msk [vmem:[#allocation2] ss:$8 sm:$0xf] %vm187, %v183
        %189 = vst.msk [vmem:[#allocation2] ss:$8 sm:$0x70] %vm187, %v183
        %v190 = vld [vmem:[%s182] sm:$0xff]
        %192 = vrot.lane.b32.xlu0 %v190, 127
        %v193 = vpop.permute.xlu0 %192
        %v194 = vrot.slane %v193, 1
        %vm195 = vcmask 1039360
        %v196 = vsel %vm195, %v193, %v194
        %s198 = scalar_lea.vmem [#allocation2], 1
        %199 = vst.msk [vmem:[%s198] ss:$8 sm:$0xf] %vm187, %v196
        %200 = vst.msk [vmem:[%s198] ss:$8 sm:$0x70] %vm187, %v196
        %v201 = vld [vmem:[%s182] sm:$0xff]
        %203 = vrot.lane.b32.xlu0 %v201, 126
        %v204 = vpop.permute.xlu0 %203
        %v205 = vrot.slane %v204, 1
        %vm206 = vcmask 1031168
        %v207 = vsel %vm206, %v204, %v205
        %s209 = scalar_lea.vmem [#allocation2], 2
        %210 = vst.msk [vmem:[%s209] ss:$8 sm:$0xf] %vm187, %v207
        %211 = vst.msk [vmem:[%s209] ss:$8 sm:$0x70] %vm187, %v207
        %v212 = vld [vmem:[%s182] sm:$0xff]
        %214 = vrot.lane.b32.xlu0 %v212, 125
        %v215 = vpop.permute.xlu0 %214
        %v216 = vrot.slane %v215, 1
        %vm217 = vcmask 1022976
        %v218 = vsel %vm217, %v215, %v216
        %s220 = scalar_lea.vmem [#allocation2], 3
        %221 = vst.msk [vmem:[%s220] ss:$8 sm:$0xf] %vm187, %v218
        %222 = vst.msk [vmem:[%s220] ss:$8 sm:$0x70] %vm187, %v218
        %v223 = vld [vmem:[%s182] sm:$0xff]
        %225 = vrot.lane.b32.xlu0 %v223, 124
        %v226 = vpop.permute.xlu0 %225
        %v227 = vrot.slane %v226, 1
        %vm228 = vcmask 1014784
        %v229 = vsel %vm228, %v226, %v227
        %s231 = scalar_lea.vmem [#allocation2], 4
        %232 = vst.msk [vmem:[%s231] ss:$8 sm:$0xf] %vm187, %v229
        %233 = vst.msk [vmem:[%s231] ss:$8 sm:$0x70] %vm187, %v229
        %v234 = vld [vmem:[%s182] sm:$0xff]
        %236 = vrot.lane.b32.xlu0 %v234, 123
        %v237 = vpop.permute.xlu0 %236
        %v238 = vrot.slane %v237, 1
        %vm239 = vcmask 1006592
        %v240 = vsel %vm239, %v237, %v238
        %s242 = scalar_lea.vmem [#allocation2], 5
        %243 = vst.msk [vmem:[%s242] ss:$8 sm:$0xf] %vm187, %v240
        %244 = vst.msk [vmem:[%s242] ss:$8 sm:$0x70] %vm187, %v240
        %v245 = vld [vmem:[%s182] sm:$0xff]
        %247 = vrot.lane.b32.xlu0 %v245, 122
        %v248 = vpop.permute.xlu0 %247
        %v249 = vrot.slane %v248, 1
        %vm250 = vcmask 998400
        %v251 = vsel %vm250, %v248, %v249
        %s253 = scalar_lea.vmem [#allocation2], 6
        %254 = vst.msk [vmem:[%s253] ss:$8 sm:$0xf] %vm187, %v251
        %255 = vst.msk [vmem:[%s253] ss:$8 sm:$0x70] %vm187, %v251
        %v256 = vld [vmem:[%s182] sm:$0xff]
        %258 = vrot.lane.b32.xlu0 %v256, 121
        %v259 = vpop.permute.xlu0 %258
        %v260 = vrot.slane %v259, 1
        %vm261 = vcmask 990208
        %v262 = vsel %vm261, %v259, %v260
        %s264 = scalar_lea.vmem [#allocation2], 7
        %265 = vst.msk [vmem:[%s264] ss:$8 sm:$0xf] %vm187, %v262
        %266 = vst.msk [vmem:[%s264] ss:$8 sm:$0x70] %vm187, %v262
        %v267 = vld [vmem:[#allocation3] sm:$0xff]
        %v268 = vld [vmem:[#allocation3 + $0x20] sm:$0xff]
        %v269 = vld [vmem:[#allocation2] sm:$0xff]
        %v270 = vld [vmem:[#allocation2 + $0x8] sm:$0xff]
        %v271 = vld [vmem:[#allocation2 + $0x10] sm:$0xff]
        %v272 = vld [vmem:[#allocation2 + $0x18] sm:$0xff]
        %275 = vrot.lane.b32.xlu0 %v267, 120
        %v276 = vpop.permute.xlu0 %275
        %277 = vrot.lane.b32.xlu0 %v268, 120
        %v278 = vpop.permute.xlu0 %277
        %283 = vrot.lane.b32.xlu0 %v269, 120
        %v284 = vpop.permute.xlu0 %283
        %285 = vrot.lane.b32.xlu0 %v270, 120
        %v286 = vpop.permute.xlu0 %285
        %287 = vrot.lane.b32.xlu0 %v271, 120
        %v288 = vpop.permute.xlu0 %287
        %289 = vrot.lane.b32.xlu0 %v272, 120
        %v290 = vpop.permute.xlu0 %289
        %vm291 = vcmask 982016
        %v292 = vsel %vm291, %v284, %v286
        %v293 = vsel %vm291, %v286, %v288
        %v294 = vsel %vm291, %v288, %v290
        %vm298 = vcmask 64512
        %v299 = vsel %vm298, %v276, 0
        %v301 = vsel %vm298, %v278, 0
        %303 = vmatpush.msra.mxu0 0.0
        %304 = vmatpush.msra.mxu0 0.0
        %305 = vmatpush.msra.mxu0 0.0
        %306 = vmatpush.msra.mxu0 0.0
        %307 = vmatpush.msra.mxu0 0.0
        %308 = vmatpush.msra.mxu0 0.0
        %309 = vmatpush.msra.mxu0 0.0
        %310 = vmatpush.msra.mxu0 0.0
        %311 = vmatpush.msra.mxu0 0.0
        %312 = vmatpush.msra.mxu0 0.0
        %313 = vmatpush.msra.mxu0 0.0
        %314 = vmatpush.msra.mxu0 0.0
        %315 = vmatpush.msra.mxu0 0.0
        %316 = vmatpush.msra.mxu0 0.0
        %317 = vmatpush.msra.mxu0 0.0
        %318 = vmatpush.msra.mxu0 %v292
        %319 = vmatmul.f32.gmra.mxu0 %v299
        %v320 = vpop.f32.mrf.mxu0
        %v321 = vadd.f32 0.0, %v320
        %322 = vmatmul.f32.gmra.mxu0 %v301
        %v323 = vpop.f32.mrf.mxu0
        %v324 = vadd.f32 0.0, %v323
        %325 = vdwg.mxu0
        %326 = vmatpush.msra.mxu0 0.0
        %327 = vmatpush.msra.mxu0 0.0
        %328 = vmatpush.msra.mxu0 0.0
        %329 = vmatpush.msra.mxu0 0.0
        %330 = vmatpush.msra.mxu0 0.0
        %331 = vmatpush.msra.mxu0 0.0
        %332 = vmatpush.msra.mxu0 0.0
        %333 = vmatpush.msra.mxu0 0.0
        %334 = vmatpush.msra.mxu0 0.0
        %335 = vmatpush.msra.mxu0 0.0
        %336 = vmatpush.msra.mxu0 0.0
        %337 = vmatpush.msra.mxu0 0.0
        %338 = vmatpush.msra.mxu0 0.0
        %339 = vmatpush.msra.mxu0 0.0
        %340 = vmatpush.msra.mxu0 0.0
        %341 = vmatpush.msra.mxu0 %v293
        %342 = vmatmul.f32.gmra.mxu0 %v299
        %v343 = vpop.f32.mrf.mxu0
        %v344 = vadd.f32 0.0, %v343
        %345 = vmatmul.f32.gmra.mxu0 %v301
        %v346 = vpop.f32.mrf.mxu0
        %v347 = vadd.f32 0.0, %v346
        %348 = vdwg.mxu0
        %349 = vmatpush.msra.mxu0 0.0
        %350 = vmatpush.msra.mxu0 0.0
        %351 = vmatpush.msra.mxu0 0.0
        %352 = vmatpush.msra.mxu0 0.0
        %353 = vmatpush.msra.mxu0 0.0
        %354 = vmatpush.msra.mxu0 0.0
        %355 = vmatpush.msra.mxu0 0.0
        %356 = vmatpush.msra.mxu0 0.0
        %357 = vmatpush.msra.mxu0 0.0
        %358 = vmatpush.msra.mxu0 0.0
        %359 = vmatpush.msra.mxu0 0.0
        %360 = vmatpush.msra.mxu0 0.0
        %361 = vmatpush.msra.mxu0 0.0
        %362 = vmatpush.msra.mxu0 0.0
        %363 = vmatpush.msra.mxu0 0.0
        %364 = vmatpush.msra.mxu0 %v294
        %365 = vmatmul.f32.gmra.mxu0 %v299
        %v366 = vpop.f32.mrf.mxu0
        %v367 = vadd.f32 0.0, %v366
        %368 = vmatmul.f32.gmra.mxu0 %v301
        %v369 = vpop.f32.mrf.mxu0
        %v370 = vadd.f32 0.0, %v369
        %371 = vdwg.mxu0
        %v372 = vsel %vm298, %v267, 0
        %v374 = vsel %vm298, %v268, 0
        %376 = vmatpush.msra.mxu0 0.0
        %377 = vmatpush.msra.mxu0 0.0
        %378 = vmatpush.msra.mxu0 0.0
        %379 = vmatpush.msra.mxu0 0.0
        %380 = vmatpush.msra.mxu0 0.0
        %381 = vmatpush.msra.mxu0 0.0
        %382 = vmatpush.msra.mxu0 0.0
        %383 = vmatpush.msra.mxu0 0.0
        %384 = vmatpush.msra.mxu0 0.0
        %385 = vmatpush.msra.mxu0 0.0
        %386 = vmatpush.msra.mxu0 0.0
        %387 = vmatpush.msra.mxu0 0.0
        %388 = vmatpush.msra.mxu0 0.0
        %389 = vmatpush.msra.mxu0 0.0
        %390 = vmatpush.msra.mxu0 0.0
        %391 = vmatpush.msra.mxu0 %v269
        %392 = vmatmul.f32.gmra.mxu0 %v372
        %v393 = vpop.f32.mrf.mxu0
        %v394 = vadd.f32 %v321, %v393
        %395 = vmatmul.f32.gmra.mxu0 %v374
        %v396 = vpop.f32.mrf.mxu0
        %v397 = vadd.f32 %v324, %v396
        %398 = vdwg.mxu0
        %399 = vmatpush.msra.mxu0 0.0
        %400 = vmatpush.msra.mxu0 0.0
        %401 = vmatpush.msra.mxu0 0.0
        %402 = vmatpush.msra.mxu0 0.0
        %403 = vmatpush.msra.mxu0 0.0
        %404 = vmatpush.msra.mxu0 0.0
        %405 = vmatpush.msra.mxu0 0.0
        %406 = vmatpush.msra.mxu0 0.0
        %407 = vmatpush.msra.mxu0 0.0
        %408 = vmatpush.msra.mxu0 0.0
        %409 = vmatpush.msra.mxu0 0.0
        %410 = vmatpush.msra.mxu0 0.0
        %411 = vmatpush.msra.mxu0 0.0
        %412 = vmatpush.msra.mxu0 0.0
        %413 = vmatpush.msra.mxu0 0.0
        %414 = vmatpush.msra.mxu0 %v270
        %415 = vmatmul.f32.gmra.mxu0 %v372
        %v416 = vpop.f32.mrf.mxu0
        %v417 = vadd.f32 %v344, %v416
        %418 = vmatmul.f32.gmra.mxu0 %v374
        %v419 = vpop.f32.mrf.mxu0
        %v420 = vadd.f32 %v347, %v419
        %421 = vdwg.mxu0
        %422 = vmatpush.msra.mxu0 0.0
        %423 = vmatpush.msra.mxu0 0.0
        %424 = vmatpush.msra.mxu0 0.0
        %425 = vmatpush.msra.mxu0 0.0
        %426 = vmatpush.msra.mxu0 0.0
        %427 = vmatpush.msra.mxu0 0.0
        %428 = vmatpush.msra.mxu0 0.0
        %429 = vmatpush.msra.mxu0 0.0
        %430 = vmatpush.msra.mxu0 0.0
        %431 = vmatpush.msra.mxu0 0.0
        %432 = vmatpush.msra.mxu0 0.0
        %433 = vmatpush.msra.mxu0 0.0
        %434 = vmatpush.msra.mxu0 0.0
        %435 = vmatpush.msra.mxu0 0.0
        %436 = vmatpush.msra.mxu0 0.0
        %437 = vmatpush.msra.mxu0 %v271
        %438 = vmatmul.f32.gmra.mxu0 %v372
        %v439 = vpop.f32.mrf.mxu0
        %v440 = vadd.f32 %v367, %v439
        %441 = vmatmul.f32.gmra.mxu0 %v374
        %v442 = vpop.f32.mrf.mxu0
        %v443 = vadd.f32 %v370, %v442
        %444 = vdwg.mxu0
        %445 = vrot.lane.b32.xlu0 %v267, 112
        %v446 = vpop.permute.xlu0 %445
        %447 = vrot.lane.b32.xlu0 %v268, 112
        %v448 = vpop.permute.xlu0 %447
        %449 = vrot.lane.b32.xlu0 %v269, 112
        %v450 = vpop.permute.xlu0 %449
        %451 = vrot.lane.b32.xlu0 %v270, 112
        %v452 = vpop.permute.xlu0 %451
        %453 = vrot.lane.b32.xlu0 %v271, 112
        %v454 = vpop.permute.xlu0 %453
        %455 = vrot.lane.b32.xlu0 %v272, 112
        %v456 = vpop.permute.xlu0 %455
        %vm457 = vcmask 916480
        %v458 = vsel %vm457, %v450, %v452
        %v459 = vsel %vm457, %v452, %v454
        %v460 = vsel %vm457, %v454, %v456
        %v464 = vsel %vm298, %v446, 0
        %v466 = vsel %vm298, %v448, 0
        %468 = vmatpush.msra.mxu0 0.0
        %469 = vmatpush.msra.mxu0 0.0
        %470 = vmatpush.msra.mxu0 0.0
        %471 = vmatpush.msra.mxu0 0.0
        %472 = vmatpush.msra.mxu0 0.0
        %473 = vmatpush.msra.mxu0 0.0
        %474 = vmatpush.msra.mxu0 0.0
        %475 = vmatpush.msra.mxu0 0.0
        %476 = vmatpush.msra.mxu0 0.0
        %477 = vmatpush.msra.mxu0 0.0
        %478 = vmatpush.msra.mxu0 0.0
        %479 = vmatpush.msra.mxu0 0.0
        %480 = vmatpush.msra.mxu0 0.0
        %481 = vmatpush.msra.mxu0 0.0
        %482 = vmatpush.msra.mxu0 0.0
        %483 = vmatpush.msra.mxu0 %v458
        %484 = vmatmul.f32.gmra.mxu0 %v464
        %v485 = vpop.f32.mrf.mxu0
        %v486 = vadd.f32 0.0, %v485
        %487 = vmatmul.f32.gmra.mxu0 %v466
        %v488 = vpop.f32.mrf.mxu0
        %v489 = vadd.f32 0.0, %v488
        %490 = vdwg.mxu0
        %491 = vmatpush.msra.mxu0 0.0
        %492 = vmatpush.msra.mxu0 0.0
        %493 = vmatpush.msra.mxu0 0.0
        %494 = vmatpush.msra.mxu0 0.0
        %495 = vmatpush.msra.mxu0 0.0
        %496 = vmatpush.msra.mxu0 0.0
        %497 = vmatpush.msra.mxu0 0.0
        %498 = vmatpush.msra.mxu0 0.0
        %499 = vmatpush.msra.mxu0 0.0
        %500 = vmatpush.msra.mxu0 0.0
        %501 = vmatpush.msra.mxu0 0.0
        %502 = vmatpush.msra.mxu0 0.0
        %503 = vmatpush.msra.mxu0 0.0
        %504 = vmatpush.msra.mxu0 0.0
        %505 = vmatpush.msra.mxu0 0.0
        %506 = vmatpush.msra.mxu0 %v459
        %507 = vmatmul.f32.gmra.mxu0 %v464
        %v508 = vpop.f32.mrf.mxu0
        %v509 = vadd.f32 0.0, %v508
        %510 = vmatmul.f32.gmra.mxu0 %v466
        %v511 = vpop.f32.mrf.mxu0
        %v512 = vadd.f32 0.0, %v511
        %513 = vdwg.mxu0
        %514 = vmatpush.msra.mxu0 0.0
        %515 = vmatpush.msra.mxu0 0.0
        %516 = vmatpush.msra.mxu0 0.0
        %517 = vmatpush.msra.mxu0 0.0
        %518 = vmatpush.msra.mxu0 0.0
        %519 = vmatpush.msra.mxu0 0.0
        %520 = vmatpush.msra.mxu0 0.0
        %521 = vmatpush.msra.mxu0 0.0
        %522 = vmatpush.msra.mxu0 0.0
        %523 = vmatpush.msra.mxu0 0.0
        %524 = vmatpush.msra.mxu0 0.0
        %525 = vmatpush.msra.mxu0 0.0
        %526 = vmatpush.msra.mxu0 0.0
        %527 = vmatpush.msra.mxu0 0.0
        %528 = vmatpush.msra.mxu0 0.0
        %529 = vmatpush.msra.mxu0 %v460
        %530 = vmatmul.f32.gmra.mxu0 %v464
        %v531 = vpop.f32.mrf.mxu0
        %v532 = vadd.f32 0.0, %v531
        %533 = vmatmul.f32.gmra.mxu0 %v466
        %v534 = vpop.f32.mrf.mxu0
        %v535 = vadd.f32 0.0, %v534
        %536 = vdwg.mxu0
        %v537 = vadd.f32 %v394, %v486
        %v538 = vadd.f32 %v417, %v509
        %v539 = vadd.f32 %v440, %v532
        %v540 = vadd.f32 %v397, %v489
        %v541 = vadd.f32 %v420, %v512
        %v542 = vadd.f32 %v443, %v535
        %543 = vrot.lane.b32.xlu0 %v267, 104
        %v544 = vpop.permute.xlu0 %543
        %545 = vrot.lane.b32.xlu0 %v268, 104
        %v546 = vpop.permute.xlu0 %545
        %547 = vrot.lane.b32.xlu0 %v269, 104
        %v548 = vpop.permute.xlu0 %547
        %549 = vrot.lane.b32.xlu0 %v270, 104
        %v550 = vpop.permute.xlu0 %549
        %551 = vrot.lane.b32.xlu0 %v271, 104
        %v552 = vpop.permute.xlu0 %551
        %553 = vrot.lane.b32.xlu0 %v272, 104
        %v554 = vpop.permute.xlu0 %553
        %vm555 = vcmask 850944
        %v556 = vsel %vm555, %v548, %v550
        %v557 = vsel %vm555, %v550, %v552
        %v558 = vsel %vm555, %v552, %v554
        %v562 = vsel %vm298, %v544, 0
        %v564 = vsel %vm298, %v546, 0
        %566 = vmatpush.msra.mxu0 0.0
        %567 = vmatpush.msra.mxu0 0.0
        %568 = vmatpush.msra.mxu0 0.0
        %569 = vmatpush.msra.mxu0 0.0
        %570 = vmatpush.msra.mxu0 0.0
        %571 = vmatpush.msra.mxu0 0.0
        %572 = vmatpush.msra.mxu0 0.0
        %573 = vmatpush.msra.mxu0 0.0
        %574 = vmatpush.msra.mxu0 0.0
        %575 = vmatpush.msra.mxu0 0.0
        %576 = vmatpush.msra.mxu0 0.0
        %577 = vmatpush.msra.mxu0 0.0
        %578 = vmatpush.msra.mxu0 0.0
        %579 = vmatpush.msra.mxu0 0.0
        %580 = vmatpush.msra.mxu0 0.0
        %581 = vmatpush.msra.mxu0 %v556
        %582 = vmatmul.f32.gmra.mxu0 %v562
        %v583 = vpop.f32.mrf.mxu0
        %v584 = vadd.f32 0.0, %v583
        %585 = vmatmul.f32.gmra.mxu0 %v564
        %v586 = vpop.f32.mrf.mxu0
        %v587 = vadd.f32 0.0, %v586
        %588 = vdwg.mxu0
        %589 = vmatpush.msra.mxu0 0.0
        %590 = vmatpush.msra.mxu0 0.0
        %591 = vmatpush.msra.mxu0 0.0
        %592 = vmatpush.msra.mxu0 0.0
        %593 = vmatpush.msra.mxu0 0.0
        %594 = vmatpush.msra.mxu0 0.0
        %595 = vmatpush.msra.mxu0 0.0
        %596 = vmatpush.msra.mxu0 0.0
        %597 = vmatpush.msra.mxu0 0.0
        %598 = vmatpush.msra.mxu0 0.0
        %599 = vmatpush.msra.mxu0 0.0
        %600 = vmatpush.msra.mxu0 0.0
        %601 = vmatpush.msra.mxu0 0.0
        %602 = vmatpush.msra.mxu0 0.0
        %603 = vmatpush.msra.mxu0 0.0
        %604 = vmatpush.msra.mxu0 %v557
        %605 = vmatmul.f32.gmra.mxu0 %v562
        %v606 = vpop.f32.mrf.mxu0
        %v607 = vadd.f32 0.0, %v606
        %608 = vmatmul.f32.gmra.mxu0 %v564
        %v609 = vpop.f32.mrf.mxu0
        %v610 = vadd.f32 0.0, %v609
        %611 = vdwg.mxu0
        %612 = vmatpush.msra.mxu0 0.0
        %613 = vmatpush.msra.mxu0 0.0
        %614 = vmatpush.msra.mxu0 0.0
        %615 = vmatpush.msra.mxu0 0.0
        %616 = vmatpush.msra.mxu0 0.0
        %617 = vmatpush.msra.mxu0 0.0
        %618 = vmatpush.msra.mxu0 0.0
        %619 = vmatpush.msra.mxu0 0.0
        %620 = vmatpush.msra.mxu0 0.0
        %621 = vmatpush.msra.mxu0 0.0
        %622 = vmatpush.msra.mxu0 0.0
        %623 = vmatpush.msra.mxu0 0.0
        %624 = vmatpush.msra.mxu0 0.0
        %625 = vmatpush.msra.mxu0 0.0
        %626 = vmatpush.msra.mxu0 0.0
        %627 = vmatpush.msra.mxu0 %v558
        %628 = vmatmul.f32.gmra.mxu0 %v562
        %v629 = vpop.f32.mrf.mxu0
        %v630 = vadd.f32 0.0, %v629
        %631 = vmatmul.f32.gmra.mxu0 %v564
        %v632 = vpop.f32.mrf.mxu0
        %v633 = vadd.f32 0.0, %v632
        %634 = vdwg.mxu0
        %v635 = vadd.f32 %v537, %v584
        %v636 = vadd.f32 %v538, %v607
        %v637 = vadd.f32 %v539, %v630
        %v638 = vadd.f32 %v540, %v587
        %v639 = vadd.f32 %v541, %v610
        %v640 = vadd.f32 %v542, %v633
        %641 = vrot.lane.b32.xlu0 %v267, 96
        %v642 = vpop.permute.xlu0 %641
        %643 = vrot.lane.b32.xlu0 %v268, 96
        %v644 = vpop.permute.xlu0 %643
        %645 = vrot.lane.b32.xlu0 %v269, 96
        %v646 = vpop.permute.xlu0 %645
        %647 = vrot.lane.b32.xlu0 %v270, 96
        %v648 = vpop.permute.xlu0 %647
        %649 = vrot.lane.b32.xlu0 %v271, 96
        %v650 = vpop.permute.xlu0 %649
        %651 = vrot.lane.b32.xlu0 %v272, 96
        %v652 = vpop.permute.xlu0 %651
        %vm653 = vcmask 785408
        %v654 = vsel %vm653, %v646, %v648
        %v655 = vsel %vm653, %v648, %v650
        %v656 = vsel %vm653, %v650, %v652
        %v660 = vsel %vm298, %v642, 0
        %v662 = vsel %vm298, %v644, 0
        %664 = vmatpush.msra.mxu0 0.0
        %665 = vmatpush.msra.mxu0 0.0
        %666 = vmatpush.msra.mxu0 0.0
        %667 = vmatpush.msra.mxu0 0.0
        %668 = vmatpush.msra.mxu0 0.0
        %669 = vmatpush.msra.mxu0 0.0
        %670 = vmatpush.msra.mxu0 0.0
        %671 = vmatpush.msra.mxu0 0.0
        %672 = vmatpush.msra.mxu0 0.0
        %673 = vmatpush.msra.mxu0 0.0
        %674 = vmatpush.msra.mxu0 0.0
        %675 = vmatpush.msra.mxu0 0.0
        %676 = vmatpush.msra.mxu0 0.0
        %677 = vmatpush.msra.mxu0 0.0
        %678 = vmatpush.msra.mxu0 0.0
        %679 = vmatpush.msra.mxu0 %v654
        %680 = vmatmul.f32.gmra.mxu0 %v660
        %v681 = vpop.f32.mrf.mxu0
        %v682 = vadd.f32 0.0, %v681
        %683 = vmatmul.f32.gmra.mxu0 %v662
        %v684 = vpop.f32.mrf.mxu0
        %v685 = vadd.f32 0.0, %v684
        %686 = vdwg.mxu0
        %687 = vmatpush.msra.mxu0 0.0
        %688 = vmatpush.msra.mxu0 0.0
        %689 = vmatpush.msra.mxu0 0.0
        %690 = vmatpush.msra.mxu0 0.0
        %691 = vmatpush.msra.mxu0 0.0
        %692 = vmatpush.msra.mxu0 0.0
        %693 = vmatpush.msra.mxu0 0.0
        %694 = vmatpush.msra.mxu0 0.0
        %695 = vmatpush.msra.mxu0 0.0
        %696 = vmatpush.msra.mxu0 0.0
        %697 = vmatpush.msra.mxu0 0.0
        %698 = vmatpush.msra.mxu0 0.0
        %699 = vmatpush.msra.mxu0 0.0
        %700 = vmatpush.msra.mxu0 0.0
        %701 = vmatpush.msra.mxu0 0.0
        %702 = vmatpush.msra.mxu0 %v655
        %703 = vmatmul.f32.gmra.mxu0 %v660
        %v704 = vpop.f32.mrf.mxu0
        %v705 = vadd.f32 0.0, %v704
        %706 = vmatmul.f32.gmra.mxu0 %v662
        %v707 = vpop.f32.mrf.mxu0
        %v708 = vadd.f32 0.0, %v707
        %709 = vdwg.mxu0
        %710 = vmatpush.msra.mxu0 0.0
        %711 = vmatpush.msra.mxu0 0.0
        %712 = vmatpush.msra.mxu0 0.0
        %713 = vmatpush.msra.mxu0 0.0
        %714 = vmatpush.msra.mxu0 0.0
        %715 = vmatpush.msra.mxu0 0.0
        %716 = vmatpush.msra.mxu0 0.0
        %717 = vmatpush.msra.mxu0 0.0
        %718 = vmatpush.msra.mxu0 0.0
        %719 = vmatpush.msra.mxu0 0.0
        %720 = vmatpush.msra.mxu0 0.0
        %721 = vmatpush.msra.mxu0 0.0
        %722 = vmatpush.msra.mxu0 0.0
        %723 = vmatpush.msra.mxu0 0.0
        %724 = vmatpush.msra.mxu0 0.0
        %725 = vmatpush.msra.mxu0 %v656
        %726 = vmatmul.f32.gmra.mxu0 %v660
        %v727 = vpop.f32.mrf.mxu0
        %v728 = vadd.f32 0.0, %v727
        %729 = vmatmul.f32.gmra.mxu0 %v662
        %v730 = vpop.f32.mrf.mxu0
        %v731 = vadd.f32 0.0, %v730
        %732 = vdwg.mxu0
        %v733 = vadd.f32 %v635, %v682
        %v734 = vadd.f32 %v636, %v705
        %v735 = vadd.f32 %v637, %v728
        %v736 = vadd.f32 %v638, %v685
        %v737 = vadd.f32 %v639, %v708
        %v738 = vadd.f32 %v640, %v731
        %739 = vrot.lane.b32.xlu0 %v267, 88
        %v740 = vpop.permute.xlu0 %739
        %741 = vrot.lane.b32.xlu0 %v268, 88
        %v742 = vpop.permute.xlu0 %741
        %743 = vrot.lane.b32.xlu0 %v269, 88
        %v744 = vpop.permute.xlu0 %743
        %745 = vrot.lane.b32.xlu0 %v270, 88
        %v746 = vpop.permute.xlu0 %745
        %747 = vrot.lane.b32.xlu0 %v271, 88
        %v748 = vpop.permute.xlu0 %747
        %749 = vrot.lane.b32.xlu0 %v272, 88
        %v750 = vpop.permute.xlu0 %749
        %vm751 = vcmask 719872
        %v752 = vsel %vm751, %v744, %v746
        %v753 = vsel %vm751, %v746, %v748
        %v754 = vsel %vm751, %v748, %v750
        %v758 = vsel %vm298, %v740, 0
        %v760 = vsel %vm298, %v742, 0
        %762 = vmatpush.msra.mxu0 0.0
        %763 = vmatpush.msra.mxu0 0.0
        %764 = vmatpush.msra.mxu0 0.0
        %765 = vmatpush.msra.mxu0 0.0
        %766 = vmatpush.msra.mxu0 0.0
        %767 = vmatpush.msra.mxu0 0.0
        %768 = vmatpush.msra.mxu0 0.0
        %769 = vmatpush.msra.mxu0 0.0
        %770 = vmatpush.msra.mxu0 0.0
        %771 = vmatpush.msra.mxu0 0.0
        %772 = vmatpush.msra.mxu0 0.0
        %773 = vmatpush.msra.mxu0 0.0
        %774 = vmatpush.msra.mxu0 0.0
        %775 = vmatpush.msra.mxu0 0.0
        %776 = vmatpush.msra.mxu0 0.0
        %777 = vmatpush.msra.mxu0 %v752
        %778 = vmatmul.f32.gmra.mxu0 %v758
        %v779 = vpop.f32.mrf.mxu0
        %v780 = vadd.f32 0.0, %v779
        %781 = vmatmul.f32.gmra.mxu0 %v760
        %v782 = vpop.f32.mrf.mxu0
        %v783 = vadd.f32 0.0, %v782
        %784 = vdwg.mxu0
        %785 = vmatpush.msra.mxu0 0.0
        %786 = vmatpush.msra.mxu0 0.0
        %787 = vmatpush.msra.mxu0 0.0
        %788 = vmatpush.msra.mxu0 0.0
        %789 = vmatpush.msra.mxu0 0.0
        %790 = vmatpush.msra.mxu0 0.0
        %791 = vmatpush.msra.mxu0 0.0
        %792 = vmatpush.msra.mxu0 0.0
        %793 = vmatpush.msra.mxu0 0.0
        %794 = vmatpush.msra.mxu0 0.0
        %795 = vmatpush.msra.mxu0 0.0
        %796 = vmatpush.msra.mxu0 0.0
        %797 = vmatpush.msra.mxu0 0.0
        %798 = vmatpush.msra.mxu0 0.0
        %799 = vmatpush.msra.mxu0 0.0
        %800 = vmatpush.msra.mxu0 %v753
        %801 = vmatmul.f32.gmra.mxu0 %v758
        %v802 = vpop.f32.mrf.mxu0
        %v803 = vadd.f32 0.0, %v802
        %804 = vmatmul.f32.gmra.mxu0 %v760
        %v805 = vpop.f32.mrf.mxu0
        %v806 = vadd.f32 0.0, %v805
        %807 = vdwg.mxu0
        %808 = vmatpush.msra.mxu0 0.0
        %809 = vmatpush.msra.mxu0 0.0
        %810 = vmatpush.msra.mxu0 0.0
        %811 = vmatpush.msra.mxu0 0.0
        %812 = vmatpush.msra.mxu0 0.0
        %813 = vmatpush.msra.mxu0 0.0
        %814 = vmatpush.msra.mxu0 0.0
        %815 = vmatpush.msra.mxu0 0.0
        %816 = vmatpush.msra.mxu0 0.0
        %817 = vmatpush.msra.mxu0 0.0
        %818 = vmatpush.msra.mxu0 0.0
        %819 = vmatpush.msra.mxu0 0.0
        %820 = vmatpush.msra.mxu0 0.0
        %821 = vmatpush.msra.mxu0 0.0
        %822 = vmatpush.msra.mxu0 0.0
        %823 = vmatpush.msra.mxu0 %v754
        %824 = vmatmul.f32.gmra.mxu0 %v758
        %v825 = vpop.f32.mrf.mxu0
        %v826 = vadd.f32 0.0, %v825
        %827 = vmatmul.f32.gmra.mxu0 %v760
        %v828 = vpop.f32.mrf.mxu0
        %v829 = vadd.f32 0.0, %v828
        %830 = vdwg.mxu0
        %v831 = vadd.f32 %v733, %v780
        %v832 = vadd.f32 %v734, %v803
        %v833 = vadd.f32 %v735, %v826
        %v834 = vadd.f32 %v736, %v783
        %v835 = vadd.f32 %v737, %v806
        %v836 = vadd.f32 %v738, %v829
        %837 = vrot.lane.b32.xlu0 %v267, 80
        %v838 = vpop.permute.xlu0 %837
        %839 = vrot.lane.b32.xlu0 %v268, 80
        %v840 = vpop.permute.xlu0 %839
        %841 = vrot.lane.b32.xlu0 %v269, 80
        %v842 = vpop.permute.xlu0 %841
        %843 = vrot.lane.b32.xlu0 %v270, 80
        %v844 = vpop.permute.xlu0 %843
        %845 = vrot.lane.b32.xlu0 %v271, 80
        %v846 = vpop.permute.xlu0 %845
        %847 = vrot.lane.b32.xlu0 %v272, 80
        %v848 = vpop.permute.xlu0 %847
        %vm849 = vcmask 654336
        %v850 = vsel %vm849, %v842, %v844
        %v851 = vsel %vm849, %v844, %v846
        %v852 = vsel %vm849, %v846, %v848
        %v856 = vsel %vm298, %v838, 0
        %v858 = vsel %vm298, %v840, 0
        %860 = vmatpush.msra.mxu0 0.0
        %861 = vmatpush.msra.mxu0 0.0
        %862 = vmatpush.msra.mxu0 0.0
        %863 = vmatpush.msra.mxu0 0.0
        %864 = vmatpush.msra.mxu0 0.0
        %865 = vmatpush.msra.mxu0 0.0
        %866 = vmatpush.msra.mxu0 0.0
        %867 = vmatpush.msra.mxu0 0.0
        %868 = vmatpush.msra.mxu0 0.0
        %869 = vmatpush.msra.mxu0 0.0
        %870 = vmatpush.msra.mxu0 0.0
        %871 = vmatpush.msra.mxu0 0.0
        %872 = vmatpush.msra.mxu0 0.0
        %873 = vmatpush.msra.mxu0 0.0
        %874 = vmatpush.msra.mxu0 0.0
        %875 = vmatpush.msra.mxu0 %v850
        %876 = vmatmul.f32.gmra.mxu0 %v856
        %v877 = vpop.f32.mrf.mxu0
        %v878 = vadd.f32 0.0, %v877
        %879 = vmatmul.f32.gmra.mxu0 %v858
        %v880 = vpop.f32.mrf.mxu0
        %v881 = vadd.f32 0.0, %v880
        %882 = vdwg.mxu0
        %883 = vmatpush.msra.mxu0 0.0
        %884 = vmatpush.msra.mxu0 0.0
        %885 = vmatpush.msra.mxu0 0.0
        %886 = vmatpush.msra.mxu0 0.0
        %887 = vmatpush.msra.mxu0 0.0
        %888 = vmatpush.msra.mxu0 0.0
        %889 = vmatpush.msra.mxu0 0.0
        %890 = vmatpush.msra.mxu0 0.0
        %891 = vmatpush.msra.mxu0 0.0
        %892 = vmatpush.msra.mxu0 0.0
        %893 = vmatpush.msra.mxu0 0.0
        %894 = vmatpush.msra.mxu0 0.0
        %895 = vmatpush.msra.mxu0 0.0
        %896 = vmatpush.msra.mxu0 0.0
        %897 = vmatpush.msra.mxu0 0.0
        %898 = vmatpush.msra.mxu0 %v851
        %899 = vmatmul.f32.gmra.mxu0 %v856
        %v900 = vpop.f32.mrf.mxu0
        %v901 = vadd.f32 0.0, %v900
        %902 = vmatmul.f32.gmra.mxu0 %v858
        %v903 = vpop.f32.mrf.mxu0
        %v904 = vadd.f32 0.0, %v903
        %905 = vdwg.mxu0
        %906 = vmatpush.msra.mxu0 0.0
        %907 = vmatpush.msra.mxu0 0.0
        %908 = vmatpush.msra.mxu0 0.0
        %909 = vmatpush.msra.mxu0 0.0
        %910 = vmatpush.msra.mxu0 0.0
        %911 = vmatpush.msra.mxu0 0.0
        %912 = vmatpush.msra.mxu0 0.0
        %913 = vmatpush.msra.mxu0 0.0
        %914 = vmatpush.msra.mxu0 0.0
        %915 = vmatpush.msra.mxu0 0.0
        %916 = vmatpush.msra.mxu0 0.0
        %917 = vmatpush.msra.mxu0 0.0
        %918 = vmatpush.msra.mxu0 0.0
        %919 = vmatpush.msra.mxu0 0.0
        %920 = vmatpush.msra.mxu0 0.0
        %921 = vmatpush.msra.mxu0 %v852
        %922 = vmatmul.f32.gmra.mxu0 %v856
        %v923 = vpop.f32.mrf.mxu0
        %v924 = vadd.f32 0.0, %v923
        %925 = vmatmul.f32.gmra.mxu0 %v858
        %v926 = vpop.f32.mrf.mxu0
        %v927 = vadd.f32 0.0, %v926
        %928 = vdwg.mxu0
        %v929 = vadd.f32 %v831, %v878
        %v930 = vadd.f32 %v832, %v901
        %v931 = vadd.f32 %v833, %v924
        %v932 = vadd.f32 %v834, %v881
        %v933 = vadd.f32 %v835, %v904
        %v934 = vadd.f32 %v836, %v927
        %935 = vrot.lane.b32.xlu0 %v267, 72
        %v936 = vpop.permute.xlu0 %935
        %937 = vrot.lane.b32.xlu0 %v268, 72
        %v938 = vpop.permute.xlu0 %937
        %939 = vrot.lane.b32.xlu0 %v269, 72
        %v940 = vpop.permute.xlu0 %939
        %941 = vrot.lane.b32.xlu0 %v270, 72
        %v942 = vpop.permute.xlu0 %941
        %943 = vrot.lane.b32.xlu0 %v271, 72
        %v944 = vpop.permute.xlu0 %943
        %945 = vrot.lane.b32.xlu0 %v272, 72
        %v946 = vpop.permute.xlu0 %945
        %vm947 = vcmask 588800
        %v948 = vsel %vm947, %v940, %v942
        %v949 = vsel %vm947, %v942, %v944
        %v950 = vsel %vm947, %v944, %v946
        %v954 = vsel %vm298, %v936, 0
        %v956 = vsel %vm298, %v938, 0
        %958 = vmatpush.msra.mxu0 0.0
        %959 = vmatpush.msra.mxu0 0.0
        %960 = vmatpush.msra.mxu0 0.0
        %961 = vmatpush.msra.mxu0 0.0
        %962 = vmatpush.msra.mxu0 0.0
        %963 = vmatpush.msra.mxu0 0.0
        %964 = vmatpush.msra.mxu0 0.0
        %965 = vmatpush.msra.mxu0 0.0
        %966 = vmatpush.msra.mxu0 0.0
        %967 = vmatpush.msra.mxu0 0.0
        %968 = vmatpush.msra.mxu0 0.0
        %969 = vmatpush.msra.mxu0 0.0
        %970 = vmatpush.msra.mxu0 0.0
        %971 = vmatpush.msra.mxu0 0.0
        %972 = vmatpush.msra.mxu0 0.0
        %973 = vmatpush.msra.mxu0 %v948
        %974 = vmatmul.f32.gmra.mxu0 %v954
        %v975 = vpop.f32.mrf.mxu0
        %v976 = vadd.f32 0.0, %v975
        %977 = vmatmul.f32.gmra.mxu0 %v956
        %v978 = vpop.f32.mrf.mxu0
        %v979 = vadd.f32 0.0, %v978
        %980 = vdwg.mxu0
        %981 = vmatpush.msra.mxu0 0.0
        %982 = vmatpush.msra.mxu0 0.0
        %983 = vmatpush.msra.mxu0 0.0
        %984 = vmatpush.msra.mxu0 0.0
        %985 = vmatpush.msra.mxu0 0.0
        %986 = vmatpush.msra.mxu0 0.0
        %987 = vmatpush.msra.mxu0 0.0
        %988 = vmatpush.msra.mxu0 0.0
        %989 = vmatpush.msra.mxu0 0.0
        %990 = vmatpush.msra.mxu0 0.0
        %991 = vmatpush.msra.mxu0 0.0
        %992 = vmatpush.msra.mxu0 0.0
        %993 = vmatpush.msra.mxu0 0.0
        %994 = vmatpush.msra.mxu0 0.0
        %995 = vmatpush.msra.mxu0 0.0
        %996 = vmatpush.msra.mxu0 %v949
        %997 = vmatmul.f32.gmra.mxu0 %v954
        %v998 = vpop.f32.mrf.mxu0
        %v999 = vadd.f32 0.0, %v998
        %1000 = vmatmul.f32.gmra.mxu0 %v956
        %v1001 = vpop.f32.mrf.mxu0
        %v1002 = vadd.f32 0.0, %v1001
        %1003 = vdwg.mxu0
        %1004 = vmatpush.msra.mxu0 0.0
        %1005 = vmatpush.msra.mxu0 0.0
        %1006 = vmatpush.msra.mxu0 0.0
        %1007 = vmatpush.msra.mxu0 0.0
        %1008 = vmatpush.msra.mxu0 0.0
        %1009 = vmatpush.msra.mxu0 0.0
        %1010 = vmatpush.msra.mxu0 0.0
        %1011 = vmatpush.msra.mxu0 0.0
        %1012 = vmatpush.msra.mxu0 0.0
        %1013 = vmatpush.msra.mxu0 0.0
        %1014 = vmatpush.msra.mxu0 0.0
        %1015 = vmatpush.msra.mxu0 0.0
        %1016 = vmatpush.msra.mxu0 0.0
        %1017 = vmatpush.msra.mxu0 0.0
        %1018 = vmatpush.msra.mxu0 0.0
        %1019 = vmatpush.msra.mxu0 %v950
        %1020 = vmatmul.f32.gmra.mxu0 %v954
        %v1021 = vpop.f32.mrf.mxu0
        %v1022 = vadd.f32 0.0, %v1021
        %1023 = vmatmul.f32.gmra.mxu0 %v956
        %v1024 = vpop.f32.mrf.mxu0
        %v1025 = vadd.f32 0.0, %v1024
        %1026 = vdwg.mxu0
        %v1027 = vadd.f32 %v929, %v976
        %v1028 = vadd.f32 %v930, %v999
        %v1029 = vadd.f32 %v931, %v1022
        %v1030 = vadd.f32 %v932, %v979
        %v1031 = vadd.f32 %v933, %v1002
        %v1032 = vadd.f32 %v934, %v1025
        %1033 = vrot.lane.b32.xlu0 %v267, 64
        %v1034 = vpop.permute.xlu0 %1033
        %1035 = vrot.lane.b32.xlu0 %v268, 64
        %v1036 = vpop.permute.xlu0 %1035
        %1037 = vrot.lane.b32.xlu0 %v269, 64
        %v1038 = vpop.permute.xlu0 %1037
        %1039 = vrot.lane.b32.xlu0 %v270, 64
        %v1040 = vpop.permute.xlu0 %1039
        %1041 = vrot.lane.b32.xlu0 %v271, 64
        %v1042 = vpop.permute.xlu0 %1041
        %1043 = vrot.lane.b32.xlu0 %v272, 64
        %v1044 = vpop.permute.xlu0 %1043
        %vm1045 = vcmask 523264
        %v1046 = vsel %vm1045, %v1038, %v1040
        %v1047 = vsel %vm1045, %v1040, %v1042
        %v1048 = vsel %vm1045, %v1042, %v1044
        %v1052 = vsel %vm298, %v1034, 0
        %v1054 = vsel %vm298, %v1036, 0
        %1056 = vmatpush.msra.mxu0 0.0
        %1057 = vmatpush.msra.mxu0 0.0
        %1058 = vmatpush.msra.mxu0 0.0
        %1059 = vmatpush.msra.mxu0 0.0
        %1060 = vmatpush.msra.mxu0 0.0
        %1061 = vmatpush.msra.mxu0 0.0
        %1062 = vmatpush.msra.mxu0 0.0
        %1063 = vmatpush.msra.mxu0 0.0
        %1064 = vmatpush.msra.mxu0 0.0
        %1065 = vmatpush.msra.mxu0 0.0
        %1066 = vmatpush.msra.mxu0 0.0
        %1067 = vmatpush.msra.mxu0 0.0
        %1068 = vmatpush.msra.mxu0 0.0
        %1069 = vmatpush.msra.mxu0 0.0
        %1070 = vmatpush.msra.mxu0 0.0
        %1071 = vmatpush.msra.mxu0 %v1046
        %1072 = vmatmul.f32.gmra.mxu0 %v1052
        %v1073 = vpop.f32.mrf.mxu0
        %v1074 = vadd.f32 0.0, %v1073
        %1075 = vmatmul.f32.gmra.mxu0 %v1054
        %v1076 = vpop.f32.mrf.mxu0
        %v1077 = vadd.f32 0.0, %v1076
        %1078 = vdwg.mxu0
        %1079 = vmatpush.msra.mxu0 0.0
        %1080 = vmatpush.msra.mxu0 0.0
        %1081 = vmatpush.msra.mxu0 0.0
        %1082 = vmatpush.msra.mxu0 0.0
        %1083 = vmatpush.msra.mxu0 0.0
        %1084 = vmatpush.msra.mxu0 0.0
        %1085 = vmatpush.msra.mxu0 0.0
        %1086 = vmatpush.msra.mxu0 0.0
        %1087 = vmatpush.msra.mxu0 0.0
        %1088 = vmatpush.msra.mxu0 0.0
        %1089 = vmatpush.msra.mxu0 0.0
        %1090 = vmatpush.msra.mxu0 0.0
        %1091 = vmatpush.msra.mxu0 0.0
        %1092 = vmatpush.msra.mxu0 0.0
        %1093 = vmatpush.msra.mxu0 0.0
        %1094 = vmatpush.msra.mxu0 %v1047
        %1095 = vmatmul.f32.gmra.mxu0 %v1052
        %v1096 = vpop.f32.mrf.mxu0
        %v1097 = vadd.f32 0.0, %v1096
        %1098 = vmatmul.f32.gmra.mxu0 %v1054
        %v1099 = vpop.f32.mrf.mxu0
        %v1100 = vadd.f32 0.0, %v1099
        %1101 = vdwg.mxu0
        %1102 = vmatpush.msra.mxu0 0.0
        %1103 = vmatpush.msra.mxu0 0.0
        %1104 = vmatpush.msra.mxu0 0.0
        %1105 = vmatpush.msra.mxu0 0.0
        %1106 = vmatpush.msra.mxu0 0.0
        %1107 = vmatpush.msra.mxu0 0.0
        %1108 = vmatpush.msra.mxu0 0.0
        %1109 = vmatpush.msra.mxu0 0.0
        %1110 = vmatpush.msra.mxu0 0.0
        %1111 = vmatpush.msra.mxu0 0.0
        %1112 = vmatpush.msra.mxu0 0.0
        %1113 = vmatpush.msra.mxu0 0.0
        %1114 = vmatpush.msra.mxu0 0.0
        %1115 = vmatpush.msra.mxu0 0.0
        %1116 = vmatpush.msra.mxu0 0.0
        %1117 = vmatpush.msra.mxu0 %v1048
        %1118 = vmatmul.f32.gmra.mxu0 %v1052
        %v1119 = vpop.f32.mrf.mxu0
        %v1120 = vadd.f32 0.0, %v1119
        %1121 = vmatmul.f32.gmra.mxu0 %v1054
        %v1122 = vpop.f32.mrf.mxu0
        %v1123 = vadd.f32 0.0, %v1122
        %1124 = vdwg.mxu0
        %v1125 = vadd.f32 %v1027, %v1074
        %v1126 = vadd.f32 %v1028, %v1097
        %v1127 = vadd.f32 %v1029, %v1120
        %v1128 = vadd.f32 %v1030, %v1077
        %v1129 = vadd.f32 %v1031, %v1100
        %v1130 = vadd.f32 %v1032, %v1123
        %1131 = vrot.lane.b32.xlu0 %v267, 56
        %v1132 = vpop.permute.xlu0 %1131
        %1133 = vrot.lane.b32.xlu0 %v268, 56
        %v1134 = vpop.permute.xlu0 %1133
        %1135 = vrot.lane.b32.xlu0 %v269, 56
        %v1136 = vpop.permute.xlu0 %1135
        %1137 = vrot.lane.b32.xlu0 %v270, 56
        %v1138 = vpop.permute.xlu0 %1137
        %1139 = vrot.lane.b32.xlu0 %v271, 56
        %v1140 = vpop.permute.xlu0 %1139
        %1141 = vrot.lane.b32.xlu0 %v272, 56
        %v1142 = vpop.permute.xlu0 %1141
        %vm1143 = vcmask 457728
        %v1144 = vsel %vm1143, %v1136, %v1138
        %v1145 = vsel %vm1143, %v1138, %v1140
        %v1146 = vsel %vm1143, %v1140, %v1142
        %v1150 = vsel %vm298, %v1132, 0
        %v1152 = vsel %vm298, %v1134, 0
        %1154 = vmatpush.msra.mxu0 0.0
        %1155 = vmatpush.msra.mxu0 0.0
        %1156 = vmatpush.msra.mxu0 0.0
        %1157 = vmatpush.msra.mxu0 0.0
        %1158 = vmatpush.msra.mxu0 0.0
        %1159 = vmatpush.msra.mxu0 0.0
        %1160 = vmatpush.msra.mxu0 0.0
        %1161 = vmatpush.msra.mxu0 0.0
        %1162 = vmatpush.msra.mxu0 0.0
        %1163 = vmatpush.msra.mxu0 0.0
        %1164 = vmatpush.msra.mxu0 0.0
        %1165 = vmatpush.msra.mxu0 0.0
        %1166 = vmatpush.msra.mxu0 0.0
        %1167 = vmatpush.msra.mxu0 0.0
        %1168 = vmatpush.msra.mxu0 0.0
        %1169 = vmatpush.msra.mxu0 %v1144
        %1170 = vmatmul.f32.gmra.mxu0 %v1150
        %v1171 = vpop.f32.mrf.mxu0
        %v1172 = vadd.f32 0.0, %v1171
        %1173 = vmatmul.f32.gmra.mxu0 %v1152
        %v1174 = vpop.f32.mrf.mxu0
        %v1175 = vadd.f32 0.0, %v1174
        %1176 = vdwg.mxu0
        %1177 = vmatpush.msra.mxu0 0.0
        %1178 = vmatpush.msra.mxu0 0.0
        %1179 = vmatpush.msra.mxu0 0.0
        %1180 = vmatpush.msra.mxu0 0.0
        %1181 = vmatpush.msra.mxu0 0.0
        %1182 = vmatpush.msra.mxu0 0.0
        %1183 = vmatpush.msra.mxu0 0.0
        %1184 = vmatpush.msra.mxu0 0.0
        %1185 = vmatpush.msra.mxu0 0.0
        %1186 = vmatpush.msra.mxu0 0.0
        %1187 = vmatpush.msra.mxu0 0.0
        %1188 = vmatpush.msra.mxu0 0.0
        %1189 = vmatpush.msra.mxu0 0.0
        %1190 = vmatpush.msra.mxu0 0.0
        %1191 = vmatpush.msra.mxu0 0.0
        %1192 = vmatpush.msra.mxu0 %v1145
        %1193 = vmatmul.f32.gmra.mxu0 %v1150
        %v1194 = vpop.f32.mrf.mxu0
        %v1195 = vadd.f32 0.0, %v1194
        %1196 = vmatmul.f32.gmra.mxu0 %v1152
        %v1197 = vpop.f32.mrf.mxu0
        %v1198 = vadd.f32 0.0, %v1197
        %1199 = vdwg.mxu0
        %1200 = vmatpush.msra.mxu0 0.0
        %1201 = vmatpush.msra.mxu0 0.0
        %1202 = vmatpush.msra.mxu0 0.0
        %1203 = vmatpush.msra.mxu0 0.0
        %1204 = vmatpush.msra.mxu0 0.0
        %1205 = vmatpush.msra.mxu0 0.0
        %1206 = vmatpush.msra.mxu0 0.0
        %1207 = vmatpush.msra.mxu0 0.0
        %1208 = vmatpush.msra.mxu0 0.0
        %1209 = vmatpush.msra.mxu0 0.0
        %1210 = vmatpush.msra.mxu0 0.0
        %1211 = vmatpush.msra.mxu0 0.0
        %1212 = vmatpush.msra.mxu0 0.0
        %1213 = vmatpush.msra.mxu0 0.0
        %1214 = vmatpush.msra.mxu0 0.0
        %1215 = vmatpush.msra.mxu0 %v1146
        %1216 = vmatmul.f32.gmra.mxu0 %v1150
        %v1217 = vpop.f32.mrf.mxu0
        %v1218 = vadd.f32 0.0, %v1217
        %1219 = vmatmul.f32.gmra.mxu0 %v1152
        %v1220 = vpop.f32.mrf.mxu0
        %v1221 = vadd.f32 0.0, %v1220
        %1222 = vdwg.mxu0
        %v1223 = vadd.f32 %v1125, %v1172
        %v1224 = vadd.f32 %v1126, %v1195
        %v1225 = vadd.f32 %v1127, %v1218
        %v1226 = vadd.f32 %v1128, %v1175
        %v1227 = vadd.f32 %v1129, %v1198
        %v1228 = vadd.f32 %v1130, %v1221
        %1229 = vrot.lane.b32.xlu0 %v267, 48
        %v1230 = vpop.permute.xlu0 %1229
        %1231 = vrot.lane.b32.xlu0 %v268, 48
        %v1232 = vpop.permute.xlu0 %1231
        %1233 = vrot.lane.b32.xlu0 %v269, 48
        %v1234 = vpop.permute.xlu0 %1233
        %1235 = vrot.lane.b32.xlu0 %v270, 48
        %v1236 = vpop.permute.xlu0 %1235
        %1237 = vrot.lane.b32.xlu0 %v271, 48
        %v1238 = vpop.permute.xlu0 %1237
        %1239 = vrot.lane.b32.xlu0 %v272, 48
        %v1240 = vpop.permute.xlu0 %1239
        %vm1241 = vcmask 392192
        %v1242 = vsel %vm1241, %v1234, %v1236
        %v1243 = vsel %vm1241, %v1236, %v1238
        %v1244 = vsel %vm1241, %v1238, %v1240
        %v1248 = vsel %vm298, %v1230, 0
        %v1250 = vsel %vm298, %v1232, 0
        %1252 = vmatpush.msra.mxu0 0.0
        %1253 = vmatpush.msra.mxu0 0.0
        %1254 = vmatpush.msra.mxu0 0.0
        %1255 = vmatpush.msra.mxu0 0.0
        %1256 = vmatpush.msra.mxu0 0.0
        %1257 = vmatpush.msra.mxu0 0.0
        %1258 = vmatpush.msra.mxu0 0.0
        %1259 = vmatpush.msra.mxu0 0.0
        %1260 = vmatpush.msra.mxu0 0.0
        %1261 = vmatpush.msra.mxu0 0.0
        %1262 = vmatpush.msra.mxu0 0.0
        %1263 = vmatpush.msra.mxu0 0.0
        %1264 = vmatpush.msra.mxu0 0.0
        %1265 = vmatpush.msra.mxu0 0.0
        %1266 = vmatpush.msra.mxu0 0.0
        %1267 = vmatpush.msra.mxu0 %v1242
        %1268 = vmatmul.f32.gmra.mxu0 %v1248
        %v1269 = vpop.f32.mrf.mxu0
        %v1270 = vadd.f32 0.0, %v1269
        %1271 = vmatmul.f32.gmra.mxu0 %v1250
        %v1272 = vpop.f32.mrf.mxu0
        %v1273 = vadd.f32 0.0, %v1272
        %1274 = vdwg.mxu0
        %1275 = vmatpush.msra.mxu0 0.0
        %1276 = vmatpush.msra.mxu0 0.0
        %1277 = vmatpush.msra.mxu0 0.0
        %1278 = vmatpush.msra.mxu0 0.0
        %1279 = vmatpush.msra.mxu0 0.0
        %1280 = vmatpush.msra.mxu0 0.0
        %1281 = vmatpush.msra.mxu0 0.0
        %1282 = vmatpush.msra.mxu0 0.0
        %1283 = vmatpush.msra.mxu0 0.0
        %1284 = vmatpush.msra.mxu0 0.0
        %1285 = vmatpush.msra.mxu0 0.0
        %1286 = vmatpush.msra.mxu0 0.0
        %1287 = vmatpush.msra.mxu0 0.0
        %1288 = vmatpush.msra.mxu0 0.0
        %1289 = vmatpush.msra.mxu0 0.0
        %1290 = vmatpush.msra.mxu0 %v1243
        %1291 = vmatmul.f32.gmra.mxu0 %v1248
        %v1292 = vpop.f32.mrf.mxu0
        %v1293 = vadd.f32 0.0, %v1292
        %1294 = vmatmul.f32.gmra.mxu0 %v1250
        %v1295 = vpop.f32.mrf.mxu0
        %v1296 = vadd.f32 0.0, %v1295
        %1297 = vdwg.mxu0
        %1298 = vmatpush.msra.mxu0 0.0
        %1299 = vmatpush.msra.mxu0 0.0
        %1300 = vmatpush.msra.mxu0 0.0
        %1301 = vmatpush.msra.mxu0 0.0
        %1302 = vmatpush.msra.mxu0 0.0
        %1303 = vmatpush.msra.mxu0 0.0
        %1304 = vmatpush.msra.mxu0 0.0
        %1305 = vmatpush.msra.mxu0 0.0
        %1306 = vmatpush.msra.mxu0 0.0
        %1307 = vmatpush.msra.mxu0 0.0
        %1308 = vmatpush.msra.mxu0 0.0
        %1309 = vmatpush.msra.mxu0 0.0
        %1310 = vmatpush.msra.mxu0 0.0
        %1311 = vmatpush.msra.mxu0 0.0
        %1312 = vmatpush.msra.mxu0 0.0
        %1313 = vmatpush.msra.mxu0 %v1244
        %1314 = vmatmul.f32.gmra.mxu0 %v1248
        %v1315 = vpop.f32.mrf.mxu0
        %v1316 = vadd.f32 0.0, %v1315
        %1317 = vmatmul.f32.gmra.mxu0 %v1250
        %v1318 = vpop.f32.mrf.mxu0
        %v1319 = vadd.f32 0.0, %v1318
        %1320 = vdwg.mxu0
        %v1321 = vadd.f32 %v1223, %v1270
        %v1322 = vadd.f32 %v1224, %v1293
        %v1323 = vadd.f32 %v1225, %v1316
        %v1324 = vadd.f32 %v1226, %v1273
        %v1325 = vadd.f32 %v1227, %v1296
        %v1326 = vadd.f32 %v1228, %v1319
        %1327 = vrot.lane.b32.xlu0 %v267, 40
        %v1328 = vpop.permute.xlu0 %1327
        %1329 = vrot.lane.b32.xlu0 %v268, 40
        %v1330 = vpop.permute.xlu0 %1329
        %1331 = vrot.lane.b32.xlu0 %v269, 40
        %v1332 = vpop.permute.xlu0 %1331
        %1333 = vrot.lane.b32.xlu0 %v270, 40
        %v1334 = vpop.permute.xlu0 %1333
        %1335 = vrot.lane.b32.xlu0 %v271, 40
        %v1336 = vpop.permute.xlu0 %1335
        %1337 = vrot.lane.b32.xlu0 %v272, 40
        %v1338 = vpop.permute.xlu0 %1337
        %vm1339 = vcmask 326656
        %v1340 = vsel %vm1339, %v1332, %v1334
        %v1341 = vsel %vm1339, %v1334, %v1336
        %v1342 = vsel %vm1339, %v1336, %v1338
        %v1346 = vsel %vm298, %v1328, 0
        %v1348 = vsel %vm298, %v1330, 0
        %1350 = vmatpush.msra.mxu0 0.0
        %1351 = vmatpush.msra.mxu0 0.0
        %1352 = vmatpush.msra.mxu0 0.0
        %1353 = vmatpush.msra.mxu0 0.0
        %1354 = vmatpush.msra.mxu0 0.0
        %1355 = vmatpush.msra.mxu0 0.0
        %1356 = vmatpush.msra.mxu0 0.0
        %1357 = vmatpush.msra.mxu0 0.0
        %1358 = vmatpush.msra.mxu0 0.0
        %1359 = vmatpush.msra.mxu0 0.0
        %1360 = vmatpush.msra.mxu0 0.0
        %1361 = vmatpush.msra.mxu0 0.0
        %1362 = vmatpush.msra.mxu0 0.0
        %1363 = vmatpush.msra.mxu0 0.0
        %1364 = vmatpush.msra.mxu0 0.0
        %1365 = vmatpush.msra.mxu0 %v1340
        %1366 = vmatmul.f32.gmra.mxu0 %v1346
        %v1367 = vpop.f32.mrf.mxu0
        %v1368 = vadd.f32 0.0, %v1367
        %1369 = vmatmul.f32.gmra.mxu0 %v1348
        %v1370 = vpop.f32.mrf.mxu0
        %v1371 = vadd.f32 0.0, %v1370
        %1372 = vdwg.mxu0
        %1373 = vmatpush.msra.mxu0 0.0
        %1374 = vmatpush.msra.mxu0 0.0
        %1375 = vmatpush.msra.mxu0 0.0
        %1376 = vmatpush.msra.mxu0 0.0
        %1377 = vmatpush.msra.mxu0 0.0
        %1378 = vmatpush.msra.mxu0 0.0
        %1379 = vmatpush.msra.mxu0 0.0
        %1380 = vmatpush.msra.mxu0 0.0
        %1381 = vmatpush.msra.mxu0 0.0
        %1382 = vmatpush.msra.mxu0 0.0
        %1383 = vmatpush.msra.mxu0 0.0
        %1384 = vmatpush.msra.mxu0 0.0
        %1385 = vmatpush.msra.mxu0 0.0
        %1386 = vmatpush.msra.mxu0 0.0
        %1387 = vmatpush.msra.mxu0 0.0
        %1388 = vmatpush.msra.mxu0 %v1341
        %1389 = vmatmul.f32.gmra.mxu0 %v1346
        %v1390 = vpop.f32.mrf.mxu0
        %v1391 = vadd.f32 0.0, %v1390
        %1392 = vmatmul.f32.gmra.mxu0 %v1348
        %v1393 = vpop.f32.mrf.mxu0
        %v1394 = vadd.f32 0.0, %v1393
        %1395 = vdwg.mxu0
        %1396 = vmatpush.msra.mxu0 0.0
        %1397 = vmatpush.msra.mxu0 0.0
        %1398 = vmatpush.msra.mxu0 0.0
        %1399 = vmatpush.msra.mxu0 0.0
        %1400 = vmatpush.msra.mxu0 0.0
        %1401 = vmatpush.msra.mxu0 0.0
        %1402 = vmatpush.msra.mxu0 0.0
        %1403 = vmatpush.msra.mxu0 0.0
        %1404 = vmatpush.msra.mxu0 0.0
        %1405 = vmatpush.msra.mxu0 0.0
        %1406 = vmatpush.msra.mxu0 0.0
        %1407 = vmatpush.msra.mxu0 0.0
        %1408 = vmatpush.msra.mxu0 0.0
        %1409 = vmatpush.msra.mxu0 0.0
        %1410 = vmatpush.msra.mxu0 0.0
        %1411 = vmatpush.msra.mxu0 %v1342
        %1412 = vmatmul.f32.gmra.mxu0 %v1346
        %v1413 = vpop.f32.mrf.mxu0
        %v1414 = vadd.f32 0.0, %v1413
        %1415 = vmatmul.f32.gmra.mxu0 %v1348
        %v1416 = vpop.f32.mrf.mxu0
        %v1417 = vadd.f32 0.0, %v1416
        %1418 = vdwg.mxu0
        %v1419 = vadd.f32 %v1321, %v1368
        %v1420 = vadd.f32 %v1322, %v1391
        %v1421 = vadd.f32 %v1323, %v1414
        %v1422 = vadd.f32 %v1324, %v1371
        %v1423 = vadd.f32 %v1325, %v1394
        %v1424 = vadd.f32 %v1326, %v1417
        %1425 = vrot.lane.b32.xlu0 %v267, 32
        %v1426 = vpop.permute.xlu0 %1425
        %1427 = vrot.lane.b32.xlu0 %v268, 32
        %v1428 = vpop.permute.xlu0 %1427
        %1429 = vrot.lane.b32.xlu0 %v269, 32
        %v1430 = vpop.permute.xlu0 %1429
        %1431 = vrot.lane.b32.xlu0 %v270, 32
        %v1432 = vpop.permute.xlu0 %1431
        %1433 = vrot.lane.b32.xlu0 %v271, 32
        %v1434 = vpop.permute.xlu0 %1433
        %1435 = vrot.lane.b32.xlu0 %v272, 32
        %v1436 = vpop.permute.xlu0 %1435
        %vm1437 = vcmask 261120
        %v1438 = vsel %vm1437, %v1430, %v1432
        %v1439 = vsel %vm1437, %v1432, %v1434
        %v1440 = vsel %vm1437, %v1434, %v1436
        %v1444 = vsel %vm298, %v1426, 0
        %v1446 = vsel %vm298, %v1428, 0
        %1448 = vmatpush.msra.mxu0 0.0
        %1449 = vmatpush.msra.mxu0 0.0
        %1450 = vmatpush.msra.mxu0 0.0
        %1451 = vmatpush.msra.mxu0 0.0
        %1452 = vmatpush.msra.mxu0 0.0
        %1453 = vmatpush.msra.mxu0 0.0
        %1454 = vmatpush.msra.mxu0 0.0
        %1455 = vmatpush.msra.mxu0 0.0
        %1456 = vmatpush.msra.mxu0 0.0
        %1457 = vmatpush.msra.mxu0 0.0
        %1458 = vmatpush.msra.mxu0 0.0
        %1459 = vmatpush.msra.mxu0 0.0
        %1460 = vmatpush.msra.mxu0 0.0
        %1461 = vmatpush.msra.mxu0 0.0
        %1462 = vmatpush.msra.mxu0 0.0
        %1463 = vmatpush.msra.mxu0 %v1438
        %1464 = vmatmul.f32.gmra.mxu0 %v1444
        %v1465 = vpop.f32.mrf.mxu0
        %v1466 = vadd.f32 0.0, %v1465
        %1467 = vmatmul.f32.gmra.mxu0 %v1446
        %v1468 = vpop.f32.mrf.mxu0
        %v1469 = vadd.f32 0.0, %v1468
        %1470 = vdwg.mxu0
        %1471 = vmatpush.msra.mxu0 0.0
        %1472 = vmatpush.msra.mxu0 0.0
        %1473 = vmatpush.msra.mxu0 0.0
        %1474 = vmatpush.msra.mxu0 0.0
        %1475 = vmatpush.msra.mxu0 0.0
        %1476 = vmatpush.msra.mxu0 0.0
        %1477 = vmatpush.msra.mxu0 0.0
        %1478 = vmatpush.msra.mxu0 0.0
        %1479 = vmatpush.msra.mxu0 0.0
        %1480 = vmatpush.msra.mxu0 0.0
        %1481 = vmatpush.msra.mxu0 0.0
        %1482 = vmatpush.msra.mxu0 0.0
        %1483 = vmatpush.msra.mxu0 0.0
        %1484 = vmatpush.msra.mxu0 0.0
        %1485 = vmatpush.msra.mxu0 0.0
        %1486 = vmatpush.msra.mxu0 %v1439
        %1487 = vmatmul.f32.gmra.mxu0 %v1444
        %v1488 = vpop.f32.mrf.mxu0
        %v1489 = vadd.f32 0.0, %v1488
        %1490 = vmatmul.f32.gmra.mxu0 %v1446
        %v1491 = vpop.f32.mrf.mxu0
        %v1492 = vadd.f32 0.0, %v1491
        %1493 = vdwg.mxu0
        %1494 = vmatpush.msra.mxu0 0.0
        %1495 = vmatpush.msra.mxu0 0.0
        %1496 = vmatpush.msra.mxu0 0.0
        %1497 = vmatpush.msra.mxu0 0.0
        %1498 = vmatpush.msra.mxu0 0.0
        %1499 = vmatpush.msra.mxu0 0.0
        %1500 = vmatpush.msra.mxu0 0.0
        %1501 = vmatpush.msra.mxu0 0.0
        %1502 = vmatpush.msra.mxu0 0.0
        %1503 = vmatpush.msra.mxu0 0.0
        %1504 = vmatpush.msra.mxu0 0.0
        %1505 = vmatpush.msra.mxu0 0.0
        %1506 = vmatpush.msra.mxu0 0.0
        %1507 = vmatpush.msra.mxu0 0.0
        %1508 = vmatpush.msra.mxu0 0.0
        %1509 = vmatpush.msra.mxu0 %v1440
        %1510 = vmatmul.f32.gmra.mxu0 %v1444
        %v1511 = vpop.f32.mrf.mxu0
        %v1512 = vadd.f32 0.0, %v1511
        %1513 = vmatmul.f32.gmra.mxu0 %v1446
        %v1514 = vpop.f32.mrf.mxu0
        %v1515 = vadd.f32 0.0, %v1514
        %1516 = vdwg.mxu0
        %v1517 = vadd.f32 %v1419, %v1466
        %v1518 = vadd.f32 %v1420, %v1489
        %v1519 = vadd.f32 %v1421, %v1512
        %v1520 = vadd.f32 %v1422, %v1469
        %v1521 = vadd.f32 %v1423, %v1492
        %v1522 = vadd.f32 %v1424, %v1515
        %1523 = vrot.lane.b32.xlu0 %v267, 24
        %v1524 = vpop.permute.xlu0 %1523
        %1525 = vrot.lane.b32.xlu0 %v268, 24
        %v1526 = vpop.permute.xlu0 %1525
        %1527 = vrot.lane.b32.xlu0 %v269, 24
        %v1528 = vpop.permute.xlu0 %1527
        %1529 = vrot.lane.b32.xlu0 %v270, 24
        %v1530 = vpop.permute.xlu0 %1529
        %1531 = vrot.lane.b32.xlu0 %v271, 24
        %v1532 = vpop.permute.xlu0 %1531
        %1533 = vrot.lane.b32.xlu0 %v272, 24
        %v1534 = vpop.permute.xlu0 %1533
        %vm1535 = vcmask 195584
        %v1536 = vsel %vm1535, %v1528, %v1530
        %v1537 = vsel %vm1535, %v1530, %v1532
        %v1538 = vsel %vm1535, %v1532, %v1534
        %v1542 = vsel %vm298, %v1524, 0
        %v1544 = vsel %vm298, %v1526, 0
        %1546 = vmatpush.msra.mxu0 0.0
        %1547 = vmatpush.msra.mxu0 0.0
        %1548 = vmatpush.msra.mxu0 0.0
        %1549 = vmatpush.msra.mxu0 0.0
        %1550 = vmatpush.msra.mxu0 0.0
        %1551 = vmatpush.msra.mxu0 0.0
        %1552 = vmatpush.msra.mxu0 0.0
        %1553 = vmatpush.msra.mxu0 0.0
        %1554 = vmatpush.msra.mxu0 0.0
        %1555 = vmatpush.msra.mxu0 0.0
        %1556 = vmatpush.msra.mxu0 0.0
        %1557 = vmatpush.msra.mxu0 0.0
        %1558 = vmatpush.msra.mxu0 0.0
        %1559 = vmatpush.msra.mxu0 0.0
        %1560 = vmatpush.msra.mxu0 0.0
        %1561 = vmatpush.msra.mxu0 %v1536
        %1562 = vmatmul.f32.gmra.mxu0 %v1542
        %v1563 = vpop.f32.mrf.mxu0
        %v1564 = vadd.f32 0.0, %v1563
        %1565 = vmatmul.f32.gmra.mxu0 %v1544
        %v1566 = vpop.f32.mrf.mxu0
        %v1567 = vadd.f32 0.0, %v1566
        %1568 = vdwg.mxu0
        %1569 = vmatpush.msra.mxu0 0.0
        %1570 = vmatpush.msra.mxu0 0.0
        %1571 = vmatpush.msra.mxu0 0.0
        %1572 = vmatpush.msra.mxu0 0.0
        %1573 = vmatpush.msra.mxu0 0.0
        %1574 = vmatpush.msra.mxu0 0.0
        %1575 = vmatpush.msra.mxu0 0.0
        %1576 = vmatpush.msra.mxu0 0.0
        %1577 = vmatpush.msra.mxu0 0.0
        %1578 = vmatpush.msra.mxu0 0.0
        %1579 = vmatpush.msra.mxu0 0.0
        %1580 = vmatpush.msra.mxu0 0.0
        %1581 = vmatpush.msra.mxu0 0.0
        %1582 = vmatpush.msra.mxu0 0.0
        %1583 = vmatpush.msra.mxu0 0.0
        %1584 = vmatpush.msra.mxu0 %v1537
        %1585 = vmatmul.f32.gmra.mxu0 %v1542
        %v1586 = vpop.f32.mrf.mxu0
        %v1587 = vadd.f32 0.0, %v1586
        %1588 = vmatmul.f32.gmra.mxu0 %v1544
        %v1589 = vpop.f32.mrf.mxu0
        %v1590 = vadd.f32 0.0, %v1589
        %1591 = vdwg.mxu0
        %1592 = vmatpush.msra.mxu0 0.0
        %1593 = vmatpush.msra.mxu0 0.0
        %1594 = vmatpush.msra.mxu0 0.0
        %1595 = vmatpush.msra.mxu0 0.0
        %1596 = vmatpush.msra.mxu0 0.0
        %1597 = vmatpush.msra.mxu0 0.0
        %1598 = vmatpush.msra.mxu0 0.0
        %1599 = vmatpush.msra.mxu0 0.0
        %1600 = vmatpush.msra.mxu0 0.0
        %1601 = vmatpush.msra.mxu0 0.0
        %1602 = vmatpush.msra.mxu0 0.0
        %1603 = vmatpush.msra.mxu0 0.0
        %1604 = vmatpush.msra.mxu0 0.0
        %1605 = vmatpush.msra.mxu0 0.0
        %1606 = vmatpush.msra.mxu0 0.0
        %1607 = vmatpush.msra.mxu0 %v1538
        %1608 = vmatmul.f32.gmra.mxu0 %v1542
        %v1609 = vpop.f32.mrf.mxu0
        %v1610 = vadd.f32 0.0, %v1609
        %1611 = vmatmul.f32.gmra.mxu0 %v1544
        %v1612 = vpop.f32.mrf.mxu0
        %v1613 = vadd.f32 0.0, %v1612
        %1614 = vdwg.mxu0
        %v1615 = vadd.f32 %v1517, %v1564
        %v1616 = vadd.f32 %v1518, %v1587
        %v1617 = vadd.f32 %v1519, %v1610
        %v1618 = vadd.f32 %v1520, %v1567
        %v1619 = vadd.f32 %v1521, %v1590
        %v1620 = vadd.f32 %v1522, %v1613
        %1621 = vrot.lane.b32.xlu0 %v267, 16
        %v1622 = vpop.permute.xlu0 %1621
        %1623 = vrot.lane.b32.xlu0 %v268, 16
        %v1624 = vpop.permute.xlu0 %1623
        %1625 = vrot.lane.b32.xlu0 %v269, 16
        %v1626 = vpop.permute.xlu0 %1625
        %1627 = vrot.lane.b32.xlu0 %v270, 16
        %v1628 = vpop.permute.xlu0 %1627
        %1629 = vrot.lane.b32.xlu0 %v271, 16
        %v1630 = vpop.permute.xlu0 %1629
        %1631 = vrot.lane.b32.xlu0 %v272, 16
        %v1632 = vpop.permute.xlu0 %1631
        %vm1633 = vcmask 130048
        %v1634 = vsel %vm1633, %v1626, %v1628
        %v1635 = vsel %vm1633, %v1628, %v1630
        %v1636 = vsel %vm1633, %v1630, %v1632
        %v1640 = vsel %vm298, %v1622, 0
        %v1642 = vsel %vm298, %v1624, 0
        %1644 = vmatpush.msra.mxu0 0.0
        %1645 = vmatpush.msra.mxu0 0.0
        %1646 = vmatpush.msra.mxu0 0.0
        %1647 = vmatpush.msra.mxu0 0.0
        %1648 = vmatpush.msra.mxu0 0.0
        %1649 = vmatpush.msra.mxu0 0.0
        %1650 = vmatpush.msra.mxu0 0.0
        %1651 = vmatpush.msra.mxu0 0.0
        %1652 = vmatpush.msra.mxu0 0.0
        %1653 = vmatpush.msra.mxu0 0.0
        %1654 = vmatpush.msra.mxu0 0.0
        %1655 = vmatpush.msra.mxu0 0.0
        %1656 = vmatpush.msra.mxu0 0.0
        %1657 = vmatpush.msra.mxu0 0.0
        %1658 = vmatpush.msra.mxu0 0.0
        %1659 = vmatpush.msra.mxu0 %v1634
        %1660 = vmatmul.f32.gmra.mxu0 %v1640
        %v1661 = vpop.f32.mrf.mxu0
        %v1662 = vadd.f32 0.0, %v1661
        %1663 = vmatmul.f32.gmra.mxu0 %v1642
        %v1664 = vpop.f32.mrf.mxu0
        %v1665 = vadd.f32 0.0, %v1664
        %1666 = vdwg.mxu0
        %1667 = vmatpush.msra.mxu0 0.0
        %1668 = vmatpush.msra.mxu0 0.0
        %1669 = vmatpush.msra.mxu0 0.0
        %1670 = vmatpush.msra.mxu0 0.0
        %1671 = vmatpush.msra.mxu0 0.0
        %1672 = vmatpush.msra.mxu0 0.0
        %1673 = vmatpush.msra.mxu0 0.0
        %1674 = vmatpush.msra.mxu0 0.0
        %1675 = vmatpush.msra.mxu0 0.0
        %1676 = vmatpush.msra.mxu0 0.0
        %1677 = vmatpush.msra.mxu0 0.0
        %1678 = vmatpush.msra.mxu0 0.0
        %1679 = vmatpush.msra.mxu0 0.0
        %1680 = vmatpush.msra.mxu0 0.0
        %1681 = vmatpush.msra.mxu0 0.0
        %1682 = vmatpush.msra.mxu0 %v1635
        %1683 = vmatmul.f32.gmra.mxu0 %v1640
        %v1684 = vpop.f32.mrf.mxu0
        %v1685 = vadd.f32 0.0, %v1684
        %1686 = vmatmul.f32.gmra.mxu0 %v1642
        %v1687 = vpop.f32.mrf.mxu0
        %v1688 = vadd.f32 0.0, %v1687
        %1689 = vdwg.mxu0
        %1690 = vmatpush.msra.mxu0 0.0
        %1691 = vmatpush.msra.mxu0 0.0
        %1692 = vmatpush.msra.mxu0 0.0
        %1693 = vmatpush.msra.mxu0 0.0
        %1694 = vmatpush.msra.mxu0 0.0
        %1695 = vmatpush.msra.mxu0 0.0
        %1696 = vmatpush.msra.mxu0 0.0
        %1697 = vmatpush.msra.mxu0 0.0
        %1698 = vmatpush.msra.mxu0 0.0
        %1699 = vmatpush.msra.mxu0 0.0
        %1700 = vmatpush.msra.mxu0 0.0
        %1701 = vmatpush.msra.mxu0 0.0
        %1702 = vmatpush.msra.mxu0 0.0
        %1703 = vmatpush.msra.mxu0 0.0
        %1704 = vmatpush.msra.mxu0 0.0
        %1705 = vmatpush.msra.mxu0 %v1636
        %1706 = vmatmul.f32.gmra.mxu0 %v1640
        %v1707 = vpop.f32.mrf.mxu0
        %v1708 = vadd.f32 0.0, %v1707
        %1709 = vmatmul.f32.gmra.mxu0 %v1642
        %v1710 = vpop.f32.mrf.mxu0
        %v1711 = vadd.f32 0.0, %v1710
        %1712 = vdwg.mxu0
        %v1713 = vadd.f32 %v1615, %v1662
        %v1714 = vadd.f32 %v1616, %v1685
        %v1715 = vadd.f32 %v1617, %v1708
        %v1716 = vadd.f32 %v1618, %v1665
        %v1717 = vadd.f32 %v1619, %v1688
        %v1718 = vadd.f32 %v1620, %v1711
        %1719 = vrot.lane.b32.xlu0 %v267, 8
        %v1720 = vpop.permute.xlu0 %1719
        %1721 = vrot.lane.b32.xlu0 %v268, 8
        %v1722 = vpop.permute.xlu0 %1721
        %1723 = vrot.lane.b32.xlu0 %v269, 8
        %v1724 = vpop.permute.xlu0 %1723
        %1725 = vrot.lane.b32.xlu0 %v270, 8
        %v1726 = vpop.permute.xlu0 %1725
        %1727 = vrot.lane.b32.xlu0 %v271, 8
        %v1728 = vpop.permute.xlu0 %1727
        %1729 = vrot.lane.b32.xlu0 %v272, 8
        %v1730 = vpop.permute.xlu0 %1729
        %v1731 = vsel %vm298, %v1724, %v1726
        %v1732 = vsel %vm298, %v1726, %v1728
        %v1733 = vsel %vm298, %v1728, %v1730
        %v1737 = vsel %vm298, %v1720, 0
        %v1739 = vsel %vm298, %v1722, 0
        %1741 = vmatpush.msra.mxu0 0.0
        %1742 = vmatpush.msra.mxu0 0.0
        %1743 = vmatpush.msra.mxu0 0.0
        %1744 = vmatpush.msra.mxu0 0.0
        %1745 = vmatpush.msra.mxu0 0.0
        %1746 = vmatpush.msra.mxu0 0.0
        %1747 = vmatpush.msra.mxu0 0.0
        %1748 = vmatpush.msra.mxu0 0.0
        %1749 = vmatpush.msra.mxu0 0.0
        %1750 = vmatpush.msra.mxu0 0.0
        %1751 = vmatpush.msra.mxu0 0.0
        %1752 = vmatpush.msra.mxu0 0.0
        %1753 = vmatpush.msra.mxu0 0.0
        %1754 = vmatpush.msra.mxu0 0.0
        %1755 = vmatpush.msra.mxu0 0.0
        %1756 = vmatpush.msra.mxu0 %v1731
        %1757 = vmatmul.f32.gmra.mxu0 %v1737
        %v1758 = vpop.f32.mrf.mxu0
        %v1759 = vadd.f32 0.0, %v1758
        %1760 = vmatmul.f32.gmra.mxu0 %v1739
        %v1761 = vpop.f32.mrf.mxu0
        %v1762 = vadd.f32 0.0, %v1761
        %1763 = vdwg.mxu0
        %1764 = vmatpush.msra.mxu0 0.0
        %1765 = vmatpush.msra.mxu0 0.0
        %1766 = vmatpush.msra.mxu0 0.0
        %1767 = vmatpush.msra.mxu0 0.0
        %1768 = vmatpush.msra.mxu0 0.0
        %1769 = vmatpush.msra.mxu0 0.0
        %1770 = vmatpush.msra.mxu0 0.0
        %1771 = vmatpush.msra.mxu0 0.0
        %1772 = vmatpush.msra.mxu0 0.0
        %1773 = vmatpush.msra.mxu0 0.0
        %1774 = vmatpush.msra.mxu0 0.0
        %1775 = vmatpush.msra.mxu0 0.0
        %1776 = vmatpush.msra.mxu0 0.0
        %1777 = vmatpush.msra.mxu0 0.0
        %1778 = vmatpush.msra.mxu0 0.0
        %1779 = vmatpush.msra.mxu0 %v1732
        %1780 = vmatmul.f32.gmra.mxu0 %v1737
        %v1781 = vpop.f32.mrf.mxu0
        %v1782 = vadd.f32 0.0, %v1781
        %1783 = vmatmul.f32.gmra.mxu0 %v1739
        %v1784 = vpop.f32.mrf.mxu0
        %v1785 = vadd.f32 0.0, %v1784
        %1786 = vdwg.mxu0
        %1787 = vmatpush.msra.mxu0 0.0
        %1788 = vmatpush.msra.mxu0 0.0
        %1789 = vmatpush.msra.mxu0 0.0
        %1790 = vmatpush.msra.mxu0 0.0
        %1791 = vmatpush.msra.mxu0 0.0
        %1792 = vmatpush.msra.mxu0 0.0
        %1793 = vmatpush.msra.mxu0 0.0
        %1794 = vmatpush.msra.mxu0 0.0
        %1795 = vmatpush.msra.mxu0 0.0
        %1796 = vmatpush.msra.mxu0 0.0
        %1797 = vmatpush.msra.mxu0 0.0
        %1798 = vmatpush.msra.mxu0 0.0
        %1799 = vmatpush.msra.mxu0 0.0
        %1800 = vmatpush.msra.mxu0 0.0
        %1801 = vmatpush.msra.mxu0 0.0
        %1802 = vmatpush.msra.mxu0 %v1733
        %1803 = vmatmul.f32.gmra.mxu0 %v1737
        %v1804 = vpop.f32.mrf.mxu0
        %v1805 = vadd.f32 0.0, %v1804
        %1806 = vmatmul.f32.gmra.mxu0 %v1739
        %v1807 = vpop.f32.mrf.mxu0
        %v1808 = vadd.f32 0.0, %v1807
        %1809 = vdwg.mxu0
        %v1810 = vadd.f32 %v1713, %v1759
        %v1811 = vadd.f32 %v1714, %v1782
        %v1812 = vadd.f32 %v1715, %v1805
        %v1813 = vadd.f32 %v1716, %v1762
        %v1814 = vadd.f32 %v1717, %v1785
        %v1815 = vadd.f32 %v1718, %v1808
        %v1816 = vld [vmem:[#allocation3 + $0x8] sm:$0xff]
        %v1817 = vld [vmem:[#allocation3 + $0x28] sm:$0xff]
        %v1819 = vsel %vm298, %v1816, 0
        %v1822 = vsel %vm298, %v1817, 0
        %1824 = vmatpush.msra.mxu0 0.0
        %1825 = vmatpush.msra.mxu0 0.0
        %1826 = vmatpush.msra.mxu0 0.0
        %1827 = vmatpush.msra.mxu0 0.0
        %1828 = vmatpush.msra.mxu0 0.0
        %1829 = vmatpush.msra.mxu0 0.0
        %1830 = vmatpush.msra.mxu0 0.0
        %1831 = vmatpush.msra.mxu0 0.0
        %1832 = vmatpush.msra.mxu0 0.0
        %1833 = vmatpush.msra.mxu0 0.0
        %1834 = vmatpush.msra.mxu0 0.0
        %1835 = vmatpush.msra.mxu0 0.0
        %1836 = vmatpush.msra.mxu0 0.0
        %1837 = vmatpush.msra.mxu0 0.0
        %1838 = vmatpush.msra.mxu0 0.0
        %1839 = vmatpush.msra.mxu0 %v270
        %1840 = vmatmul.f32.gmra.mxu0 %v1819
        %v1841 = vpop.f32.mrf.mxu0
        %v1842 = vadd.f32 0.0, %v1841
        %1843 = vmatmul.f32.gmra.mxu0 %v1822
        %v1844 = vpop.f32.mrf.mxu0
        %v1845 = vadd.f32 0.0, %v1844
        %1846 = vdwg.mxu0
        %1847 = vmatpush.msra.mxu0 0.0
        %1848 = vmatpush.msra.mxu0 0.0
        %1849 = vmatpush.msra.mxu0 0.0
        %1850 = vmatpush.msra.mxu0 0.0
        %1851 = vmatpush.msra.mxu0 0.0
        %1852 = vmatpush.msra.mxu0 0.0
        %1853 = vmatpush.msra.mxu0 0.0
        %1854 = vmatpush.msra.mxu0 0.0
        %1855 = vmatpush.msra.mxu0 0.0
        %1856 = vmatpush.msra.mxu0 0.0
        %1857 = vmatpush.msra.mxu0 0.0
        %1858 = vmatpush.msra.mxu0 0.0
        %1859 = vmatpush.msra.mxu0 0.0
        %1860 = vmatpush.msra.mxu0 0.0
        %1861 = vmatpush.msra.mxu0 0.0
        %1862 = vmatpush.msra.mxu0 %v271
        %1863 = vmatmul.f32.gmra.mxu0 %v1819
        %v1864 = vpop.f32.mrf.mxu0
        %v1865 = vadd.f32 0.0, %v1864
        %1866 = vmatmul.f32.gmra.mxu0 %v1822
        %v1867 = vpop.f32.mrf.mxu0
        %v1868 = vadd.f32 0.0, %v1867
        %1869 = vdwg.mxu0
        %1870 = vmatpush.msra.mxu0 0.0
        %1871 = vmatpush.msra.mxu0 0.0
        %1872 = vmatpush.msra.mxu0 0.0
        %1873 = vmatpush.msra.mxu0 0.0
        %1874 = vmatpush.msra.mxu0 0.0
        %1875 = vmatpush.msra.mxu0 0.0
        %1876 = vmatpush.msra.mxu0 0.0
        %1877 = vmatpush.msra.mxu0 0.0
        %1878 = vmatpush.msra.mxu0 0.0
        %1879 = vmatpush.msra.mxu0 0.0
        %1880 = vmatpush.msra.mxu0 0.0
        %1881 = vmatpush.msra.mxu0 0.0
        %1882 = vmatpush.msra.mxu0 0.0
        %1883 = vmatpush.msra.mxu0 0.0
        %1884 = vmatpush.msra.mxu0 0.0
        %1885 = vmatpush.msra.mxu0 %v272
        %1886 = vmatmul.f32.gmra.mxu0 %v1819
        %v1887 = vpop.f32.mrf.mxu0
        %v1888 = vadd.f32 0.0, %v1887
        %1889 = vmatmul.f32.gmra.mxu0 %v1822
        %v1890 = vpop.f32.mrf.mxu0
        %v1891 = vadd.f32 0.0, %v1890
        %1892 = vdwg.mxu0
        %v1893 = vadd.f32 %v1810, %v1842
        %v1894 = vadd.f32 %v1811, %v1865
        %v1895 = vadd.f32 %v1812, %v1888
        %v1896 = vadd.f32 %v1813, %v1845
        %v1897 = vadd.f32 %v1814, %v1868
        %v1898 = vadd.f32 %v1815, %v1891
        %v1899 = vld [vmem:[#allocation2 + $0x8] sm:$0xff]
        %v1900 = vld [vmem:[#allocation2 + $0x10] sm:$0xff]
        %v1901 = vld [vmem:[#allocation2 + $0x18] sm:$0xff]
        %v1902 = vld [vmem:[#allocation2 + $0x20] sm:$0xff]
        %1903 = vrot.lane.b32.xlu0 %v1816, 120
        %v1904 = vpop.permute.xlu0 %1903
        %1905 = vrot.lane.b32.xlu0 %v1817, 120
        %v1906 = vpop.permute.xlu0 %1905
        %1911 = vrot.lane.b32.xlu0 %v1899, 120
        %v1912 = vpop.permute.xlu0 %1911
        %1913 = vrot.lane.b32.xlu0 %v1900, 120
        %v1914 = vpop.permute.xlu0 %1913
        %1915 = vrot.lane.b32.xlu0 %v1901, 120
        %v1916 = vpop.permute.xlu0 %1915
        %1917 = vrot.lane.b32.xlu0 %v1902, 120
        %v1918 = vpop.permute.xlu0 %1917
        %v1919 = vsel %vm291, %v1912, %v1914
        %v1920 = vsel %vm291, %v1914, %v1916
        %v1921 = vsel %vm291, %v1916, %v1918
        %v1925 = vsel %vm298, %v1904, 0
        %v1927 = vsel %vm298, %v1906, 0
        %1929 = vmatpush.msra.mxu0 0.0
        %1930 = vmatpush.msra.mxu0 0.0
        %1931 = vmatpush.msra.mxu0 0.0
        %1932 = vmatpush.msra.mxu0 0.0
        %1933 = vmatpush.msra.mxu0 0.0
        %1934 = vmatpush.msra.mxu0 0.0
        %1935 = vmatpush.msra.mxu0 0.0
        %1936 = vmatpush.msra.mxu0 0.0
        %1937 = vmatpush.msra.mxu0 0.0
        %1938 = vmatpush.msra.mxu0 0.0
        %1939 = vmatpush.msra.mxu0 0.0
        %1940 = vmatpush.msra.mxu0 0.0
        %1941 = vmatpush.msra.mxu0 0.0
        %1942 = vmatpush.msra.mxu0 0.0
        %1943 = vmatpush.msra.mxu0 0.0
        %1944 = vmatpush.msra.mxu0 %v1919
        %1945 = vmatmul.f32.gmra.mxu0 %v1925
        %v1946 = vpop.f32.mrf.mxu0
        %v1947 = vadd.f32 0.0, %v1946
        %1948 = vmatmul.f32.gmra.mxu0 %v1927
        %v1949 = vpop.f32.mrf.mxu0
        %v1950 = vadd.f32 0.0, %v1949
        %1951 = vdwg.mxu0
        %1952 = vmatpush.msra.mxu0 0.0
        %1953 = vmatpush.msra.mxu0 0.0
        %1954 = vmatpush.msra.mxu0 0.0
        %1955 = vmatpush.msra.mxu0 0.0
        %1956 = vmatpush.msra.mxu0 0.0
        %1957 = vmatpush.msra.mxu0 0.0
        %1958 = vmatpush.msra.mxu0 0.0
        %1959 = vmatpush.msra.mxu0 0.0
        %1960 = vmatpush.msra.mxu0 0.0
        %1961 = vmatpush.msra.mxu0 0.0
        %1962 = vmatpush.msra.mxu0 0.0
        %1963 = vmatpush.msra.mxu0 0.0
        %1964 = vmatpush.msra.mxu0 0.0
        %1965 = vmatpush.msra.mxu0 0.0
        %1966 = vmatpush.msra.mxu0 0.0
        %1967 = vmatpush.msra.mxu0 %v1920
        %1968 = vmatmul.f32.gmra.mxu0 %v1925
        %v1969 = vpop.f32.mrf.mxu0
        %v1970 = vadd.f32 0.0, %v1969
        %1971 = vmatmul.f32.gmra.mxu0 %v1927
        %v1972 = vpop.f32.mrf.mxu0
        %v1973 = vadd.f32 0.0, %v1972
        %1974 = vdwg.mxu0
        %1975 = vmatpush.msra.mxu0 0.0
        %1976 = vmatpush.msra.mxu0 0.0
        %1977 = vmatpush.msra.mxu0 0.0
        %1978 = vmatpush.msra.mxu0 0.0
        %1979 = vmatpush.msra.mxu0 0.0
        %1980 = vmatpush.msra.mxu0 0.0
        %1981 = vmatpush.msra.mxu0 0.0
        %1982 = vmatpush.msra.mxu0 0.0
        %1983 = vmatpush.msra.mxu0 0.0
        %1984 = vmatpush.msra.mxu0 0.0
        %1985 = vmatpush.msra.mxu0 0.0
        %1986 = vmatpush.msra.mxu0 0.0
        %1987 = vmatpush.msra.mxu0 0.0
        %1988 = vmatpush.msra.mxu0 0.0
        %1989 = vmatpush.msra.mxu0 0.0
        %1990 = vmatpush.msra.mxu0 %v1921
        %1991 = vmatmul.f32.gmra.mxu0 %v1925
        %v1992 = vpop.f32.mrf.mxu0
        %v1993 = vadd.f32 0.0, %v1992
        %1994 = vmatmul.f32.gmra.mxu0 %v1927
        %v1995 = vpop.f32.mrf.mxu0
        %v1996 = vadd.f32 0.0, %v1995
        %1997 = vdwg.mxu0
        %v1998 = vadd.f32 %v1893, %v1947
        %v1999 = vadd.f32 %v1894, %v1970
        %v2000 = vadd.f32 %v1895, %v1993
        %v2001 = vadd.f32 %v1896, %v1950
        %v2002 = vadd.f32 %v1897, %v1973
        %v2003 = vadd.f32 %v1898, %v1996
        %2004 = vrot.lane.b32.xlu0 %v1816, 112
        %v2005 = vpop.permute.xlu0 %2004
        %2006 = vrot.lane.b32.xlu0 %v1817, 112
        %v2007 = vpop.permute.xlu0 %2006
        %2008 = vrot.lane.b32.xlu0 %v1899, 112
        %v2009 = vpop.permute.xlu0 %2008
        %2010 = vrot.lane.b32.xlu0 %v1900, 112
        %v2011 = vpop.permute.xlu0 %2010
        %2012 = vrot.lane.b32.xlu0 %v1901, 112
        %v2013 = vpop.permute.xlu0 %2012
        %2014 = vrot.lane.b32.xlu0 %v1902, 112
        %v2015 = vpop.permute.xlu0 %2014
        %v2016 = vsel %vm457, %v2009, %v2011
        %v2017 = vsel %vm457, %v2011, %v2013
        %v2018 = vsel %vm457, %v2013, %v2015
        %v2022 = vsel %vm298, %v2005, 0
        %v2024 = vsel %vm298, %v2007, 0
        %2026 = vmatpush.msra.mxu0 0.0
        %2027 = vmatpush.msra.mxu0 0.0
        %2028 = vmatpush.msra.mxu0 0.0
        %2029 = vmatpush.msra.mxu0 0.0
        %2030 = vmatpush.msra.mxu0 0.0
        %2031 = vmatpush.msra.mxu0 0.0
        %2032 = vmatpush.msra.mxu0 0.0
        %2033 = vmatpush.msra.mxu0 0.0
        %2034 = vmatpush.msra.mxu0 0.0
        %2035 = vmatpush.msra.mxu0 0.0
        %2036 = vmatpush.msra.mxu0 0.0
        %2037 = vmatpush.msra.mxu0 0.0
        %2038 = vmatpush.msra.mxu0 0.0
        %2039 = vmatpush.msra.mxu0 0.0
        %2040 = vmatpush.msra.mxu0 0.0
        %2041 = vmatpush.msra.mxu0 %v2016
        %2042 = vmatmul.f32.gmra.mxu0 %v2022
        %v2043 = vpop.f32.mrf.mxu0
        %v2044 = vadd.f32 0.0, %v2043
        %2045 = vmatmul.f32.gmra.mxu0 %v2024
        %v2046 = vpop.f32.mrf.mxu0
        %v2047 = vadd.f32 0.0, %v2046
        %2048 = vdwg.mxu0
        %2049 = vmatpush.msra.mxu0 0.0
        %2050 = vmatpush.msra.mxu0 0.0
        %2051 = vmatpush.msra.mxu0 0.0
        %2052 = vmatpush.msra.mxu0 0.0
        %2053 = vmatpush.msra.mxu0 0.0
        %2054 = vmatpush.msra.mxu0 0.0
        %2055 = vmatpush.msra.mxu0 0.0
        %2056 = vmatpush.msra.mxu0 0.0
        %2057 = vmatpush.msra.mxu0 0.0
        %2058 = vmatpush.msra.mxu0 0.0
        %2059 = vmatpush.msra.mxu0 0.0
        %2060 = vmatpush.msra.mxu0 0.0
        %2061 = vmatpush.msra.mxu0 0.0
        %2062 = vmatpush.msra.mxu0 0.0
        %2063 = vmatpush.msra.mxu0 0.0
        %2064 = vmatpush.msra.mxu0 %v2017
        %2065 = vmatmul.f32.gmra.mxu0 %v2022
        %v2066 = vpop.f32.mrf.mxu0
        %v2067 = vadd.f32 0.0, %v2066
        %2068 = vmatmul.f32.gmra.mxu0 %v2024
        %v2069 = vpop.f32.mrf.mxu0
        %v2070 = vadd.f32 0.0, %v2069
        %2071 = vdwg.mxu0
        %2072 = vmatpush.msra.mxu0 0.0
        %2073 = vmatpush.msra.mxu0 0.0
        %2074 = vmatpush.msra.mxu0 0.0
        %2075 = vmatpush.msra.mxu0 0.0
        %2076 = vmatpush.msra.mxu0 0.0
        %2077 = vmatpush.msra.mxu0 0.0
        %2078 = vmatpush.msra.mxu0 0.0
        %2079 = vmatpush.msra.mxu0 0.0
        %2080 = vmatpush.msra.mxu0 0.0
        %2081 = vmatpush.msra.mxu0 0.0
        %2082 = vmatpush.msra.mxu0 0.0
        %2083 = vmatpush.msra.mxu0 0.0
        %2084 = vmatpush.msra.mxu0 0.0
        %2085 = vmatpush.msra.mxu0 0.0
        %2086 = vmatpush.msra.mxu0 0.0
        %2087 = vmatpush.msra.mxu0 %v2018
        %2088 = vmatmul.f32.gmra.mxu0 %v2022
        %v2089 = vpop.f32.mrf.mxu0
        %v2090 = vadd.f32 0.0, %v2089
        %2091 = vmatmul.f32.gmra.mxu0 %v2024
        %v2092 = vpop.f32.mrf.mxu0
        %v2093 = vadd.f32 0.0, %v2092
        %2094 = vdwg.mxu0
        %v2095 = vadd.f32 %v1998, %v2044
        %v2096 = vadd.f32 %v1999, %v2067
        %v2097 = vadd.f32 %v2000, %v2090
        %v2098 = vadd.f32 %v2001, %v2047
        %v2099 = vadd.f32 %v2002, %v2070
        %v2100 = vadd.f32 %v2003, %v2093
        %2101 = vrot.lane.b32.xlu0 %v1816, 104
        %v2102 = vpop.permute.xlu0 %2101
        %2103 = vrot.lane.b32.xlu0 %v1817, 104
        %v2104 = vpop.permute.xlu0 %2103
        %2105 = vrot.lane.b32.xlu0 %v1899, 104
        %v2106 = vpop.permute.xlu0 %2105
        %2107 = vrot.lane.b32.xlu0 %v1900, 104
        %v2108 = vpop.permute.xlu0 %2107
        %2109 = vrot.lane.b32.xlu0 %v1901, 104
        %v2110 = vpop.permute.xlu0 %2109
        %2111 = vrot.lane.b32.xlu0 %v1902, 104
        %v2112 = vpop.permute.xlu0 %2111
        %v2113 = vsel %vm555, %v2106, %v2108
        %v2114 = vsel %vm555, %v2108, %v2110
        %v2115 = vsel %vm555, %v2110, %v2112
        %v2119 = vsel %vm298, %v2102, 0
        %v2121 = vsel %vm298, %v2104, 0
        %2123 = vmatpush.msra.mxu0 0.0
        %2124 = vmatpush.msra.mxu0 0.0
        %2125 = vmatpush.msra.mxu0 0.0
        %2126 = vmatpush.msra.mxu0 0.0
        %2127 = vmatpush.msra.mxu0 0.0
        %2128 = vmatpush.msra.mxu0 0.0
        %2129 = vmatpush.msra.mxu0 0.0
        %2130 = vmatpush.msra.mxu0 0.0
        %2131 = vmatpush.msra.mxu0 0.0
        %2132 = vmatpush.msra.mxu0 0.0
        %2133 = vmatpush.msra.mxu0 0.0
        %2134 = vmatpush.msra.mxu0 0.0
        %2135 = vmatpush.msra.mxu0 0.0
        %2136 = vmatpush.msra.mxu0 0.0
        %2137 = vmatpush.msra.mxu0 0.0
        %2138 = vmatpush.msra.mxu0 %v2113
        %2139 = vmatmul.f32.gmra.mxu0 %v2119
        %v2140 = vpop.f32.mrf.mxu0
        %v2141 = vadd.f32 0.0, %v2140
        %2142 = vmatmul.f32.gmra.mxu0 %v2121
        %v2143 = vpop.f32.mrf.mxu0
        %v2144 = vadd.f32 0.0, %v2143
        %2145 = vdwg.mxu0
        %2146 = vmatpush.msra.mxu0 0.0
        %2147 = vmatpush.msra.mxu0 0.0
        %2148 = vmatpush.msra.mxu0 0.0
        %2149 = vmatpush.msra.mxu0 0.0
        %2150 = vmatpush.msra.mxu0 0.0
        %2151 = vmatpush.msra.mxu0 0.0
        %2152 = vmatpush.msra.mxu0 0.0
        %2153 = vmatpush.msra.mxu0 0.0
        %2154 = vmatpush.msra.mxu0 0.0
        %2155 = vmatpush.msra.mxu0 0.0
        %2156 = vmatpush.msra.mxu0 0.0
        %2157 = vmatpush.msra.mxu0 0.0
        %2158 = vmatpush.msra.mxu0 0.0
        %2159 = vmatpush.msra.mxu0 0.0
        %2160 = vmatpush.msra.mxu0 0.0
        %2161 = vmatpush.msra.mxu0 %v2114
        %2162 = vmatmul.f32.gmra.mxu0 %v2119
        %v2163 = vpop.f32.mrf.mxu0
        %v2164 = vadd.f32 0.0, %v2163
        %2165 = vmatmul.f32.gmra.mxu0 %v2121
        %v2166 = vpop.f32.mrf.mxu0
        %v2167 = vadd.f32 0.0, %v2166
        %2168 = vdwg.mxu0
        %2169 = vmatpush.msra.mxu0 0.0
        %2170 = vmatpush.msra.mxu0 0.0
        %2171 = vmatpush.msra.mxu0 0.0
        %2172 = vmatpush.msra.mxu0 0.0
        %2173 = vmatpush.msra.mxu0 0.0
        %2174 = vmatpush.msra.mxu0 0.0
        %2175 = vmatpush.msra.mxu0 0.0
        %2176 = vmatpush.msra.mxu0 0.0
        %2177 = vmatpush.msra.mxu0 0.0
        %2178 = vmatpush.msra.mxu0 0.0
        %2179 = vmatpush.msra.mxu0 0.0
        %2180 = vmatpush.msra.mxu0 0.0
        %2181 = vmatpush.msra.mxu0 0.0
        %2182 = vmatpush.msra.mxu0 0.0
        %2183 = vmatpush.msra.mxu0 0.0
        %2184 = vmatpush.msra.mxu0 %v2115
        %2185 = vmatmul.f32.gmra.mxu0 %v2119
        %v2186 = vpop.f32.mrf.mxu0
        %v2187 = vadd.f32 0.0, %v2186
        %2188 = vmatmul.f32.gmra.mxu0 %v2121
        %v2189 = vpop.f32.mrf.mxu0
        %v2190 = vadd.f32 0.0, %v2189
        %2191 = vdwg.mxu0
        %v2192 = vadd.f32 %v2095, %v2141
        %v2193 = vadd.f32 %v2096, %v2164
        %v2194 = vadd.f32 %v2097, %v2187
        %v2195 = vadd.f32 %v2098, %v2144
        %v2196 = vadd.f32 %v2099, %v2167
        %v2197 = vadd.f32 %v2100, %v2190
        %2198 = vrot.lane.b32.xlu0 %v1816, 96
        %v2199 = vpop.permute.xlu0 %2198
        %2200 = vrot.lane.b32.xlu0 %v1817, 96
        %v2201 = vpop.permute.xlu0 %2200
        %2202 = vrot.lane.b32.xlu0 %v1899, 96
        %v2203 = vpop.permute.xlu0 %2202
        %2204 = vrot.lane.b32.xlu0 %v1900, 96
        %v2205 = vpop.permute.xlu0 %2204
        %2206 = vrot.lane.b32.xlu0 %v1901, 96
        %v2207 = vpop.permute.xlu0 %2206
        %2208 = vrot.lane.b32.xlu0 %v1902, 96
        %v2209 = vpop.permute.xlu0 %2208
        %v2210 = vsel %vm653, %v2203, %v2205
        %v2211 = vsel %vm653, %v2205, %v2207
        %v2212 = vsel %vm653, %v2207, %v2209
        %v2216 = vsel %vm298, %v2199, 0
        %v2218 = vsel %vm298, %v2201, 0
        %2220 = vmatpush.msra.mxu0 0.0
        %2221 = vmatpush.msra.mxu0 0.0
        %2222 = vmatpush.msra.mxu0 0.0
        %2223 = vmatpush.msra.mxu0 0.0
        %2224 = vmatpush.msra.mxu0 0.0
        %2225 = vmatpush.msra.mxu0 0.0
        %2226 = vmatpush.msra.mxu0 0.0
        %2227 = vmatpush.msra.mxu0 0.0
        %2228 = vmatpush.msra.mxu0 0.0
        %2229 = vmatpush.msra.mxu0 0.0
        %2230 = vmatpush.msra.mxu0 0.0
        %2231 = vmatpush.msra.mxu0 0.0
        %2232 = vmatpush.msra.mxu0 0.0
        %2233 = vmatpush.msra.mxu0 0.0
        %2234 = vmatpush.msra.mxu0 0.0
        %2235 = vmatpush.msra.mxu0 %v2210
        %2236 = vmatmul.f32.gmra.mxu0 %v2216
        %v2237 = vpop.f32.mrf.mxu0
        %v2238 = vadd.f32 0.0, %v2237
        %2239 = vmatmul.f32.gmra.mxu0 %v2218
        %v2240 = vpop.f32.mrf.mxu0
        %v2241 = vadd.f32 0.0, %v2240
        %2242 = vdwg.mxu0
        %2243 = vmatpush.msra.mxu0 0.0
        %2244 = vmatpush.msra.mxu0 0.0
        %2245 = vmatpush.msra.mxu0 0.0
        %2246 = vmatpush.msra.mxu0 0.0
        %2247 = vmatpush.msra.mxu0 0.0
        %2248 = vmatpush.msra.mxu0 0.0
        %2249 = vmatpush.msra.mxu0 0.0
        %2250 = vmatpush.msra.mxu0 0.0
        %2251 = vmatpush.msra.mxu0 0.0
        %2252 = vmatpush.msra.mxu0 0.0
        %2253 = vmatpush.msra.mxu0 0.0
        %2254 = vmatpush.msra.mxu0 0.0
        %2255 = vmatpush.msra.mxu0 0.0
        %2256 = vmatpush.msra.mxu0 0.0
        %2257 = vmatpush.msra.mxu0 0.0
        %2258 = vmatpush.msra.mxu0 %v2211
        %2259 = vmatmul.f32.gmra.mxu0 %v2216
        %v2260 = vpop.f32.mrf.mxu0
        %v2261 = vadd.f32 0.0, %v2260
        %2262 = vmatmul.f32.gmra.mxu0 %v2218
        %v2263 = vpop.f32.mrf.mxu0
        %v2264 = vadd.f32 0.0, %v2263
        %2265 = vdwg.mxu0
        %2266 = vmatpush.msra.mxu0 0.0
        %2267 = vmatpush.msra.mxu0 0.0
        %2268 = vmatpush.msra.mxu0 0.0
        %2269 = vmatpush.msra.mxu0 0.0
        %2270 = vmatpush.msra.mxu0 0.0
        %2271 = vmatpush.msra.mxu0 0.0
        %2272 = vmatpush.msra.mxu0 0.0
        %2273 = vmatpush.msra.mxu0 0.0
        %2274 = vmatpush.msra.mxu0 0.0
        %2275 = vmatpush.msra.mxu0 0.0
        %2276 = vmatpush.msra.mxu0 0.0
        %2277 = vmatpush.msra.mxu0 0.0
        %2278 = vmatpush.msra.mxu0 0.0
        %2279 = vmatpush.msra.mxu0 0.0
        %2280 = vmatpush.msra.mxu0 0.0
        %2281 = vmatpush.msra.mxu0 %v2212
        %2282 = vmatmul.f32.gmra.mxu0 %v2216
        %v2283 = vpop.f32.mrf.mxu0
        %v2284 = vadd.f32 0.0, %v2283
        %2285 = vmatmul.f32.gmra.mxu0 %v2218
        %v2286 = vpop.f32.mrf.mxu0
        %v2287 = vadd.f32 0.0, %v2286
        %2288 = vdwg.mxu0
        %v2289 = vadd.f32 %v2192, %v2238
        %v2290 = vadd.f32 %v2193, %v2261
        %v2291 = vadd.f32 %v2194, %v2284
        %v2292 = vadd.f32 %v2195, %v2241
        %v2293 = vadd.f32 %v2196, %v2264
        %v2294 = vadd.f32 %v2197, %v2287
        %2295 = vrot.lane.b32.xlu0 %v1816, 88
        %v2296 = vpop.permute.xlu0 %2295
        %2297 = vrot.lane.b32.xlu0 %v1817, 88
        %v2298 = vpop.permute.xlu0 %2297
        %2299 = vrot.lane.b32.xlu0 %v1899, 88
        %v2300 = vpop.permute.xlu0 %2299
        %2301 = vrot.lane.b32.xlu0 %v1900, 88
        %v2302 = vpop.permute.xlu0 %2301
        %2303 = vrot.lane.b32.xlu0 %v1901, 88
        %v2304 = vpop.permute.xlu0 %2303
        %2305 = vrot.lane.b32.xlu0 %v1902, 88
        %v2306 = vpop.permute.xlu0 %2305
        %v2307 = vsel %vm751, %v2300, %v2302
        %v2308 = vsel %vm751, %v2302, %v2304
        %v2309 = vsel %vm751, %v2304, %v2306
        %v2313 = vsel %vm298, %v2296, 0
        %v2315 = vsel %vm298, %v2298, 0
        %2317 = vmatpush.msra.mxu0 0.0
        %2318 = vmatpush.msra.mxu0 0.0
        %2319 = vmatpush.msra.mxu0 0.0
        %2320 = vmatpush.msra.mxu0 0.0
        %2321 = vmatpush.msra.mxu0 0.0
        %2322 = vmatpush.msra.mxu0 0.0
        %2323 = vmatpush.msra.mxu0 0.0
        %2324 = vmatpush.msra.mxu0 0.0
        %2325 = vmatpush.msra.mxu0 0.0
        %2326 = vmatpush.msra.mxu0 0.0
        %2327 = vmatpush.msra.mxu0 0.0
        %2328 = vmatpush.msra.mxu0 0.0
        %2329 = vmatpush.msra.mxu0 0.0
        %2330 = vmatpush.msra.mxu0 0.0
        %2331 = vmatpush.msra.mxu0 0.0
        %2332 = vmatpush.msra.mxu0 %v2307
        %2333 = vmatmul.f32.gmra.mxu0 %v2313
        %v2334 = vpop.f32.mrf.mxu0
        %v2335 = vadd.f32 0.0, %v2334
        %2336 = vmatmul.f32.gmra.mxu0 %v2315
        %v2337 = vpop.f32.mrf.mxu0
        %v2338 = vadd.f32 0.0, %v2337
        %2339 = vdwg.mxu0
        %2340 = vmatpush.msra.mxu0 0.0
        %2341 = vmatpush.msra.mxu0 0.0
        %2342 = vmatpush.msra.mxu0 0.0
        %2343 = vmatpush.msra.mxu0 0.0
        %2344 = vmatpush.msra.mxu0 0.0
        %2345 = vmatpush.msra.mxu0 0.0
        %2346 = vmatpush.msra.mxu0 0.0
        %2347 = vmatpush.msra.mxu0 0.0
        %2348 = vmatpush.msra.mxu0 0.0
        %2349 = vmatpush.msra.mxu0 0.0
        %2350 = vmatpush.msra.mxu0 0.0
        %2351 = vmatpush.msra.mxu0 0.0
        %2352 = vmatpush.msra.mxu0 0.0
        %2353 = vmatpush.msra.mxu0 0.0
        %2354 = vmatpush.msra.mxu0 0.0
        %2355 = vmatpush.msra.mxu0 %v2308
        %2356 = vmatmul.f32.gmra.mxu0 %v2313
        %v2357 = vpop.f32.mrf.mxu0
        %v2358 = vadd.f32 0.0, %v2357
        %2359 = vmatmul.f32.gmra.mxu0 %v2315
        %v2360 = vpop.f32.mrf.mxu0
        %v2361 = vadd.f32 0.0, %v2360
        %2362 = vdwg.mxu0
        %2363 = vmatpush.msra.mxu0 0.0
        %2364 = vmatpush.msra.mxu0 0.0
        %2365 = vmatpush.msra.mxu0 0.0
        %2366 = vmatpush.msra.mxu0 0.0
        %2367 = vmatpush.msra.mxu0 0.0
        %2368 = vmatpush.msra.mxu0 0.0
        %2369 = vmatpush.msra.mxu0 0.0
        %2370 = vmatpush.msra.mxu0 0.0
        %2371 = vmatpush.msra.mxu0 0.0
        %2372 = vmatpush.msra.mxu0 0.0
        %2373 = vmatpush.msra.mxu0 0.0
        %2374 = vmatpush.msra.mxu0 0.0
        %2375 = vmatpush.msra.mxu0 0.0
        %2376 = vmatpush.msra.mxu0 0.0
        %2377 = vmatpush.msra.mxu0 0.0
        %2378 = vmatpush.msra.mxu0 %v2309
        %2379 = vmatmul.f32.gmra.mxu0 %v2313
        %v2380 = vpop.f32.mrf.mxu0
        %v2381 = vadd.f32 0.0, %v2380
        %2382 = vmatmul.f32.gmra.mxu0 %v2315
        %v2383 = vpop.f32.mrf.mxu0
        %v2384 = vadd.f32 0.0, %v2383
        %2385 = vdwg.mxu0
        %v2386 = vadd.f32 %v2289, %v2335
        %v2387 = vadd.f32 %v2290, %v2358
        %v2388 = vadd.f32 %v2291, %v2381
        %v2389 = vadd.f32 %v2292, %v2338
        %v2390 = vadd.f32 %v2293, %v2361
        %v2391 = vadd.f32 %v2294, %v2384
        %2392 = vrot.lane.b32.xlu0 %v1816, 80
        %v2393 = vpop.permute.xlu0 %2392
        %2394 = vrot.lane.b32.xlu0 %v1817, 80
        %v2395 = vpop.permute.xlu0 %2394
        %2396 = vrot.lane.b32.xlu0 %v1899, 80
        %v2397 = vpop.permute.xlu0 %2396
        %2398 = vrot.lane.b32.xlu0 %v1900, 80
        %v2399 = vpop.permute.xlu0 %2398
        %2400 = vrot.lane.b32.xlu0 %v1901, 80
        %v2401 = vpop.permute.xlu0 %2400
        %2402 = vrot.lane.b32.xlu0 %v1902, 80
        %v2403 = vpop.permute.xlu0 %2402
        %v2404 = vsel %vm849, %v2397, %v2399
        %v2405 = vsel %vm849, %v2399, %v2401
        %v2406 = vsel %vm849, %v2401, %v2403
        %v2410 = vsel %vm298, %v2393, 0
        %v2412 = vsel %vm298, %v2395, 0
        %2414 = vmatpush.msra.mxu0 0.0
        %2415 = vmatpush.msra.mxu0 0.0
        %2416 = vmatpush.msra.mxu0 0.0
        %2417 = vmatpush.msra.mxu0 0.0
        %2418 = vmatpush.msra.mxu0 0.0
        %2419 = vmatpush.msra.mxu0 0.0
        %2420 = vmatpush.msra.mxu0 0.0
        %2421 = vmatpush.msra.mxu0 0.0
        %2422 = vmatpush.msra.mxu0 0.0
        %2423 = vmatpush.msra.mxu0 0.0
        %2424 = vmatpush.msra.mxu0 0.0
        %2425 = vmatpush.msra.mxu0 0.0
        %2426 = vmatpush.msra.mxu0 0.0
        %2427 = vmatpush.msra.mxu0 0.0
        %2428 = vmatpush.msra.mxu0 0.0
        %2429 = vmatpush.msra.mxu0 %v2404
        %2430 = vmatmul.f32.gmra.mxu0 %v2410
        %v2431 = vpop.f32.mrf.mxu0
        %v2432 = vadd.f32 0.0, %v2431
        %2433 = vmatmul.f32.gmra.mxu0 %v2412
        %v2434 = vpop.f32.mrf.mxu0
        %v2435 = vadd.f32 0.0, %v2434
        %2436 = vdwg.mxu0
        %2437 = vmatpush.msra.mxu0 0.0
        %2438 = vmatpush.msra.mxu0 0.0
        %2439 = vmatpush.msra.mxu0 0.0
        %2440 = vmatpush.msra.mxu0 0.0
        %2441 = vmatpush.msra.mxu0 0.0
        %2442 = vmatpush.msra.mxu0 0.0
        %2443 = vmatpush.msra.mxu0 0.0
        %2444 = vmatpush.msra.mxu0 0.0
        %2445 = vmatpush.msra.mxu0 0.0
        %2446 = vmatpush.msra.mxu0 0.0
        %2447 = vmatpush.msra.mxu0 0.0
        %2448 = vmatpush.msra.mxu0 0.0
        %2449 = vmatpush.msra.mxu0 0.0
        %2450 = vmatpush.msra.mxu0 0.0
        %2451 = vmatpush.msra.mxu0 0.0
        %2452 = vmatpush.msra.mxu0 %v2405
        %2453 = vmatmul.f32.gmra.mxu0 %v2410
        %v2454 = vpop.f32.mrf.mxu0
        %v2455 = vadd.f32 0.0, %v2454
        %2456 = vmatmul.f32.gmra.mxu0 %v2412
        %v2457 = vpop.f32.mrf.mxu0
        %v2458 = vadd.f32 0.0, %v2457
        %2459 = vdwg.mxu0
        %2460 = vmatpush.msra.mxu0 0.0
        %2461 = vmatpush.msra.mxu0 0.0
        %2462 = vmatpush.msra.mxu0 0.0
        %2463 = vmatpush.msra.mxu0 0.0
        %2464 = vmatpush.msra.mxu0 0.0
        %2465 = vmatpush.msra.mxu0 0.0
        %2466 = vmatpush.msra.mxu0 0.0
        %2467 = vmatpush.msra.mxu0 0.0
        %2468 = vmatpush.msra.mxu0 0.0
        %2469 = vmatpush.msra.mxu0 0.0
        %2470 = vmatpush.msra.mxu0 0.0
        %2471 = vmatpush.msra.mxu0 0.0
        %2472 = vmatpush.msra.mxu0 0.0
        %2473 = vmatpush.msra.mxu0 0.0
        %2474 = vmatpush.msra.mxu0 0.0
        %2475 = vmatpush.msra.mxu0 %v2406
        %2476 = vmatmul.f32.gmra.mxu0 %v2410
        %v2477 = vpop.f32.mrf.mxu0
        %v2478 = vadd.f32 0.0, %v2477
        %2479 = vmatmul.f32.gmra.mxu0 %v2412
        %v2480 = vpop.f32.mrf.mxu0
        %v2481 = vadd.f32 0.0, %v2480
        %2482 = vdwg.mxu0
        %v2483 = vadd.f32 %v2386, %v2432
        %v2484 = vadd.f32 %v2387, %v2455
        %v2485 = vadd.f32 %v2388, %v2478
        %v2486 = vadd.f32 %v2389, %v2435
        %v2487 = vadd.f32 %v2390, %v2458
        %v2488 = vadd.f32 %v2391, %v2481
        %2489 = vrot.lane.b32.xlu0 %v1816, 72
        %v2490 = vpop.permute.xlu0 %2489
        %2491 = vrot.lane.b32.xlu0 %v1817, 72
        %v2492 = vpop.permute.xlu0 %2491
        %2493 = vrot.lane.b32.xlu0 %v1899, 72
        %v2494 = vpop.permute.xlu0 %2493
        %2495 = vrot.lane.b32.xlu0 %v1900, 72
        %v2496 = vpop.permute.xlu0 %2495
        %2497 = vrot.lane.b32.xlu0 %v1901, 72
        %v2498 = vpop.permute.xlu0 %2497
        %2499 = vrot.lane.b32.xlu0 %v1902, 72
        %v2500 = vpop.permute.xlu0 %2499
        %v2501 = vsel %vm947, %v2494, %v2496
        %v2502 = vsel %vm947, %v2496, %v2498
        %v2503 = vsel %vm947, %v2498, %v2500
        %v2507 = vsel %vm298, %v2490, 0
        %v2509 = vsel %vm298, %v2492, 0
        %2511 = vmatpush.msra.mxu0 0.0
        %2512 = vmatpush.msra.mxu0 0.0
        %2513 = vmatpush.msra.mxu0 0.0
        %2514 = vmatpush.msra.mxu0 0.0
        %2515 = vmatpush.msra.mxu0 0.0
        %2516 = vmatpush.msra.mxu0 0.0
        %2517 = vmatpush.msra.mxu0 0.0
        %2518 = vmatpush.msra.mxu0 0.0
        %2519 = vmatpush.msra.mxu0 0.0
        %2520 = vmatpush.msra.mxu0 0.0
        %2521 = vmatpush.msra.mxu0 0.0
        %2522 = vmatpush.msra.mxu0 0.0
        %2523 = vmatpush.msra.mxu0 0.0
        %2524 = vmatpush.msra.mxu0 0.0
        %2525 = vmatpush.msra.mxu0 0.0
        %2526 = vmatpush.msra.mxu0 %v2501
        %2527 = vmatmul.f32.gmra.mxu0 %v2507
        %v2528 = vpop.f32.mrf.mxu0
        %v2529 = vadd.f32 0.0, %v2528
        %2530 = vmatmul.f32.gmra.mxu0 %v2509
        %v2531 = vpop.f32.mrf.mxu0
        %v2532 = vadd.f32 0.0, %v2531
        %2533 = vdwg.mxu0
        %2534 = vmatpush.msra.mxu0 0.0
        %2535 = vmatpush.msra.mxu0 0.0
        %2536 = vmatpush.msra.mxu0 0.0
        %2537 = vmatpush.msra.mxu0 0.0
        %2538 = vmatpush.msra.mxu0 0.0
        %2539 = vmatpush.msra.mxu0 0.0
        %2540 = vmatpush.msra.mxu0 0.0
        %2541 = vmatpush.msra.mxu0 0.0
        %2542 = vmatpush.msra.mxu0 0.0
        %2543 = vmatpush.msra.mxu0 0.0
        %2544 = vmatpush.msra.mxu0 0.0
        %2545 = vmatpush.msra.mxu0 0.0
        %2546 = vmatpush.msra.mxu0 0.0
        %2547 = vmatpush.msra.mxu0 0.0
        %2548 = vmatpush.msra.mxu0 0.0
        %2549 = vmatpush.msra.mxu0 %v2502
        %2550 = vmatmul.f32.gmra.mxu0 %v2507
        %v2551 = vpop.f32.mrf.mxu0
        %v2552 = vadd.f32 0.0, %v2551
        %2553 = vmatmul.f32.gmra.mxu0 %v2509
        %v2554 = vpop.f32.mrf.mxu0
        %v2555 = vadd.f32 0.0, %v2554
        %2556 = vdwg.mxu0
        %2557 = vmatpush.msra.mxu0 0.0
        %2558 = vmatpush.msra.mxu0 0.0
        %2559 = vmatpush.msra.mxu0 0.0
        %2560 = vmatpush.msra.mxu0 0.0
        %2561 = vmatpush.msra.mxu0 0.0
        %2562 = vmatpush.msra.mxu0 0.0
        %2563 = vmatpush.msra.mxu0 0.0
        %2564 = vmatpush.msra.mxu0 0.0
        %2565 = vmatpush.msra.mxu0 0.0
        %2566 = vmatpush.msra.mxu0 0.0
        %2567 = vmatpush.msra.mxu0 0.0
        %2568 = vmatpush.msra.mxu0 0.0
        %2569 = vmatpush.msra.mxu0 0.0
        %2570 = vmatpush.msra.mxu0 0.0
        %2571 = vmatpush.msra.mxu0 0.0
        %2572 = vmatpush.msra.mxu0 %v2503
        %2573 = vmatmul.f32.gmra.mxu0 %v2507
        %v2574 = vpop.f32.mrf.mxu0
        %v2575 = vadd.f32 0.0, %v2574
        %2576 = vmatmul.f32.gmra.mxu0 %v2509
        %v2577 = vpop.f32.mrf.mxu0
        %v2578 = vadd.f32 0.0, %v2577
        %2579 = vdwg.mxu0
        %v2580 = vadd.f32 %v2483, %v2529
        %v2581 = vadd.f32 %v2484, %v2552
        %v2582 = vadd.f32 %v2485, %v2575
        %v2583 = vadd.f32 %v2486, %v2532
        %v2584 = vadd.f32 %v2487, %v2555
        %v2585 = vadd.f32 %v2488, %v2578
        %2586 = vrot.lane.b32.xlu0 %v1816, 64
        %v2587 = vpop.permute.xlu0 %2586
        %2588 = vrot.lane.b32.xlu0 %v1817, 64
        %v2589 = vpop.permute.xlu0 %2588
        %2590 = vrot.lane.b32.xlu0 %v1899, 64
        %v2591 = vpop.permute.xlu0 %2590
        %2592 = vrot.lane.b32.xlu0 %v1900, 64
        %v2593 = vpop.permute.xlu0 %2592
        %2594 = vrot.lane.b32.xlu0 %v1901, 64
        %v2595 = vpop.permute.xlu0 %2594
        %2596 = vrot.lane.b32.xlu0 %v1902, 64
        %v2597 = vpop.permute.xlu0 %2596
        %v2598 = vsel %vm1045, %v2591, %v2593
        %v2599 = vsel %vm1045, %v2593, %v2595
        %v2600 = vsel %vm1045, %v2595, %v2597
        %v2604 = vsel %vm298, %v2587, 0
        %v2606 = vsel %vm298, %v2589, 0
        %2608 = vmatpush.msra.mxu0 0.0
        %2609 = vmatpush.msra.mxu0 0.0
        %2610 = vmatpush.msra.mxu0 0.0
        %2611 = vmatpush.msra.mxu0 0.0
        %2612 = vmatpush.msra.mxu0 0.0
        %2613 = vmatpush.msra.mxu0 0.0
        %2614 = vmatpush.msra.mxu0 0.0
        %2615 = vmatpush.msra.mxu0 0.0
        %2616 = vmatpush.msra.mxu0 0.0
        %2617 = vmatpush.msra.mxu0 0.0
        %2618 = vmatpush.msra.mxu0 0.0
        %2619 = vmatpush.msra.mxu0 0.0
        %2620 = vmatpush.msra.mxu0 0.0
        %2621 = vmatpush.msra.mxu0 0.0
        %2622 = vmatpush.msra.mxu0 0.0
        %2623 = vmatpush.msra.mxu0 %v2598
        %2624 = vmatmul.f32.gmra.mxu0 %v2604
        %v2625 = vpop.f32.mrf.mxu0
        %v2626 = vadd.f32 0.0, %v2625
        %2627 = vmatmul.f32.gmra.mxu0 %v2606
        %v2628 = vpop.f32.mrf.mxu0
        %v2629 = vadd.f32 0.0, %v2628
        %2630 = vdwg.mxu0
        %2631 = vmatpush.msra.mxu0 0.0
        %2632 = vmatpush.msra.mxu0 0.0
        %2633 = vmatpush.msra.mxu0 0.0
        %2634 = vmatpush.msra.mxu0 0.0
        %2635 = vmatpush.msra.mxu0 0.0
        %2636 = vmatpush.msra.mxu0 0.0
        %2637 = vmatpush.msra.mxu0 0.0
        %2638 = vmatpush.msra.mxu0 0.0
        %2639 = vmatpush.msra.mxu0 0.0
        %2640 = vmatpush.msra.mxu0 0.0
        %2641 = vmatpush.msra.mxu0 0.0
        %2642 = vmatpush.msra.mxu0 0.0
        %2643 = vmatpush.msra.mxu0 0.0
        %2644 = vmatpush.msra.mxu0 0.0
        %2645 = vmatpush.msra.mxu0 0.0
        %2646 = vmatpush.msra.mxu0 %v2599
        %2647 = vmatmul.f32.gmra.mxu0 %v2604
        %v2648 = vpop.f32.mrf.mxu0
        %v2649 = vadd.f32 0.0, %v2648
        %2650 = vmatmul.f32.gmra.mxu0 %v2606
        %v2651 = vpop.f32.mrf.mxu0
        %v2652 = vadd.f32 0.0, %v2651
        %2653 = vdwg.mxu0
        %2654 = vmatpush.msra.mxu0 0.0
        %2655 = vmatpush.msra.mxu0 0.0
        %2656 = vmatpush.msra.mxu0 0.0
        %2657 = vmatpush.msra.mxu0 0.0
        %2658 = vmatpush.msra.mxu0 0.0
        %2659 = vmatpush.msra.mxu0 0.0
        %2660 = vmatpush.msra.mxu0 0.0
        %2661 = vmatpush.msra.mxu0 0.0
        %2662 = vmatpush.msra.mxu0 0.0
        %2663 = vmatpush.msra.mxu0 0.0
        %2664 = vmatpush.msra.mxu0 0.0
        %2665 = vmatpush.msra.mxu0 0.0
        %2666 = vmatpush.msra.mxu0 0.0
        %2667 = vmatpush.msra.mxu0 0.0
        %2668 = vmatpush.msra.mxu0 0.0
        %2669 = vmatpush.msra.mxu0 %v2600
        %2670 = vmatmul.f32.gmra.mxu0 %v2604
        %v2671 = vpop.f32.mrf.mxu0
        %v2672 = vadd.f32 0.0, %v2671
        %2673 = vmatmul.f32.gmra.mxu0 %v2606
        %v2674 = vpop.f32.mrf.mxu0
        %v2675 = vadd.f32 0.0, %v2674
        %2676 = vdwg.mxu0
        %v2677 = vadd.f32 %v2580, %v2626
        %v2678 = vadd.f32 %v2581, %v2649
        %v2679 = vadd.f32 %v2582, %v2672
        %v2680 = vadd.f32 %v2583, %v2629
        %v2681 = vadd.f32 %v2584, %v2652
        %v2682 = vadd.f32 %v2585, %v2675
        %2683 = vrot.lane.b32.xlu0 %v1816, 56
        %v2684 = vpop.permute.xlu0 %2683
        %2685 = vrot.lane.b32.xlu0 %v1817, 56
        %v2686 = vpop.permute.xlu0 %2685
        %2687 = vrot.lane.b32.xlu0 %v1899, 56
        %v2688 = vpop.permute.xlu0 %2687
        %2689 = vrot.lane.b32.xlu0 %v1900, 56
        %v2690 = vpop.permute.xlu0 %2689
        %2691 = vrot.lane.b32.xlu0 %v1901, 56
        %v2692 = vpop.permute.xlu0 %2691
        %2693 = vrot.lane.b32.xlu0 %v1902, 56
        %v2694 = vpop.permute.xlu0 %2693
        %v2695 = vsel %vm1143, %v2688, %v2690
        %v2696 = vsel %vm1143, %v2690, %v2692
        %v2697 = vsel %vm1143, %v2692, %v2694
        %v2701 = vsel %vm298, %v2684, 0
        %v2703 = vsel %vm298, %v2686, 0
        %2705 = vmatpush.msra.mxu0 0.0
        %2706 = vmatpush.msra.mxu0 0.0
        %2707 = vmatpush.msra.mxu0 0.0
        %2708 = vmatpush.msra.mxu0 0.0
        %2709 = vmatpush.msra.mxu0 0.0
        %2710 = vmatpush.msra.mxu0 0.0
        %2711 = vmatpush.msra.mxu0 0.0
        %2712 = vmatpush.msra.mxu0 0.0
        %2713 = vmatpush.msra.mxu0 0.0
        %2714 = vmatpush.msra.mxu0 0.0
        %2715 = vmatpush.msra.mxu0 0.0
        %2716 = vmatpush.msra.mxu0 0.0
        %2717 = vmatpush.msra.mxu0 0.0
        %2718 = vmatpush.msra.mxu0 0.0
        %2719 = vmatpush.msra.mxu0 0.0
        %2720 = vmatpush.msra.mxu0 %v2695
        %2721 = vmatmul.f32.gmra.mxu0 %v2701
        %v2722 = vpop.f32.mrf.mxu0
        %v2723 = vadd.f32 0.0, %v2722
        %2724 = vmatmul.f32.gmra.mxu0 %v2703
        %v2725 = vpop.f32.mrf.mxu0
        %v2726 = vadd.f32 0.0, %v2725
        %2727 = vdwg.mxu0
        %2728 = vmatpush.msra.mxu0 0.0
        %2729 = vmatpush.msra.mxu0 0.0
        %2730 = vmatpush.msra.mxu0 0.0
        %2731 = vmatpush.msra.mxu0 0.0
        %2732 = vmatpush.msra.mxu0 0.0
        %2733 = vmatpush.msra.mxu0 0.0
        %2734 = vmatpush.msra.mxu0 0.0
        %2735 = vmatpush.msra.mxu0 0.0
        %2736 = vmatpush.msra.mxu0 0.0
        %2737 = vmatpush.msra.mxu0 0.0
        %2738 = vmatpush.msra.mxu0 0.0
        %2739 = vmatpush.msra.mxu0 0.0
        %2740 = vmatpush.msra.mxu0 0.0
        %2741 = vmatpush.msra.mxu0 0.0
        %2742 = vmatpush.msra.mxu0 0.0
        %2743 = vmatpush.msra.mxu0 %v2696
        %2744 = vmatmul.f32.gmra.mxu0 %v2701
        %v2745 = vpop.f32.mrf.mxu0
        %v2746 = vadd.f32 0.0, %v2745
        %2747 = vmatmul.f32.gmra.mxu0 %v2703
        %v2748 = vpop.f32.mrf.mxu0
        %v2749 = vadd.f32 0.0, %v2748
        %2750 = vdwg.mxu0
        %2751 = vmatpush.msra.mxu0 0.0
        %2752 = vmatpush.msra.mxu0 0.0
        %2753 = vmatpush.msra.mxu0 0.0
        %2754 = vmatpush.msra.mxu0 0.0
        %2755 = vmatpush.msra.mxu0 0.0
        %2756 = vmatpush.msra.mxu0 0.0
        %2757 = vmatpush.msra.mxu0 0.0
        %2758 = vmatpush.msra.mxu0 0.0
        %2759 = vmatpush.msra.mxu0 0.0
        %2760 = vmatpush.msra.mxu0 0.0
        %2761 = vmatpush.msra.mxu0 0.0
        %2762 = vmatpush.msra.mxu0 0.0
        %2763 = vmatpush.msra.mxu0 0.0
        %2764 = vmatpush.msra.mxu0 0.0
        %2765 = vmatpush.msra.mxu0 0.0
        %2766 = vmatpush.msra.mxu0 %v2697
        %2767 = vmatmul.f32.gmra.mxu0 %v2701
        %v2768 = vpop.f32.mrf.mxu0
        %v2769 = vadd.f32 0.0, %v2768
        %2770 = vmatmul.f32.gmra.mxu0 %v2703
        %v2771 = vpop.f32.mrf.mxu0
        %v2772 = vadd.f32 0.0, %v2771
        %2773 = vdwg.mxu0
        %v2774 = vadd.f32 %v2677, %v2723
        %v2775 = vadd.f32 %v2678, %v2746
        %v2776 = vadd.f32 %v2679, %v2769
        %v2777 = vadd.f32 %v2680, %v2726
        %v2778 = vadd.f32 %v2681, %v2749
        %v2779 = vadd.f32 %v2682, %v2772
        %2780 = vrot.lane.b32.xlu0 %v1816, 48
        %v2781 = vpop.permute.xlu0 %2780
        %2782 = vrot.lane.b32.xlu0 %v1817, 48
        %v2783 = vpop.permute.xlu0 %2782
        %2784 = vrot.lane.b32.xlu0 %v1899, 48
        %v2785 = vpop.permute.xlu0 %2784
        %2786 = vrot.lane.b32.xlu0 %v1900, 48
        %v2787 = vpop.permute.xlu0 %2786
        %2788 = vrot.lane.b32.xlu0 %v1901, 48
        %v2789 = vpop.permute.xlu0 %2788
        %2790 = vrot.lane.b32.xlu0 %v1902, 48
        %v2791 = vpop.permute.xlu0 %2790
        %v2792 = vsel %vm1241, %v2785, %v2787
        %v2793 = vsel %vm1241, %v2787, %v2789
        %v2794 = vsel %vm1241, %v2789, %v2791
        %v2798 = vsel %vm298, %v2781, 0
        %v2800 = vsel %vm298, %v2783, 0
        %2802 = vmatpush.msra.mxu0 0.0
        %2803 = vmatpush.msra.mxu0 0.0
        %2804 = vmatpush.msra.mxu0 0.0
        %2805 = vmatpush.msra.mxu0 0.0
        %2806 = vmatpush.msra.mxu0 0.0
        %2807 = vmatpush.msra.mxu0 0.0
        %2808 = vmatpush.msra.mxu0 0.0
        %2809 = vmatpush.msra.mxu0 0.0
        %2810 = vmatpush.msra.mxu0 0.0
        %2811 = vmatpush.msra.mxu0 0.0
        %2812 = vmatpush.msra.mxu0 0.0
        %2813 = vmatpush.msra.mxu0 0.0
        %2814 = vmatpush.msra.mxu0 0.0
        %2815 = vmatpush.msra.mxu0 0.0
        %2816 = vmatpush.msra.mxu0 0.0
        %2817 = vmatpush.msra.mxu0 %v2792
        %2818 = vmatmul.f32.gmra.mxu0 %v2798
        %v2819 = vpop.f32.mrf.mxu0
        %v2820 = vadd.f32 0.0, %v2819
        %2821 = vmatmul.f32.gmra.mxu0 %v2800
        %v2822 = vpop.f32.mrf.mxu0
        %v2823 = vadd.f32 0.0, %v2822
        %2824 = vdwg.mxu0
        %2825 = vmatpush.msra.mxu0 0.0
        %2826 = vmatpush.msra.mxu0 0.0
        %2827 = vmatpush.msra.mxu0 0.0
        %2828 = vmatpush.msra.mxu0 0.0
        %2829 = vmatpush.msra.mxu0 0.0
        %2830 = vmatpush.msra.mxu0 0.0
        %2831 = vmatpush.msra.mxu0 0.0
        %2832 = vmatpush.msra.mxu0 0.0
        %2833 = vmatpush.msra.mxu0 0.0
        %2834 = vmatpush.msra.mxu0 0.0
        %2835 = vmatpush.msra.mxu0 0.0
        %2836 = vmatpush.msra.mxu0 0.0
        %2837 = vmatpush.msra.mxu0 0.0
        %2838 = vmatpush.msra.mxu0 0.0
        %2839 = vmatpush.msra.mxu0 0.0
        %2840 = vmatpush.msra.mxu0 %v2793
        %2841 = vmatmul.f32.gmra.mxu0 %v2798
        %v2842 = vpop.f32.mrf.mxu0
        %v2843 = vadd.f32 0.0, %v2842
        %2844 = vmatmul.f32.gmra.mxu0 %v2800
        %v2845 = vpop.f32.mrf.mxu0
        %v2846 = vadd.f32 0.0, %v2845
        %2847 = vdwg.mxu0
        %2848 = vmatpush.msra.mxu0 0.0
        %2849 = vmatpush.msra.mxu0 0.0
        %2850 = vmatpush.msra.mxu0 0.0
        %2851 = vmatpush.msra.mxu0 0.0
        %2852 = vmatpush.msra.mxu0 0.0
        %2853 = vmatpush.msra.mxu0 0.0
        %2854 = vmatpush.msra.mxu0 0.0
        %2855 = vmatpush.msra.mxu0 0.0
        %2856 = vmatpush.msra.mxu0 0.0
        %2857 = vmatpush.msra.mxu0 0.0
        %2858 = vmatpush.msra.mxu0 0.0
        %2859 = vmatpush.msra.mxu0 0.0
        %2860 = vmatpush.msra.mxu0 0.0
        %2861 = vmatpush.msra.mxu0 0.0
        %2862 = vmatpush.msra.mxu0 0.0
        %2863 = vmatpush.msra.mxu0 %v2794
        %2864 = vmatmul.f32.gmra.mxu0 %v2798
        %v2865 = vpop.f32.mrf.mxu0
        %v2866 = vadd.f32 0.0, %v2865
        %2867 = vmatmul.f32.gmra.mxu0 %v2800
        %v2868 = vpop.f32.mrf.mxu0
        %v2869 = vadd.f32 0.0, %v2868
        %2870 = vdwg.mxu0
        %v2871 = vadd.f32 %v2774, %v2820
        %v2872 = vadd.f32 %v2775, %v2843
        %v2873 = vadd.f32 %v2776, %v2866
        %v2874 = vadd.f32 %v2777, %v2823
        %v2875 = vadd.f32 %v2778, %v2846
        %v2876 = vadd.f32 %v2779, %v2869
        %2877 = vrot.lane.b32.xlu0 %v1816, 40
        %v2878 = vpop.permute.xlu0 %2877
        %2879 = vrot.lane.b32.xlu0 %v1817, 40
        %v2880 = vpop.permute.xlu0 %2879
        %2881 = vrot.lane.b32.xlu0 %v1899, 40
        %v2882 = vpop.permute.xlu0 %2881
        %2883 = vrot.lane.b32.xlu0 %v1900, 40
        %v2884 = vpop.permute.xlu0 %2883
        %2885 = vrot.lane.b32.xlu0 %v1901, 40
        %v2886 = vpop.permute.xlu0 %2885
        %2887 = vrot.lane.b32.xlu0 %v1902, 40
        %v2888 = vpop.permute.xlu0 %2887
        %v2889 = vsel %vm1339, %v2882, %v2884
        %v2890 = vsel %vm1339, %v2884, %v2886
        %v2891 = vsel %vm1339, %v2886, %v2888
        %v2895 = vsel %vm298, %v2878, 0
        %v2897 = vsel %vm298, %v2880, 0
        %2899 = vmatpush.msra.mxu0 0.0
        %2900 = vmatpush.msra.mxu0 0.0
        %2901 = vmatpush.msra.mxu0 0.0
        %2902 = vmatpush.msra.mxu0 0.0
        %2903 = vmatpush.msra.mxu0 0.0
        %2904 = vmatpush.msra.mxu0 0.0
        %2905 = vmatpush.msra.mxu0 0.0
        %2906 = vmatpush.msra.mxu0 0.0
        %2907 = vmatpush.msra.mxu0 0.0
        %2908 = vmatpush.msra.mxu0 0.0
        %2909 = vmatpush.msra.mxu0 0.0
        %2910 = vmatpush.msra.mxu0 0.0
        %2911 = vmatpush.msra.mxu0 0.0
        %2912 = vmatpush.msra.mxu0 0.0
        %2913 = vmatpush.msra.mxu0 0.0
        %2914 = vmatpush.msra.mxu0 %v2889
        %2915 = vmatmul.f32.gmra.mxu0 %v2895
        %v2916 = vpop.f32.mrf.mxu0
        %v2917 = vadd.f32 0.0, %v2916
        %2918 = vmatmul.f32.gmra.mxu0 %v2897
        %v2919 = vpop.f32.mrf.mxu0
        %v2920 = vadd.f32 0.0, %v2919
        %2921 = vdwg.mxu0
        %2922 = vmatpush.msra.mxu0 0.0
        %2923 = vmatpush.msra.mxu0 0.0
        %2924 = vmatpush.msra.mxu0 0.0
        %2925 = vmatpush.msra.mxu0 0.0
        %2926 = vmatpush.msra.mxu0 0.0
        %2927 = vmatpush.msra.mxu0 0.0
        %2928 = vmatpush.msra.mxu0 0.0
        %2929 = vmatpush.msra.mxu0 0.0
        %2930 = vmatpush.msra.mxu0 0.0
        %2931 = vmatpush.msra.mxu0 0.0
        %2932 = vmatpush.msra.mxu0 0.0
        %2933 = vmatpush.msra.mxu0 0.0
        %2934 = vmatpush.msra.mxu0 0.0
        %2935 = vmatpush.msra.mxu0 0.0
        %2936 = vmatpush.msra.mxu0 0.0
        %2937 = vmatpush.msra.mxu0 %v2890
        %2938 = vmatmul.f32.gmra.mxu0 %v2895
        %v2939 = vpop.f32.mrf.mxu0
        %v2940 = vadd.f32 0.0, %v2939
        %2941 = vmatmul.f32.gmra.mxu0 %v2897
        %v2942 = vpop.f32.mrf.mxu0
        %v2943 = vadd.f32 0.0, %v2942
        %2944 = vdwg.mxu0
        %2945 = vmatpush.msra.mxu0 0.0
        %2946 = vmatpush.msra.mxu0 0.0
        %2947 = vmatpush.msra.mxu0 0.0
        %2948 = vmatpush.msra.mxu0 0.0
        %2949 = vmatpush.msra.mxu0 0.0
        %2950 = vmatpush.msra.mxu0 0.0
        %2951 = vmatpush.msra.mxu0 0.0
        %2952 = vmatpush.msra.mxu0 0.0
        %2953 = vmatpush.msra.mxu0 0.0
        %2954 = vmatpush.msra.mxu0 0.0
        %2955 = vmatpush.msra.mxu0 0.0
        %2956 = vmatpush.msra.mxu0 0.0
        %2957 = vmatpush.msra.mxu0 0.0
        %2958 = vmatpush.msra.mxu0 0.0
        %2959 = vmatpush.msra.mxu0 0.0
        %2960 = vmatpush.msra.mxu0 %v2891
        %2961 = vmatmul.f32.gmra.mxu0 %v2895
        %v2962 = vpop.f32.mrf.mxu0
        %v2963 = vadd.f32 0.0, %v2962
        %2964 = vmatmul.f32.gmra.mxu0 %v2897
        %v2965 = vpop.f32.mrf.mxu0
        %v2966 = vadd.f32 0.0, %v2965
        %2967 = vdwg.mxu0
        %v2968 = vadd.f32 %v2871, %v2917
        %v2969 = vadd.f32 %v2872, %v2940
        %v2970 = vadd.f32 %v2873, %v2963
        %v2971 = vadd.f32 %v2874, %v2920
        %v2972 = vadd.f32 %v2875, %v2943
        %v2973 = vadd.f32 %v2876, %v2966
        %2974 = vrot.lane.b32.xlu0 %v1816, 32
        %v2975 = vpop.permute.xlu0 %2974
        %2976 = vrot.lane.b32.xlu0 %v1817, 32
        %v2977 = vpop.permute.xlu0 %2976
        %2978 = vrot.lane.b32.xlu0 %v1899, 32
        %v2979 = vpop.permute.xlu0 %2978
        %2980 = vrot.lane.b32.xlu0 %v1900, 32
        %v2981 = vpop.permute.xlu0 %2980
        %2982 = vrot.lane.b32.xlu0 %v1901, 32
        %v2983 = vpop.permute.xlu0 %2982
        %2984 = vrot.lane.b32.xlu0 %v1902, 32
        %v2985 = vpop.permute.xlu0 %2984
        %v2986 = vsel %vm1437, %v2979, %v2981
        %v2987 = vsel %vm1437, %v2981, %v2983
        %v2988 = vsel %vm1437, %v2983, %v2985
        %v2992 = vsel %vm298, %v2975, 0
        %v2994 = vsel %vm298, %v2977, 0
        %2996 = vmatpush.msra.mxu0 0.0
        %2997 = vmatpush.msra.mxu0 0.0
        %2998 = vmatpush.msra.mxu0 0.0
        %2999 = vmatpush.msra.mxu0 0.0
        %3000 = vmatpush.msra.mxu0 0.0
        %3001 = vmatpush.msra.mxu0 0.0
        %3002 = vmatpush.msra.mxu0 0.0
        %3003 = vmatpush.msra.mxu0 0.0
        %3004 = vmatpush.msra.mxu0 0.0
        %3005 = vmatpush.msra.mxu0 0.0
        %3006 = vmatpush.msra.mxu0 0.0
        %3007 = vmatpush.msra.mxu0 0.0
        %3008 = vmatpush.msra.mxu0 0.0
        %3009 = vmatpush.msra.mxu0 0.0
        %3010 = vmatpush.msra.mxu0 0.0
        %3011 = vmatpush.msra.mxu0 %v2986
        %3012 = vmatmul.f32.gmra.mxu0 %v2992
        %v3013 = vpop.f32.mrf.mxu0
        %v3014 = vadd.f32 0.0, %v3013
        %3015 = vmatmul.f32.gmra.mxu0 %v2994
        %v3016 = vpop.f32.mrf.mxu0
        %v3017 = vadd.f32 0.0, %v3016
        %3018 = vdwg.mxu0
        %3019 = vmatpush.msra.mxu0 0.0
        %3020 = vmatpush.msra.mxu0 0.0
        %3021 = vmatpush.msra.mxu0 0.0
        %3022 = vmatpush.msra.mxu0 0.0
        %3023 = vmatpush.msra.mxu0 0.0
        %3024 = vmatpush.msra.mxu0 0.0
        %3025 = vmatpush.msra.mxu0 0.0
        %3026 = vmatpush.msra.mxu0 0.0
        %3027 = vmatpush.msra.mxu0 0.0
        %3028 = vmatpush.msra.mxu0 0.0
        %3029 = vmatpush.msra.mxu0 0.0
        %3030 = vmatpush.msra.mxu0 0.0
        %3031 = vmatpush.msra.mxu0 0.0
        %3032 = vmatpush.msra.mxu0 0.0
        %3033 = vmatpush.msra.mxu0 0.0
        %3034 = vmatpush.msra.mxu0 %v2987
        %3035 = vmatmul.f32.gmra.mxu0 %v2992
        %v3036 = vpop.f32.mrf.mxu0
        %v3037 = vadd.f32 0.0, %v3036
        %3038 = vmatmul.f32.gmra.mxu0 %v2994
        %v3039 = vpop.f32.mrf.mxu0
        %v3040 = vadd.f32 0.0, %v3039
        %3041 = vdwg.mxu0
        %3042 = vmatpush.msra.mxu0 0.0
        %3043 = vmatpush.msra.mxu0 0.0
        %3044 = vmatpush.msra.mxu0 0.0
        %3045 = vmatpush.msra.mxu0 0.0
        %3046 = vmatpush.msra.mxu0 0.0
        %3047 = vmatpush.msra.mxu0 0.0
        %3048 = vmatpush.msra.mxu0 0.0
        %3049 = vmatpush.msra.mxu0 0.0
        %3050 = vmatpush.msra.mxu0 0.0
        %3051 = vmatpush.msra.mxu0 0.0
        %3052 = vmatpush.msra.mxu0 0.0
        %3053 = vmatpush.msra.mxu0 0.0
        %3054 = vmatpush.msra.mxu0 0.0
        %3055 = vmatpush.msra.mxu0 0.0
        %3056 = vmatpush.msra.mxu0 0.0
        %3057 = vmatpush.msra.mxu0 %v2988
        %3058 = vmatmul.f32.gmra.mxu0 %v2992
        %v3059 = vpop.f32.mrf.mxu0
        %v3060 = vadd.f32 0.0, %v3059
        %3061 = vmatmul.f32.gmra.mxu0 %v2994
        %v3062 = vpop.f32.mrf.mxu0
        %v3063 = vadd.f32 0.0, %v3062
        %3064 = vdwg.mxu0
        %v3065 = vadd.f32 %v2968, %v3014
        %v3066 = vadd.f32 %v2969, %v3037
        %v3067 = vadd.f32 %v2970, %v3060
        %v3068 = vadd.f32 %v2971, %v3017
        %v3069 = vadd.f32 %v2972, %v3040
        %v3070 = vadd.f32 %v2973, %v3063
        %3071 = vrot.lane.b32.xlu0 %v1816, 24
        %v3072 = vpop.permute.xlu0 %3071
        %3073 = vrot.lane.b32.xlu0 %v1817, 24
        %v3074 = vpop.permute.xlu0 %3073
        %3075 = vrot.lane.b32.xlu0 %v1899, 24
        %v3076 = vpop.permute.xlu0 %3075
        %3077 = vrot.lane.b32.xlu0 %v1900, 24
        %v3078 = vpop.permute.xlu0 %3077
        %3079 = vrot.lane.b32.xlu0 %v1901, 24
        %v3080 = vpop.permute.xlu0 %3079
        %3081 = vrot.lane.b32.xlu0 %v1902, 24
        %v3082 = vpop.permute.xlu0 %3081
        %v3083 = vsel %vm1535, %v3076, %v3078
        %v3084 = vsel %vm1535, %v3078, %v3080
        %v3085 = vsel %vm1535, %v3080, %v3082
        %v3089 = vsel %vm298, %v3072, 0
        %v3091 = vsel %vm298, %v3074, 0
        %3093 = vmatpush.msra.mxu0 0.0
        %3094 = vmatpush.msra.mxu0 0.0
        %3095 = vmatpush.msra.mxu0 0.0
        %3096 = vmatpush.msra.mxu0 0.0
        %3097 = vmatpush.msra.mxu0 0.0
        %3098 = vmatpush.msra.mxu0 0.0
        %3099 = vmatpush.msra.mxu0 0.0
        %3100 = vmatpush.msra.mxu0 0.0
        %3101 = vmatpush.msra.mxu0 0.0
        %3102 = vmatpush.msra.mxu0 0.0
        %3103 = vmatpush.msra.mxu0 0.0
        %3104 = vmatpush.msra.mxu0 0.0
        %3105 = vmatpush.msra.mxu0 0.0
        %3106 = vmatpush.msra.mxu0 0.0
        %3107 = vmatpush.msra.mxu0 0.0
        %3108 = vmatpush.msra.mxu0 %v3083
        %3109 = vmatmul.f32.gmra.mxu0 %v3089
        %v3110 = vpop.f32.mrf.mxu0
        %v3111 = vadd.f32 0.0, %v3110
        %3112 = vmatmul.f32.gmra.mxu0 %v3091
        %v3113 = vpop.f32.mrf.mxu0
        %v3114 = vadd.f32 0.0, %v3113
        %3115 = vdwg.mxu0
        %3116 = vmatpush.msra.mxu0 0.0
        %3117 = vmatpush.msra.mxu0 0.0
        %3118 = vmatpush.msra.mxu0 0.0
        %3119 = vmatpush.msra.mxu0 0.0
        %3120 = vmatpush.msra.mxu0 0.0
        %3121 = vmatpush.msra.mxu0 0.0
        %3122 = vmatpush.msra.mxu0 0.0
        %3123 = vmatpush.msra.mxu0 0.0
        %3124 = vmatpush.msra.mxu0 0.0
        %3125 = vmatpush.msra.mxu0 0.0
        %3126 = vmatpush.msra.mxu0 0.0
        %3127 = vmatpush.msra.mxu0 0.0
        %3128 = vmatpush.msra.mxu0 0.0
        %3129 = vmatpush.msra.mxu0 0.0
        %3130 = vmatpush.msra.mxu0 0.0
        %3131 = vmatpush.msra.mxu0 %v3084
        %3132 = vmatmul.f32.gmra.mxu0 %v3089
        %v3133 = vpop.f32.mrf.mxu0
        %v3134 = vadd.f32 0.0, %v3133
        %3135 = vmatmul.f32.gmra.mxu0 %v3091
        %v3136 = vpop.f32.mrf.mxu0
        %v3137 = vadd.f32 0.0, %v3136
        %3138 = vdwg.mxu0
        %3139 = vmatpush.msra.mxu0 0.0
        %3140 = vmatpush.msra.mxu0 0.0
        %3141 = vmatpush.msra.mxu0 0.0
        %3142 = vmatpush.msra.mxu0 0.0
        %3143 = vmatpush.msra.mxu0 0.0
        %3144 = vmatpush.msra.mxu0 0.0
        %3145 = vmatpush.msra.mxu0 0.0
        %3146 = vmatpush.msra.mxu0 0.0
        %3147 = vmatpush.msra.mxu0 0.0
        %3148 = vmatpush.msra.mxu0 0.0
        %3149 = vmatpush.msra.mxu0 0.0
        %3150 = vmatpush.msra.mxu0 0.0
        %3151 = vmatpush.msra.mxu0 0.0
        %3152 = vmatpush.msra.mxu0 0.0
        %3153 = vmatpush.msra.mxu0 0.0
        %3154 = vmatpush.msra.mxu0 %v3085
        %3155 = vmatmul.f32.gmra.mxu0 %v3089
        %v3156 = vpop.f32.mrf.mxu0
        %v3157 = vadd.f32 0.0, %v3156
        %3158 = vmatmul.f32.gmra.mxu0 %v3091
        %v3159 = vpop.f32.mrf.mxu0
        %v3160 = vadd.f32 0.0, %v3159
        %3161 = vdwg.mxu0
        %v3162 = vadd.f32 %v3065, %v3111
        %v3163 = vadd.f32 %v3066, %v3134
        %v3164 = vadd.f32 %v3067, %v3157
        %v3165 = vadd.f32 %v3068, %v3114
        %v3166 = vadd.f32 %v3069, %v3137
        %v3167 = vadd.f32 %v3070, %v3160
        %3168 = vrot.lane.b32.xlu0 %v1816, 16
        %v3169 = vpop.permute.xlu0 %3168
        %3170 = vrot.lane.b32.xlu0 %v1817, 16
        %v3171 = vpop.permute.xlu0 %3170
        %3172 = vrot.lane.b32.xlu0 %v1899, 16
        %v3173 = vpop.permute.xlu0 %3172
        %3174 = vrot.lane.b32.xlu0 %v1900, 16
        %v3175 = vpop.permute.xlu0 %3174
        %3176 = vrot.lane.b32.xlu0 %v1901, 16
        %v3177 = vpop.permute.xlu0 %3176
        %3178 = vrot.lane.b32.xlu0 %v1902, 16
        %v3179 = vpop.permute.xlu0 %3178
        %v3180 = vsel %vm1633, %v3173, %v3175
        %v3181 = vsel %vm1633, %v3175, %v3177
        %v3182 = vsel %vm1633, %v3177, %v3179
        %v3186 = vsel %vm298, %v3169, 0
        %v3188 = vsel %vm298, %v3171, 0
        %3190 = vmatpush.msra.mxu0 0.0
        %3191 = vmatpush.msra.mxu0 0.0
        %3192 = vmatpush.msra.mxu0 0.0
        %3193 = vmatpush.msra.mxu0 0.0
        %3194 = vmatpush.msra.mxu0 0.0
        %3195 = vmatpush.msra.mxu0 0.0
        %3196 = vmatpush.msra.mxu0 0.0
        %3197 = vmatpush.msra.mxu0 0.0
        %3198 = vmatpush.msra.mxu0 0.0
        %3199 = vmatpush.msra.mxu0 0.0
        %3200 = vmatpush.msra.mxu0 0.0
        %3201 = vmatpush.msra.mxu0 0.0
        %3202 = vmatpush.msra.mxu0 0.0
        %3203 = vmatpush.msra.mxu0 0.0
        %3204 = vmatpush.msra.mxu0 0.0
        %3205 = vmatpush.msra.mxu0 %v3180
        %3206 = vmatmul.f32.gmra.mxu0 %v3186
        %v3207 = vpop.f32.mrf.mxu0
        %v3208 = vadd.f32 0.0, %v3207
        %3209 = vmatmul.f32.gmra.mxu0 %v3188
        %v3210 = vpop.f32.mrf.mxu0
        %v3211 = vadd.f32 0.0, %v3210
        %3212 = vdwg.mxu0
        %3213 = vmatpush.msra.mxu0 0.0
        %3214 = vmatpush.msra.mxu0 0.0
        %3215 = vmatpush.msra.mxu0 0.0
        %3216 = vmatpush.msra.mxu0 0.0
        %3217 = vmatpush.msra.mxu0 0.0
        %3218 = vmatpush.msra.mxu0 0.0
        %3219 = vmatpush.msra.mxu0 0.0
        %3220 = vmatpush.msra.mxu0 0.0
        %3221 = vmatpush.msra.mxu0 0.0
        %3222 = vmatpush.msra.mxu0 0.0
        %3223 = vmatpush.msra.mxu0 0.0
        %3224 = vmatpush.msra.mxu0 0.0
        %3225 = vmatpush.msra.mxu0 0.0
        %3226 = vmatpush.msra.mxu0 0.0
        %3227 = vmatpush.msra.mxu0 0.0
        %3228 = vmatpush.msra.mxu0 %v3181
        %3229 = vmatmul.f32.gmra.mxu0 %v3186
        %v3230 = vpop.f32.mrf.mxu0
        %v3231 = vadd.f32 0.0, %v3230
        %3232 = vmatmul.f32.gmra.mxu0 %v3188
        %v3233 = vpop.f32.mrf.mxu0
        %v3234 = vadd.f32 0.0, %v3233
        %3235 = vdwg.mxu0
        %3236 = vmatpush.msra.mxu0 0.0
        %3237 = vmatpush.msra.mxu0 0.0
        %3238 = vmatpush.msra.mxu0 0.0
        %3239 = vmatpush.msra.mxu0 0.0
        %3240 = vmatpush.msra.mxu0 0.0
        %3241 = vmatpush.msra.mxu0 0.0
        %3242 = vmatpush.msra.mxu0 0.0
        %3243 = vmatpush.msra.mxu0 0.0
        %3244 = vmatpush.msra.mxu0 0.0
        %3245 = vmatpush.msra.mxu0 0.0
        %3246 = vmatpush.msra.mxu0 0.0
        %3247 = vmatpush.msra.mxu0 0.0
        %3248 = vmatpush.msra.mxu0 0.0
        %3249 = vmatpush.msra.mxu0 0.0
        %3250 = vmatpush.msra.mxu0 0.0
        %3251 = vmatpush.msra.mxu0 %v3182
        %3252 = vmatmul.f32.gmra.mxu0 %v3186
        %v3253 = vpop.f32.mrf.mxu0
        %v3254 = vadd.f32 0.0, %v3253
        %3255 = vmatmul.f32.gmra.mxu0 %v3188
        %v3256 = vpop.f32.mrf.mxu0
        %v3257 = vadd.f32 0.0, %v3256
        %3258 = vdwg.mxu0
        %v3259 = vadd.f32 %v3162, %v3208
        %v3260 = vadd.f32 %v3163, %v3231
        %v3261 = vadd.f32 %v3164, %v3254
        %v3262 = vadd.f32 %v3165, %v3211
        %v3263 = vadd.f32 %v3166, %v3234
        %v3264 = vadd.f32 %v3167, %v3257
        %3265 = vrot.lane.b32.xlu0 %v1816, 8
        %v3266 = vpop.permute.xlu0 %3265
        %3267 = vrot.lane.b32.xlu0 %v1817, 8
        %v3268 = vpop.permute.xlu0 %3267
        %3269 = vrot.lane.b32.xlu0 %v1899, 8
        %v3270 = vpop.permute.xlu0 %3269
        %3271 = vrot.lane.b32.xlu0 %v1900, 8
        %v3272 = vpop.permute.xlu0 %3271
        %3273 = vrot.lane.b32.xlu0 %v1901, 8
        %v3274 = vpop.permute.xlu0 %3273
        %3275 = vrot.lane.b32.xlu0 %v1902, 8
        %v3276 = vpop.permute.xlu0 %3275
        %v3277 = vsel %vm298, %v3270, %v3272
        %v3278 = vsel %vm298, %v3272, %v3274
        %v3279 = vsel %vm298, %v3274, %v3276
        %v3283 = vsel %vm298, %v3266, 0
        %v3285 = vsel %vm298, %v3268, 0
        %3287 = vmatpush.msra.mxu0 0.0
        %3288 = vmatpush.msra.mxu0 0.0
        %3289 = vmatpush.msra.mxu0 0.0
        %3290 = vmatpush.msra.mxu0 0.0
        %3291 = vmatpush.msra.mxu0 0.0
        %3292 = vmatpush.msra.mxu0 0.0
        %3293 = vmatpush.msra.mxu0 0.0
        %3294 = vmatpush.msra.mxu0 0.0
        %3295 = vmatpush.msra.mxu0 0.0
        %3296 = vmatpush.msra.mxu0 0.0
        %3297 = vmatpush.msra.mxu0 0.0
        %3298 = vmatpush.msra.mxu0 0.0
        %3299 = vmatpush.msra.mxu0 0.0
        %3300 = vmatpush.msra.mxu0 0.0
        %3301 = vmatpush.msra.mxu0 0.0
        %3302 = vmatpush.msra.mxu0 %v3277
        %3303 = vmatmul.f32.gmra.mxu0 %v3283
        %v3304 = vpop.f32.mrf.mxu0
        %v3305 = vadd.f32 0.0, %v3304
        %3306 = vmatmul.f32.gmra.mxu0 %v3285
        %v3307 = vpop.f32.mrf.mxu0
        %v3308 = vadd.f32 0.0, %v3307
        %3309 = vdwg.mxu0
        %3310 = vmatpush.msra.mxu0 0.0
        %3311 = vmatpush.msra.mxu0 0.0
        %3312 = vmatpush.msra.mxu0 0.0
        %3313 = vmatpush.msra.mxu0 0.0
        %3314 = vmatpush.msra.mxu0 0.0
        %3315 = vmatpush.msra.mxu0 0.0
        %3316 = vmatpush.msra.mxu0 0.0
        %3317 = vmatpush.msra.mxu0 0.0
        %3318 = vmatpush.msra.mxu0 0.0
        %3319 = vmatpush.msra.mxu0 0.0
        %3320 = vmatpush.msra.mxu0 0.0
        %3321 = vmatpush.msra.mxu0 0.0
        %3322 = vmatpush.msra.mxu0 0.0
        %3323 = vmatpush.msra.mxu0 0.0
        %3324 = vmatpush.msra.mxu0 0.0
        %3325 = vmatpush.msra.mxu0 %v3278
        %3326 = vmatmul.f32.gmra.mxu0 %v3283
        %v3327 = vpop.f32.mrf.mxu0
        %v3328 = vadd.f32 0.0, %v3327
        %3329 = vmatmul.f32.gmra.mxu0 %v3285
        %v3330 = vpop.f32.mrf.mxu0
        %v3331 = vadd.f32 0.0, %v3330
        %3332 = vdwg.mxu0
        %3333 = vmatpush.msra.mxu0 0.0
        %3334 = vmatpush.msra.mxu0 0.0
        %3335 = vmatpush.msra.mxu0 0.0
        %3336 = vmatpush.msra.mxu0 0.0
        %3337 = vmatpush.msra.mxu0 0.0
        %3338 = vmatpush.msra.mxu0 0.0
        %3339 = vmatpush.msra.mxu0 0.0
        %3340 = vmatpush.msra.mxu0 0.0
        %3341 = vmatpush.msra.mxu0 0.0
        %3342 = vmatpush.msra.mxu0 0.0
        %3343 = vmatpush.msra.mxu0 0.0
        %3344 = vmatpush.msra.mxu0 0.0
        %3345 = vmatpush.msra.mxu0 0.0
        %3346 = vmatpush.msra.mxu0 0.0
        %3347 = vmatpush.msra.mxu0 0.0
        %3348 = vmatpush.msra.mxu0 %v3279
        %3349 = vmatmul.f32.gmra.mxu0 %v3283
        %v3350 = vpop.f32.mrf.mxu0
        %v3351 = vadd.f32 0.0, %v3350
        %3352 = vmatmul.f32.gmra.mxu0 %v3285
        %v3353 = vpop.f32.mrf.mxu0
        %v3354 = vadd.f32 0.0, %v3353
        %3355 = vdwg.mxu0
        %v3356 = vadd.f32 %v3259, %v3305
        %v3357 = vadd.f32 %v3260, %v3328
        %v3358 = vadd.f32 %v3261, %v3351
        %v3359 = vadd.f32 %v3262, %v3308
        %v3360 = vadd.f32 %v3263, %v3331
        %v3361 = vadd.f32 %v3264, %v3354
        %v3362 = vld [vmem:[#allocation3 + $0x10] sm:$0xff]
        %v3363 = vld [vmem:[#allocation3 + $0x30] sm:$0xff]
        %v3365 = vsel %vm298, %v3362, 0
        %v3368 = vsel %vm298, %v3363, 0
        %3370 = vmatpush.msra.mxu0 0.0
        %3371 = vmatpush.msra.mxu0 0.0
        %3372 = vmatpush.msra.mxu0 0.0
        %3373 = vmatpush.msra.mxu0 0.0
        %3374 = vmatpush.msra.mxu0 0.0
        %3375 = vmatpush.msra.mxu0 0.0
        %3376 = vmatpush.msra.mxu0 0.0
        %3377 = vmatpush.msra.mxu0 0.0
        %3378 = vmatpush.msra.mxu0 0.0
        %3379 = vmatpush.msra.mxu0 0.0
        %3380 = vmatpush.msra.mxu0 0.0
        %3381 = vmatpush.msra.mxu0 0.0
        %3382 = vmatpush.msra.mxu0 0.0
        %3383 = vmatpush.msra.mxu0 0.0
        %3384 = vmatpush.msra.mxu0 0.0
        %3385 = vmatpush.msra.mxu0 %v1900
        %3386 = vmatmul.f32.gmra.mxu0 %v3365
        %v3387 = vpop.f32.mrf.mxu0
        %v3388 = vadd.f32 0.0, %v3387
        %3389 = vmatmul.f32.gmra.mxu0 %v3368
        %v3390 = vpop.f32.mrf.mxu0
        %v3391 = vadd.f32 0.0, %v3390
        %3392 = vdwg.mxu0
        %3393 = vmatpush.msra.mxu0 0.0
        %3394 = vmatpush.msra.mxu0 0.0
        %3395 = vmatpush.msra.mxu0 0.0
        %3396 = vmatpush.msra.mxu0 0.0
        %3397 = vmatpush.msra.mxu0 0.0
        %3398 = vmatpush.msra.mxu0 0.0
        %3399 = vmatpush.msra.mxu0 0.0
        %3400 = vmatpush.msra.mxu0 0.0
        %3401 = vmatpush.msra.mxu0 0.0
        %3402 = vmatpush.msra.mxu0 0.0
        %3403 = vmatpush.msra.mxu0 0.0
        %3404 = vmatpush.msra.mxu0 0.0
        %3405 = vmatpush.msra.mxu0 0.0
        %3406 = vmatpush.msra.mxu0 0.0
        %3407 = vmatpush.msra.mxu0 0.0
        %3408 = vmatpush.msra.mxu0 %v1901
        %3409 = vmatmul.f32.gmra.mxu0 %v3365
        %v3410 = vpop.f32.mrf.mxu0
        %v3411 = vadd.f32 0.0, %v3410
        %3412 = vmatmul.f32.gmra.mxu0 %v3368
        %v3413 = vpop.f32.mrf.mxu0
        %v3414 = vadd.f32 0.0, %v3413
        %3415 = vdwg.mxu0
        %3416 = vmatpush.msra.mxu0 0.0
        %3417 = vmatpush.msra.mxu0 0.0
        %3418 = vmatpush.msra.mxu0 0.0
        %3419 = vmatpush.msra.mxu0 0.0
        %3420 = vmatpush.msra.mxu0 0.0
        %3421 = vmatpush.msra.mxu0 0.0
        %3422 = vmatpush.msra.mxu0 0.0
        %3423 = vmatpush.msra.mxu0 0.0
        %3424 = vmatpush.msra.mxu0 0.0
        %3425 = vmatpush.msra.mxu0 0.0
        %3426 = vmatpush.msra.mxu0 0.0
        %3427 = vmatpush.msra.mxu0 0.0
        %3428 = vmatpush.msra.mxu0 0.0
        %3429 = vmatpush.msra.mxu0 0.0
        %3430 = vmatpush.msra.mxu0 0.0
        %3431 = vmatpush.msra.mxu0 %v1902
        %3432 = vmatmul.f32.gmra.mxu0 %v3365
        %v3433 = vpop.f32.mrf.mxu0
        %v3434 = vadd.f32 0.0, %v3433
        %3435 = vmatmul.f32.gmra.mxu0 %v3368
        %v3436 = vpop.f32.mrf.mxu0
        %v3437 = vadd.f32 0.0, %v3436
        %3438 = vdwg.mxu0
        %v3439 = vadd.f32 %v3356, %v3388
        %v3440 = vadd.f32 %v3357, %v3411
        %v3441 = vadd.f32 %v3358, %v3434
        %v3442 = vadd.f32 %v3359, %v3391
        %v3443 = vadd.f32 %v3360, %v3414
        %v3444 = vadd.f32 %v3361, %v3437
        %v3445 = vld [vmem:[#allocation2 + $0x10] sm:$0xff]
        %v3446 = vld [vmem:[#allocation2 + $0x18] sm:$0xff]
        %v3447 = vld [vmem:[#allocation2 + $0x20] sm:$0xff]
        %v3448 = vld [vmem:[#allocation2 + $0x28] sm:$0xff]
        %3449 = vrot.lane.b32.xlu0 %v3362, 120
        %v3450 = vpop.permute.xlu0 %3449
        %3451 = vrot.lane.b32.xlu0 %v3363, 120
        %v3452 = vpop.permute.xlu0 %3451
        %3457 = vrot.lane.b32.xlu0 %v3445, 120
        %v3458 = vpop.permute.xlu0 %3457
        %3459 = vrot.lane.b32.xlu0 %v3446, 120
        %v3460 = vpop.permute.xlu0 %3459
        %3461 = vrot.lane.b32.xlu0 %v3447, 120
        %v3462 = vpop.permute.xlu0 %3461
        %3463 = vrot.lane.b32.xlu0 %v3448, 120
        %v3464 = vpop.permute.xlu0 %3463
        %v3465 = vsel %vm291, %v3458, %v3460
        %v3466 = vsel %vm291, %v3460, %v3462
        %v3467 = vsel %vm291, %v3462, %v3464
        %v3471 = vsel %vm298, %v3450, 0
        %v3473 = vsel %vm298, %v3452, 0
        %3475 = vmatpush.msra.mxu0 0.0
        %3476 = vmatpush.msra.mxu0 0.0
        %3477 = vmatpush.msra.mxu0 0.0
        %3478 = vmatpush.msra.mxu0 0.0
        %3479 = vmatpush.msra.mxu0 0.0
        %3480 = vmatpush.msra.mxu0 0.0
        %3481 = vmatpush.msra.mxu0 0.0
        %3482 = vmatpush.msra.mxu0 0.0
        %3483 = vmatpush.msra.mxu0 0.0
        %3484 = vmatpush.msra.mxu0 0.0
        %3485 = vmatpush.msra.mxu0 0.0
        %3486 = vmatpush.msra.mxu0 0.0
        %3487 = vmatpush.msra.mxu0 0.0
        %3488 = vmatpush.msra.mxu0 0.0
        %3489 = vmatpush.msra.mxu0 0.0
        %3490 = vmatpush.msra.mxu0 %v3465
        %3491 = vmatmul.f32.gmra.mxu0 %v3471
        %v3492 = vpop.f32.mrf.mxu0
        %v3493 = vadd.f32 0.0, %v3492
        %3494 = vmatmul.f32.gmra.mxu0 %v3473
        %v3495 = vpop.f32.mrf.mxu0
        %v3496 = vadd.f32 0.0, %v3495
        %3497 = vdwg.mxu0
        %3498 = vmatpush.msra.mxu0 0.0
        %3499 = vmatpush.msra.mxu0 0.0
        %3500 = vmatpush.msra.mxu0 0.0
        %3501 = vmatpush.msra.mxu0 0.0
        %3502 = vmatpush.msra.mxu0 0.0
        %3503 = vmatpush.msra.mxu0 0.0
        %3504 = vmatpush.msra.mxu0 0.0
        %3505 = vmatpush.msra.mxu0 0.0
        %3506 = vmatpush.msra.mxu0 0.0
        %3507 = vmatpush.msra.mxu0 0.0
        %3508 = vmatpush.msra.mxu0 0.0
        %3509 = vmatpush.msra.mxu0 0.0
        %3510 = vmatpush.msra.mxu0 0.0
        %3511 = vmatpush.msra.mxu0 0.0
        %3512 = vmatpush.msra.mxu0 0.0
        %3513 = vmatpush.msra.mxu0 %v3466
        %3514 = vmatmul.f32.gmra.mxu0 %v3471
        %v3515 = vpop.f32.mrf.mxu0
        %v3516 = vadd.f32 0.0, %v3515
        %3517 = vmatmul.f32.gmra.mxu0 %v3473
        %v3518 = vpop.f32.mrf.mxu0
        %v3519 = vadd.f32 0.0, %v3518
        %3520 = vdwg.mxu0
        %3521 = vmatpush.msra.mxu0 0.0
        %3522 = vmatpush.msra.mxu0 0.0
        %3523 = vmatpush.msra.mxu0 0.0
        %3524 = vmatpush.msra.mxu0 0.0
        %3525 = vmatpush.msra.mxu0 0.0
        %3526 = vmatpush.msra.mxu0 0.0
        %3527 = vmatpush.msra.mxu0 0.0
        %3528 = vmatpush.msra.mxu0 0.0
        %3529 = vmatpush.msra.mxu0 0.0
        %3530 = vmatpush.msra.mxu0 0.0
        %3531 = vmatpush.msra.mxu0 0.0
        %3532 = vmatpush.msra.mxu0 0.0
        %3533 = vmatpush.msra.mxu0 0.0
        %3534 = vmatpush.msra.mxu0 0.0
        %3535 = vmatpush.msra.mxu0 0.0
        %3536 = vmatpush.msra.mxu0 %v3467
        %3537 = vmatmul.f32.gmra.mxu0 %v3471
        %v3538 = vpop.f32.mrf.mxu0
        %v3539 = vadd.f32 0.0, %v3538
        %3540 = vmatmul.f32.gmra.mxu0 %v3473
        %v3541 = vpop.f32.mrf.mxu0
        %v3542 = vadd.f32 0.0, %v3541
        %3543 = vdwg.mxu0
        %v3544 = vadd.f32 %v3439, %v3493
        %v3545 = vadd.f32 %v3440, %v3516
        %v3546 = vadd.f32 %v3441, %v3539
        %v3547 = vadd.f32 %v3442, %v3496
        %v3548 = vadd.f32 %v3443, %v3519
        %v3549 = vadd.f32 %v3444, %v3542
        %3550 = vrot.lane.b32.xlu0 %v3362, 112
        %v3551 = vpop.permute.xlu0 %3550
        %3552 = vrot.lane.b32.xlu0 %v3363, 112
        %v3553 = vpop.permute.xlu0 %3552
        %3554 = vrot.lane.b32.xlu0 %v3445, 112
        %v3555 = vpop.permute.xlu0 %3554
        %3556 = vrot.lane.b32.xlu0 %v3446, 112
        %v3557 = vpop.permute.xlu0 %3556
        %3558 = vrot.lane.b32.xlu0 %v3447, 112
        %v3559 = vpop.permute.xlu0 %3558
        %3560 = vrot.lane.b32.xlu0 %v3448, 112
        %v3561 = vpop.permute.xlu0 %3560
        %v3562 = vsel %vm457, %v3555, %v3557
        %v3563 = vsel %vm457, %v3557, %v3559
        %v3564 = vsel %vm457, %v3559, %v3561
        %v3568 = vsel %vm298, %v3551, 0
        %v3570 = vsel %vm298, %v3553, 0
        %3572 = vmatpush.msra.mxu0 0.0
        %3573 = vmatpush.msra.mxu0 0.0
        %3574 = vmatpush.msra.mxu0 0.0
        %3575 = vmatpush.msra.mxu0 0.0
        %3576 = vmatpush.msra.mxu0 0.0
        %3577 = vmatpush.msra.mxu0 0.0
        %3578 = vmatpush.msra.mxu0 0.0
        %3579 = vmatpush.msra.mxu0 0.0
        %3580 = vmatpush.msra.mxu0 0.0
        %3581 = vmatpush.msra.mxu0 0.0
        %3582 = vmatpush.msra.mxu0 0.0
        %3583 = vmatpush.msra.mxu0 0.0
        %3584 = vmatpush.msra.mxu0 0.0
        %3585 = vmatpush.msra.mxu0 0.0
        %3586 = vmatpush.msra.mxu0 0.0
        %3587 = vmatpush.msra.mxu0 %v3562
        %3588 = vmatmul.f32.gmra.mxu0 %v3568
        %v3589 = vpop.f32.mrf.mxu0
        %v3590 = vadd.f32 0.0, %v3589
        %3591 = vmatmul.f32.gmra.mxu0 %v3570
        %v3592 = vpop.f32.mrf.mxu0
        %v3593 = vadd.f32 0.0, %v3592
        %3594 = vdwg.mxu0
        %3595 = vmatpush.msra.mxu0 0.0
        %3596 = vmatpush.msra.mxu0 0.0
        %3597 = vmatpush.msra.mxu0 0.0
        %3598 = vmatpush.msra.mxu0 0.0
        %3599 = vmatpush.msra.mxu0 0.0
        %3600 = vmatpush.msra.mxu0 0.0
        %3601 = vmatpush.msra.mxu0 0.0
        %3602 = vmatpush.msra.mxu0 0.0
        %3603 = vmatpush.msra.mxu0 0.0
        %3604 = vmatpush.msra.mxu0 0.0
        %3605 = vmatpush.msra.mxu0 0.0
        %3606 = vmatpush.msra.mxu0 0.0
        %3607 = vmatpush.msra.mxu0 0.0
        %3608 = vmatpush.msra.mxu0 0.0
        %3609 = vmatpush.msra.mxu0 0.0
        %3610 = vmatpush.msra.mxu0 %v3563
        %3611 = vmatmul.f32.gmra.mxu0 %v3568
        %v3612 = vpop.f32.mrf.mxu0
        %v3613 = vadd.f32 0.0, %v3612
        %3614 = vmatmul.f32.gmra.mxu0 %v3570
        %v3615 = vpop.f32.mrf.mxu0
        %v3616 = vadd.f32 0.0, %v3615
        %3617 = vdwg.mxu0
        %3618 = vmatpush.msra.mxu0 0.0
        %3619 = vmatpush.msra.mxu0 0.0
        %3620 = vmatpush.msra.mxu0 0.0
        %3621 = vmatpush.msra.mxu0 0.0
        %3622 = vmatpush.msra.mxu0 0.0
        %3623 = vmatpush.msra.mxu0 0.0
        %3624 = vmatpush.msra.mxu0 0.0
        %3625 = vmatpush.msra.mxu0 0.0
        %3626 = vmatpush.msra.mxu0 0.0
        %3627 = vmatpush.msra.mxu0 0.0
        %3628 = vmatpush.msra.mxu0 0.0
        %3629 = vmatpush.msra.mxu0 0.0
        %3630 = vmatpush.msra.mxu0 0.0
        %3631 = vmatpush.msra.mxu0 0.0
        %3632 = vmatpush.msra.mxu0 0.0
        %3633 = vmatpush.msra.mxu0 %v3564
        %3634 = vmatmul.f32.gmra.mxu0 %v3568
        %v3635 = vpop.f32.mrf.mxu0
        %v3636 = vadd.f32 0.0, %v3635
        %3637 = vmatmul.f32.gmra.mxu0 %v3570
        %v3638 = vpop.f32.mrf.mxu0
        %v3639 = vadd.f32 0.0, %v3638
        %3640 = vdwg.mxu0
        %v3641 = vadd.f32 %v3544, %v3590
        %v3642 = vadd.f32 %v3545, %v3613
        %v3643 = vadd.f32 %v3546, %v3636
        %v3644 = vadd.f32 %v3547, %v3593
        %v3645 = vadd.f32 %v3548, %v3616
        %v3646 = vadd.f32 %v3549, %v3639
        %3647 = vrot.lane.b32.xlu0 %v3362, 104
        %v3648 = vpop.permute.xlu0 %3647
        %3649 = vrot.lane.b32.xlu0 %v3363, 104
        %v3650 = vpop.permute.xlu0 %3649
        %3651 = vrot.lane.b32.xlu0 %v3445, 104
        %v3652 = vpop.permute.xlu0 %3651
        %3653 = vrot.lane.b32.xlu0 %v3446, 104
        %v3654 = vpop.permute.xlu0 %3653
        %3655 = vrot.lane.b32.xlu0 %v3447, 104
        %v3656 = vpop.permute.xlu0 %3655
        %3657 = vrot.lane.b32.xlu0 %v3448, 104
        %v3658 = vpop.permute.xlu0 %3657
        %v3659 = vsel %vm555, %v3652, %v3654
        %v3660 = vsel %vm555, %v3654, %v3656
        %v3661 = vsel %vm555, %v3656, %v3658
        %v3665 = vsel %vm298, %v3648, 0
        %v3667 = vsel %vm298, %v3650, 0
        %3669 = vmatpush.msra.mxu0 0.0
        %3670 = vmatpush.msra.mxu0 0.0
        %3671 = vmatpush.msra.mxu0 0.0
        %3672 = vmatpush.msra.mxu0 0.0
        %3673 = vmatpush.msra.mxu0 0.0
        %3674 = vmatpush.msra.mxu0 0.0
        %3675 = vmatpush.msra.mxu0 0.0
        %3676 = vmatpush.msra.mxu0 0.0
        %3677 = vmatpush.msra.mxu0 0.0
        %3678 = vmatpush.msra.mxu0 0.0
        %3679 = vmatpush.msra.mxu0 0.0
        %3680 = vmatpush.msra.mxu0 0.0
        %3681 = vmatpush.msra.mxu0 0.0
        %3682 = vmatpush.msra.mxu0 0.0
        %3683 = vmatpush.msra.mxu0 0.0
        %3684 = vmatpush.msra.mxu0 %v3659
        %3685 = vmatmul.f32.gmra.mxu0 %v3665
        %v3686 = vpop.f32.mrf.mxu0
        %v3687 = vadd.f32 0.0, %v3686
        %3688 = vmatmul.f32.gmra.mxu0 %v3667
        %v3689 = vpop.f32.mrf.mxu0
        %v3690 = vadd.f32 0.0, %v3689
        %3691 = vdwg.mxu0
        %3692 = vmatpush.msra.mxu0 0.0
        %3693 = vmatpush.msra.mxu0 0.0
        %3694 = vmatpush.msra.mxu0 0.0
        %3695 = vmatpush.msra.mxu0 0.0
        %3696 = vmatpush.msra.mxu0 0.0
        %3697 = vmatpush.msra.mxu0 0.0
        %3698 = vmatpush.msra.mxu0 0.0
        %3699 = vmatpush.msra.mxu0 0.0
        %3700 = vmatpush.msra.mxu0 0.0
        %3701 = vmatpush.msra.mxu0 0.0
        %3702 = vmatpush.msra.mxu0 0.0
        %3703 = vmatpush.msra.mxu0 0.0
        %3704 = vmatpush.msra.mxu0 0.0
        %3705 = vmatpush.msra.mxu0 0.0
        %3706 = vmatpush.msra.mxu0 0.0
        %3707 = vmatpush.msra.mxu0 %v3660
        %3708 = vmatmul.f32.gmra.mxu0 %v3665
        %v3709 = vpop.f32.mrf.mxu0
        %v3710 = vadd.f32 0.0, %v3709
        %3711 = vmatmul.f32.gmra.mxu0 %v3667
        %v3712 = vpop.f32.mrf.mxu0
        %v3713 = vadd.f32 0.0, %v3712
        %3714 = vdwg.mxu0
        %3715 = vmatpush.msra.mxu0 0.0
        %3716 = vmatpush.msra.mxu0 0.0
        %3717 = vmatpush.msra.mxu0 0.0
        %3718 = vmatpush.msra.mxu0 0.0
        %3719 = vmatpush.msra.mxu0 0.0
        %3720 = vmatpush.msra.mxu0 0.0
        %3721 = vmatpush.msra.mxu0 0.0
        %3722 = vmatpush.msra.mxu0 0.0
        %3723 = vmatpush.msra.mxu0 0.0
        %3724 = vmatpush.msra.mxu0 0.0
        %3725 = vmatpush.msra.mxu0 0.0
        %3726 = vmatpush.msra.mxu0 0.0
        %3727 = vmatpush.msra.mxu0 0.0
        %3728 = vmatpush.msra.mxu0 0.0
        %3729 = vmatpush.msra.mxu0 0.0
        %3730 = vmatpush.msra.mxu0 %v3661
        %3731 = vmatmul.f32.gmra.mxu0 %v3665
        %v3732 = vpop.f32.mrf.mxu0
        %v3733 = vadd.f32 0.0, %v3732
        %3734 = vmatmul.f32.gmra.mxu0 %v3667
        %v3735 = vpop.f32.mrf.mxu0
        %v3736 = vadd.f32 0.0, %v3735
        %3737 = vdwg.mxu0
        %v3738 = vadd.f32 %v3641, %v3687
        %v3739 = vadd.f32 %v3642, %v3710
        %v3740 = vadd.f32 %v3643, %v3733
        %v3741 = vadd.f32 %v3644, %v3690
        %v3742 = vadd.f32 %v3645, %v3713
        %v3743 = vadd.f32 %v3646, %v3736
        %3744 = vrot.lane.b32.xlu0 %v3362, 96
        %v3745 = vpop.permute.xlu0 %3744
        %3746 = vrot.lane.b32.xlu0 %v3363, 96
        %v3747 = vpop.permute.xlu0 %3746
        %3748 = vrot.lane.b32.xlu0 %v3445, 96
        %v3749 = vpop.permute.xlu0 %3748
        %3750 = vrot.lane.b32.xlu0 %v3446, 96
        %v3751 = vpop.permute.xlu0 %3750
        %3752 = vrot.lane.b32.xlu0 %v3447, 96
        %v3753 = vpop.permute.xlu0 %3752
        %3754 = vrot.lane.b32.xlu0 %v3448, 96
        %v3755 = vpop.permute.xlu0 %3754
        %v3756 = vsel %vm653, %v3749, %v3751
        %v3757 = vsel %vm653, %v3751, %v3753
        %v3758 = vsel %vm653, %v3753, %v3755
        %v3762 = vsel %vm298, %v3745, 0
        %v3764 = vsel %vm298, %v3747, 0
        %3766 = vmatpush.msra.mxu0 0.0
        %3767 = vmatpush.msra.mxu0 0.0
        %3768 = vmatpush.msra.mxu0 0.0
        %3769 = vmatpush.msra.mxu0 0.0
        %3770 = vmatpush.msra.mxu0 0.0
        %3771 = vmatpush.msra.mxu0 0.0
        %3772 = vmatpush.msra.mxu0 0.0
        %3773 = vmatpush.msra.mxu0 0.0
        %3774 = vmatpush.msra.mxu0 0.0
        %3775 = vmatpush.msra.mxu0 0.0
        %3776 = vmatpush.msra.mxu0 0.0
        %3777 = vmatpush.msra.mxu0 0.0
        %3778 = vmatpush.msra.mxu0 0.0
        %3779 = vmatpush.msra.mxu0 0.0
        %3780 = vmatpush.msra.mxu0 0.0
        %3781 = vmatpush.msra.mxu0 %v3756
        %3782 = vmatmul.f32.gmra.mxu0 %v3762
        %v3783 = vpop.f32.mrf.mxu0
        %v3784 = vadd.f32 0.0, %v3783
        %3785 = vmatmul.f32.gmra.mxu0 %v3764
        %v3786 = vpop.f32.mrf.mxu0
        %v3787 = vadd.f32 0.0, %v3786
        %3788 = vdwg.mxu0
        %3789 = vmatpush.msra.mxu0 0.0
        %3790 = vmatpush.msra.mxu0 0.0
        %3791 = vmatpush.msra.mxu0 0.0
        %3792 = vmatpush.msra.mxu0 0.0
        %3793 = vmatpush.msra.mxu0 0.0
        %3794 = vmatpush.msra.mxu0 0.0
        %3795 = vmatpush.msra.mxu0 0.0
        %3796 = vmatpush.msra.mxu0 0.0
        %3797 = vmatpush.msra.mxu0 0.0
        %3798 = vmatpush.msra.mxu0 0.0
        %3799 = vmatpush.msra.mxu0 0.0
        %3800 = vmatpush.msra.mxu0 0.0
        %3801 = vmatpush.msra.mxu0 0.0
        %3802 = vmatpush.msra.mxu0 0.0
        %3803 = vmatpush.msra.mxu0 0.0
        %3804 = vmatpush.msra.mxu0 %v3757
        %3805 = vmatmul.f32.gmra.mxu0 %v3762
        %v3806 = vpop.f32.mrf.mxu0
        %v3807 = vadd.f32 0.0, %v3806
        %3808 = vmatmul.f32.gmra.mxu0 %v3764
        %v3809 = vpop.f32.mrf.mxu0
        %v3810 = vadd.f32 0.0, %v3809
        %3811 = vdwg.mxu0
        %3812 = vmatpush.msra.mxu0 0.0
        %3813 = vmatpush.msra.mxu0 0.0
        %3814 = vmatpush.msra.mxu0 0.0
        %3815 = vmatpush.msra.mxu0 0.0
        %3816 = vmatpush.msra.mxu0 0.0
        %3817 = vmatpush.msra.mxu0 0.0
        %3818 = vmatpush.msra.mxu0 0.0
        %3819 = vmatpush.msra.mxu0 0.0
        %3820 = vmatpush.msra.mxu0 0.0
        %3821 = vmatpush.msra.mxu0 0.0
        %3822 = vmatpush.msra.mxu0 0.0
        %3823 = vmatpush.msra.mxu0 0.0
        %3824 = vmatpush.msra.mxu0 0.0
        %3825 = vmatpush.msra.mxu0 0.0
        %3826 = vmatpush.msra.mxu0 0.0
        %3827 = vmatpush.msra.mxu0 %v3758
        %3828 = vmatmul.f32.gmra.mxu0 %v3762
        %v3829 = vpop.f32.mrf.mxu0
        %v3830 = vadd.f32 0.0, %v3829
        %3831 = vmatmul.f32.gmra.mxu0 %v3764
        %v3832 = vpop.f32.mrf.mxu0
        %v3833 = vadd.f32 0.0, %v3832
        %3834 = vdwg.mxu0
        %v3835 = vadd.f32 %v3738, %v3784
        %v3836 = vadd.f32 %v3739, %v3807
        %v3837 = vadd.f32 %v3740, %v3830
        %v3838 = vadd.f32 %v3741, %v3787
        %v3839 = vadd.f32 %v3742, %v3810
        %v3840 = vadd.f32 %v3743, %v3833
        %3841 = vrot.lane.b32.xlu0 %v3362, 88
        %v3842 = vpop.permute.xlu0 %3841
        %3843 = vrot.lane.b32.xlu0 %v3363, 88
        %v3844 = vpop.permute.xlu0 %3843
        %3845 = vrot.lane.b32.xlu0 %v3445, 88
        %v3846 = vpop.permute.xlu0 %3845
        %3847 = vrot.lane.b32.xlu0 %v3446, 88
        %v3848 = vpop.permute.xlu0 %3847
        %3849 = vrot.lane.b32.xlu0 %v3447, 88
        %v3850 = vpop.permute.xlu0 %3849
        %3851 = vrot.lane.b32.xlu0 %v3448, 88
        %v3852 = vpop.permute.xlu0 %3851
        %v3853 = vsel %vm751, %v3846, %v3848
        %v3854 = vsel %vm751, %v3848, %v3850
        %v3855 = vsel %vm751, %v3850, %v3852
        %v3859 = vsel %vm298, %v3842, 0
        %v3861 = vsel %vm298, %v3844, 0
        %3863 = vmatpush.msra.mxu0 0.0
        %3864 = vmatpush.msra.mxu0 0.0
        %3865 = vmatpush.msra.mxu0 0.0
        %3866 = vmatpush.msra.mxu0 0.0
        %3867 = vmatpush.msra.mxu0 0.0
        %3868 = vmatpush.msra.mxu0 0.0
        %3869 = vmatpush.msra.mxu0 0.0
        %3870 = vmatpush.msra.mxu0 0.0
        %3871 = vmatpush.msra.mxu0 0.0
        %3872 = vmatpush.msra.mxu0 0.0
        %3873 = vmatpush.msra.mxu0 0.0
        %3874 = vmatpush.msra.mxu0 0.0
        %3875 = vmatpush.msra.mxu0 0.0
        %3876 = vmatpush.msra.mxu0 0.0
        %3877 = vmatpush.msra.mxu0 0.0
        %3878 = vmatpush.msra.mxu0 %v3853
        %3879 = vmatmul.f32.gmra.mxu0 %v3859
        %v3880 = vpop.f32.mrf.mxu0
        %v3881 = vadd.f32 0.0, %v3880
        %3882 = vmatmul.f32.gmra.mxu0 %v3861
        %v3883 = vpop.f32.mrf.mxu0
        %v3884 = vadd.f32 0.0, %v3883
        %3885 = vdwg.mxu0
        %3886 = vmatpush.msra.mxu0 0.0
        %3887 = vmatpush.msra.mxu0 0.0
        %3888 = vmatpush.msra.mxu0 0.0
        %3889 = vmatpush.msra.mxu0 0.0
        %3890 = vmatpush.msra.mxu0 0.0
        %3891 = vmatpush.msra.mxu0 0.0
        %3892 = vmatpush.msra.mxu0 0.0
        %3893 = vmatpush.msra.mxu0 0.0
        %3894 = vmatpush.msra.mxu0 0.0
        %3895 = vmatpush.msra.mxu0 0.0
        %3896 = vmatpush.msra.mxu0 0.0
        %3897 = vmatpush.msra.mxu0 0.0
        %3898 = vmatpush.msra.mxu0 0.0
        %3899 = vmatpush.msra.mxu0 0.0
        %3900 = vmatpush.msra.mxu0 0.0
        %3901 = vmatpush.msra.mxu0 %v3854
        %3902 = vmatmul.f32.gmra.mxu0 %v3859
        %v3903 = vpop.f32.mrf.mxu0
        %v3904 = vadd.f32 0.0, %v3903
        %3905 = vmatmul.f32.gmra.mxu0 %v3861
        %v3906 = vpop.f32.mrf.mxu0
        %v3907 = vadd.f32 0.0, %v3906
        %3908 = vdwg.mxu0
        %3909 = vmatpush.msra.mxu0 0.0
        %3910 = vmatpush.msra.mxu0 0.0
        %3911 = vmatpush.msra.mxu0 0.0
        %3912 = vmatpush.msra.mxu0 0.0
        %3913 = vmatpush.msra.mxu0 0.0
        %3914 = vmatpush.msra.mxu0 0.0
        %3915 = vmatpush.msra.mxu0 0.0
        %3916 = vmatpush.msra.mxu0 0.0
        %3917 = vmatpush.msra.mxu0 0.0
        %3918 = vmatpush.msra.mxu0 0.0
        %3919 = vmatpush.msra.mxu0 0.0
        %3920 = vmatpush.msra.mxu0 0.0
        %3921 = vmatpush.msra.mxu0 0.0
        %3922 = vmatpush.msra.mxu0 0.0
        %3923 = vmatpush.msra.mxu0 0.0
        %3924 = vmatpush.msra.mxu0 %v3855
        %3925 = vmatmul.f32.gmra.mxu0 %v3859
        %v3926 = vpop.f32.mrf.mxu0
        %v3927 = vadd.f32 0.0, %v3926
        %3928 = vmatmul.f32.gmra.mxu0 %v3861
        %v3929 = vpop.f32.mrf.mxu0
        %v3930 = vadd.f32 0.0, %v3929
        %3931 = vdwg.mxu0
        %v3932 = vadd.f32 %v3835, %v3881
        %v3933 = vadd.f32 %v3836, %v3904
        %v3934 = vadd.f32 %v3837, %v3927
        %v3935 = vadd.f32 %v3838, %v3884
        %v3936 = vadd.f32 %v3839, %v3907
        %v3937 = vadd.f32 %v3840, %v3930
        %3938 = vrot.lane.b32.xlu0 %v3362, 80
        %v3939 = vpop.permute.xlu0 %3938
        %3940 = vrot.lane.b32.xlu0 %v3363, 80
        %v3941 = vpop.permute.xlu0 %3940
        %3942 = vrot.lane.b32.xlu0 %v3445, 80
        %v3943 = vpop.permute.xlu0 %3942
        %3944 = vrot.lane.b32.xlu0 %v3446, 80
        %v3945 = vpop.permute.xlu0 %3944
        %3946 = vrot.lane.b32.xlu0 %v3447, 80
        %v3947 = vpop.permute.xlu0 %3946
        %3948 = vrot.lane.b32.xlu0 %v3448, 80
        %v3949 = vpop.permute.xlu0 %3948
        %v3950 = vsel %vm849, %v3943, %v3945
        %v3951 = vsel %vm849, %v3945, %v3947
        %v3952 = vsel %vm849, %v3947, %v3949
        %v3956 = vsel %vm298, %v3939, 0
        %v3958 = vsel %vm298, %v3941, 0
        %3960 = vmatpush.msra.mxu0 0.0
        %3961 = vmatpush.msra.mxu0 0.0
        %3962 = vmatpush.msra.mxu0 0.0
        %3963 = vmatpush.msra.mxu0 0.0
        %3964 = vmatpush.msra.mxu0 0.0
        %3965 = vmatpush.msra.mxu0 0.0
        %3966 = vmatpush.msra.mxu0 0.0
        %3967 = vmatpush.msra.mxu0 0.0
        %3968 = vmatpush.msra.mxu0 0.0
        %3969 = vmatpush.msra.mxu0 0.0
        %3970 = vmatpush.msra.mxu0 0.0
        %3971 = vmatpush.msra.mxu0 0.0
        %3972 = vmatpush.msra.mxu0 0.0
        %3973 = vmatpush.msra.mxu0 0.0
        %3974 = vmatpush.msra.mxu0 0.0
        %3975 = vmatpush.msra.mxu0 %v3950
        %3976 = vmatmul.f32.gmra.mxu0 %v3956
        %v3977 = vpop.f32.mrf.mxu0
        %v3978 = vadd.f32 0.0, %v3977
        %3979 = vmatmul.f32.gmra.mxu0 %v3958
        %v3980 = vpop.f32.mrf.mxu0
        %v3981 = vadd.f32 0.0, %v3980
        %3982 = vdwg.mxu0
        %3983 = vmatpush.msra.mxu0 0.0
        %3984 = vmatpush.msra.mxu0 0.0
        %3985 = vmatpush.msra.mxu0 0.0
        %3986 = vmatpush.msra.mxu0 0.0
        %3987 = vmatpush.msra.mxu0 0.0
        %3988 = vmatpush.msra.mxu0 0.0
        %3989 = vmatpush.msra.mxu0 0.0
        %3990 = vmatpush.msra.mxu0 0.0
        %3991 = vmatpush.msra.mxu0 0.0
        %3992 = vmatpush.msra.mxu0 0.0
        %3993 = vmatpush.msra.mxu0 0.0
        %3994 = vmatpush.msra.mxu0 0.0
        %3995 = vmatpush.msra.mxu0 0.0
        %3996 = vmatpush.msra.mxu0 0.0
        %3997 = vmatpush.msra.mxu0 0.0
        %3998 = vmatpush.msra.mxu0 %v3951
        %3999 = vmatmul.f32.gmra.mxu0 %v3956
        %v4000 = vpop.f32.mrf.mxu0
        %v4001 = vadd.f32 0.0, %v4000
        %4002 = vmatmul.f32.gmra.mxu0 %v3958
        %v4003 = vpop.f32.mrf.mxu0
        %v4004 = vadd.f32 0.0, %v4003
        %4005 = vdwg.mxu0
        %4006 = vmatpush.msra.mxu0 0.0
        %4007 = vmatpush.msra.mxu0 0.0
        %4008 = vmatpush.msra.mxu0 0.0
        %4009 = vmatpush.msra.mxu0 0.0
        %4010 = vmatpush.msra.mxu0 0.0
        %4011 = vmatpush.msra.mxu0 0.0
        %4012 = vmatpush.msra.mxu0 0.0
        %4013 = vmatpush.msra.mxu0 0.0
        %4014 = vmatpush.msra.mxu0 0.0
        %4015 = vmatpush.msra.mxu0 0.0
        %4016 = vmatpush.msra.mxu0 0.0
        %4017 = vmatpush.msra.mxu0 0.0
        %4018 = vmatpush.msra.mxu0 0.0
        %4019 = vmatpush.msra.mxu0 0.0
        %4020 = vmatpush.msra.mxu0 0.0
        %4021 = vmatpush.msra.mxu0 %v3952
        %4022 = vmatmul.f32.gmra.mxu0 %v3956
        %v4023 = vpop.f32.mrf.mxu0
        %v4024 = vadd.f32 0.0, %v4023
        %4025 = vmatmul.f32.gmra.mxu0 %v3958
        %v4026 = vpop.f32.mrf.mxu0
        %v4027 = vadd.f32 0.0, %v4026
        %4028 = vdwg.mxu0
        %v4029 = vadd.f32 %v3932, %v3978
        %v4030 = vadd.f32 %v3933, %v4001
        %v4031 = vadd.f32 %v3934, %v4024
        %v4032 = vadd.f32 %v3935, %v3981
        %v4033 = vadd.f32 %v3936, %v4004
        %v4034 = vadd.f32 %v3937, %v4027
        %4035 = vrot.lane.b32.xlu0 %v3362, 72
        %v4036 = vpop.permute.xlu0 %4035
        %4037 = vrot.lane.b32.xlu0 %v3363, 72
        %v4038 = vpop.permute.xlu0 %4037
        %4039 = vrot.lane.b32.xlu0 %v3445, 72
        %v4040 = vpop.permute.xlu0 %4039
        %4041 = vrot.lane.b32.xlu0 %v3446, 72
        %v4042 = vpop.permute.xlu0 %4041
        %4043 = vrot.lane.b32.xlu0 %v3447, 72
        %v4044 = vpop.permute.xlu0 %4043
        %4045 = vrot.lane.b32.xlu0 %v3448, 72
        %v4046 = vpop.permute.xlu0 %4045
        %v4047 = vsel %vm947, %v4040, %v4042
        %v4048 = vsel %vm947, %v4042, %v4044
        %v4049 = vsel %vm947, %v4044, %v4046
        %v4053 = vsel %vm298, %v4036, 0
        %v4055 = vsel %vm298, %v4038, 0
        %4057 = vmatpush.msra.mxu0 0.0
        %4058 = vmatpush.msra.mxu0 0.0
        %4059 = vmatpush.msra.mxu0 0.0
        %4060 = vmatpush.msra.mxu0 0.0
        %4061 = vmatpush.msra.mxu0 0.0
        %4062 = vmatpush.msra.mxu0 0.0
        %4063 = vmatpush.msra.mxu0 0.0
        %4064 = vmatpush.msra.mxu0 0.0
        %4065 = vmatpush.msra.mxu0 0.0
        %4066 = vmatpush.msra.mxu0 0.0
        %4067 = vmatpush.msra.mxu0 0.0
        %4068 = vmatpush.msra.mxu0 0.0
        %4069 = vmatpush.msra.mxu0 0.0
        %4070 = vmatpush.msra.mxu0 0.0
        %4071 = vmatpush.msra.mxu0 0.0
        %4072 = vmatpush.msra.mxu0 %v4047
        %4073 = vmatmul.f32.gmra.mxu0 %v4053
        %v4074 = vpop.f32.mrf.mxu0
        %v4075 = vadd.f32 0.0, %v4074
        %4076 = vmatmul.f32.gmra.mxu0 %v4055
        %v4077 = vpop.f32.mrf.mxu0
        %v4078 = vadd.f32 0.0, %v4077
        %4079 = vdwg.mxu0
        %4080 = vmatpush.msra.mxu0 0.0
        %4081 = vmatpush.msra.mxu0 0.0
        %4082 = vmatpush.msra.mxu0 0.0
        %4083 = vmatpush.msra.mxu0 0.0
        %4084 = vmatpush.msra.mxu0 0.0
        %4085 = vmatpush.msra.mxu0 0.0
        %4086 = vmatpush.msra.mxu0 0.0
        %4087 = vmatpush.msra.mxu0 0.0
        %4088 = vmatpush.msra.mxu0 0.0
        %4089 = vmatpush.msra.mxu0 0.0
        %4090 = vmatpush.msra.mxu0 0.0
        %4091 = vmatpush.msra.mxu0 0.0
        %4092 = vmatpush.msra.mxu0 0.0
        %4093 = vmatpush.msra.mxu0 0.0
        %4094 = vmatpush.msra.mxu0 0.0
        %4095 = vmatpush.msra.mxu0 %v4048
        %4096 = vmatmul.f32.gmra.mxu0 %v4053
        %v4097 = vpop.f32.mrf.mxu0
        %v4098 = vadd.f32 0.0, %v4097
        %4099 = vmatmul.f32.gmra.mxu0 %v4055
        %v4100 = vpop.f32.mrf.mxu0
        %v4101 = vadd.f32 0.0, %v4100
        %4102 = vdwg.mxu0
        %4103 = vmatpush.msra.mxu0 0.0
        %4104 = vmatpush.msra.mxu0 0.0
        %4105 = vmatpush.msra.mxu0 0.0
        %4106 = vmatpush.msra.mxu0 0.0
        %4107 = vmatpush.msra.mxu0 0.0
        %4108 = vmatpush.msra.mxu0 0.0
        %4109 = vmatpush.msra.mxu0 0.0
        %4110 = vmatpush.msra.mxu0 0.0
        %4111 = vmatpush.msra.mxu0 0.0
        %4112 = vmatpush.msra.mxu0 0.0
        %4113 = vmatpush.msra.mxu0 0.0
        %4114 = vmatpush.msra.mxu0 0.0
        %4115 = vmatpush.msra.mxu0 0.0
        %4116 = vmatpush.msra.mxu0 0.0
        %4117 = vmatpush.msra.mxu0 0.0
        %4118 = vmatpush.msra.mxu0 %v4049
        %4119 = vmatmul.f32.gmra.mxu0 %v4053
        %v4120 = vpop.f32.mrf.mxu0
        %v4121 = vadd.f32 0.0, %v4120
        %4122 = vmatmul.f32.gmra.mxu0 %v4055
        %v4123 = vpop.f32.mrf.mxu0
        %v4124 = vadd.f32 0.0, %v4123
        %4125 = vdwg.mxu0
        %v4126 = vadd.f32 %v4029, %v4075
        %v4127 = vadd.f32 %v4030, %v4098
        %v4128 = vadd.f32 %v4031, %v4121
        %v4129 = vadd.f32 %v4032, %v4078
        %v4130 = vadd.f32 %v4033, %v4101
        %v4131 = vadd.f32 %v4034, %v4124
        %4132 = vrot.lane.b32.xlu0 %v3362, 64
        %v4133 = vpop.permute.xlu0 %4132
        %4134 = vrot.lane.b32.xlu0 %v3363, 64
        %v4135 = vpop.permute.xlu0 %4134
        %4136 = vrot.lane.b32.xlu0 %v3445, 64
        %v4137 = vpop.permute.xlu0 %4136
        %4138 = vrot.lane.b32.xlu0 %v3446, 64
        %v4139 = vpop.permute.xlu0 %4138
        %4140 = vrot.lane.b32.xlu0 %v3447, 64
        %v4141 = vpop.permute.xlu0 %4140
        %4142 = vrot.lane.b32.xlu0 %v3448, 64
        %v4143 = vpop.permute.xlu0 %4142
        %v4144 = vsel %vm1045, %v4137, %v4139
        %v4145 = vsel %vm1045, %v4139, %v4141
        %v4146 = vsel %vm1045, %v4141, %v4143
        %v4150 = vsel %vm298, %v4133, 0
        %v4152 = vsel %vm298, %v4135, 0
        %4154 = vmatpush.msra.mxu0 0.0
        %4155 = vmatpush.msra.mxu0 0.0
        %4156 = vmatpush.msra.mxu0 0.0
        %4157 = vmatpush.msra.mxu0 0.0
        %4158 = vmatpush.msra.mxu0 0.0
        %4159 = vmatpush.msra.mxu0 0.0
        %4160 = vmatpush.msra.mxu0 0.0
        %4161 = vmatpush.msra.mxu0 0.0
        %4162 = vmatpush.msra.mxu0 0.0
        %4163 = vmatpush.msra.mxu0 0.0
        %4164 = vmatpush.msra.mxu0 0.0
        %4165 = vmatpush.msra.mxu0 0.0
        %4166 = vmatpush.msra.mxu0 0.0
        %4167 = vmatpush.msra.mxu0 0.0
        %4168 = vmatpush.msra.mxu0 0.0
        %4169 = vmatpush.msra.mxu0 %v4144
        %4170 = vmatmul.f32.gmra.mxu0 %v4150
        %v4171 = vpop.f32.mrf.mxu0
        %v4172 = vadd.f32 0.0, %v4171
        %4173 = vmatmul.f32.gmra.mxu0 %v4152
        %v4174 = vpop.f32.mrf.mxu0
        %v4175 = vadd.f32 0.0, %v4174
        %4176 = vdwg.mxu0
        %4177 = vmatpush.msra.mxu0 0.0
        %4178 = vmatpush.msra.mxu0 0.0
        %4179 = vmatpush.msra.mxu0 0.0
        %4180 = vmatpush.msra.mxu0 0.0
        %4181 = vmatpush.msra.mxu0 0.0
        %4182 = vmatpush.msra.mxu0 0.0
        %4183 = vmatpush.msra.mxu0 0.0
        %4184 = vmatpush.msra.mxu0 0.0
        %4185 = vmatpush.msra.mxu0 0.0
        %4186 = vmatpush.msra.mxu0 0.0
        %4187 = vmatpush.msra.mxu0 0.0
        %4188 = vmatpush.msra.mxu0 0.0
        %4189 = vmatpush.msra.mxu0 0.0
        %4190 = vmatpush.msra.mxu0 0.0
        %4191 = vmatpush.msra.mxu0 0.0
        %4192 = vmatpush.msra.mxu0 %v4145
        %4193 = vmatmul.f32.gmra.mxu0 %v4150
        %v4194 = vpop.f32.mrf.mxu0
        %v4195 = vadd.f32 0.0, %v4194
        %4196 = vmatmul.f32.gmra.mxu0 %v4152
        %v4197 = vpop.f32.mrf.mxu0
        %v4198 = vadd.f32 0.0, %v4197
        %4199 = vdwg.mxu0
        %4200 = vmatpush.msra.mxu0 0.0
        %4201 = vmatpush.msra.mxu0 0.0
        %4202 = vmatpush.msra.mxu0 0.0
        %4203 = vmatpush.msra.mxu0 0.0
        %4204 = vmatpush.msra.mxu0 0.0
        %4205 = vmatpush.msra.mxu0 0.0
        %4206 = vmatpush.msra.mxu0 0.0
        %4207 = vmatpush.msra.mxu0 0.0
        %4208 = vmatpush.msra.mxu0 0.0
        %4209 = vmatpush.msra.mxu0 0.0
        %4210 = vmatpush.msra.mxu0 0.0
        %4211 = vmatpush.msra.mxu0 0.0
        %4212 = vmatpush.msra.mxu0 0.0
        %4213 = vmatpush.msra.mxu0 0.0
        %4214 = vmatpush.msra.mxu0 0.0
        %4215 = vmatpush.msra.mxu0 %v4146
        %4216 = vmatmul.f32.gmra.mxu0 %v4150
        %v4217 = vpop.f32.mrf.mxu0
        %v4218 = vadd.f32 0.0, %v4217
        %4219 = vmatmul.f32.gmra.mxu0 %v4152
        %v4220 = vpop.f32.mrf.mxu0
        %v4221 = vadd.f32 0.0, %v4220
        %4222 = vdwg.mxu0
        %v4223 = vadd.f32 %v4126, %v4172
        %v4224 = vadd.f32 %v4127, %v4195
        %v4225 = vadd.f32 %v4128, %v4218
        %v4226 = vadd.f32 %v4129, %v4175
        %v4227 = vadd.f32 %v4130, %v4198
        %v4228 = vadd.f32 %v4131, %v4221
        %4229 = vrot.lane.b32.xlu0 %v3362, 56
        %v4230 = vpop.permute.xlu0 %4229
        %4231 = vrot.lane.b32.xlu0 %v3363, 56
        %v4232 = vpop.permute.xlu0 %4231
        %4233 = vrot.lane.b32.xlu0 %v3445, 56
        %v4234 = vpop.permute.xlu0 %4233
        %4235 = vrot.lane.b32.xlu0 %v3446, 56
        %v4236 = vpop.permute.xlu0 %4235
        %4237 = vrot.lane.b32.xlu0 %v3447, 56
        %v4238 = vpop.permute.xlu0 %4237
        %4239 = vrot.lane.b32.xlu0 %v3448, 56
        %v4240 = vpop.permute.xlu0 %4239
        %v4241 = vsel %vm1143, %v4234, %v4236
        %v4242 = vsel %vm1143, %v4236, %v4238
        %v4243 = vsel %vm1143, %v4238, %v4240
        %v4247 = vsel %vm298, %v4230, 0
        %v4249 = vsel %vm298, %v4232, 0
        %4251 = vmatpush.msra.mxu0 0.0
        %4252 = vmatpush.msra.mxu0 0.0
        %4253 = vmatpush.msra.mxu0 0.0
        %4254 = vmatpush.msra.mxu0 0.0
        %4255 = vmatpush.msra.mxu0 0.0
        %4256 = vmatpush.msra.mxu0 0.0
        %4257 = vmatpush.msra.mxu0 0.0
        %4258 = vmatpush.msra.mxu0 0.0
        %4259 = vmatpush.msra.mxu0 0.0
        %4260 = vmatpush.msra.mxu0 0.0
        %4261 = vmatpush.msra.mxu0 0.0
        %4262 = vmatpush.msra.mxu0 0.0
        %4263 = vmatpush.msra.mxu0 0.0
        %4264 = vmatpush.msra.mxu0 0.0
        %4265 = vmatpush.msra.mxu0 0.0
        %4266 = vmatpush.msra.mxu0 %v4241
        %4267 = vmatmul.f32.gmra.mxu0 %v4247
        %v4268 = vpop.f32.mrf.mxu0
        %v4269 = vadd.f32 0.0, %v4268
        %4270 = vmatmul.f32.gmra.mxu0 %v4249
        %v4271 = vpop.f32.mrf.mxu0
        %v4272 = vadd.f32 0.0, %v4271
        %4273 = vdwg.mxu0
        %4274 = vmatpush.msra.mxu0 0.0
        %4275 = vmatpush.msra.mxu0 0.0
        %4276 = vmatpush.msra.mxu0 0.0
        %4277 = vmatpush.msra.mxu0 0.0
        %4278 = vmatpush.msra.mxu0 0.0
        %4279 = vmatpush.msra.mxu0 0.0
        %4280 = vmatpush.msra.mxu0 0.0
        %4281 = vmatpush.msra.mxu0 0.0
        %4282 = vmatpush.msra.mxu0 0.0
        %4283 = vmatpush.msra.mxu0 0.0
        %4284 = vmatpush.msra.mxu0 0.0
        %4285 = vmatpush.msra.mxu0 0.0
        %4286 = vmatpush.msra.mxu0 0.0
        %4287 = vmatpush.msra.mxu0 0.0
        %4288 = vmatpush.msra.mxu0 0.0
        %4289 = vmatpush.msra.mxu0 %v4242
        %4290 = vmatmul.f32.gmra.mxu0 %v4247
        %v4291 = vpop.f32.mrf.mxu0
        %v4292 = vadd.f32 0.0, %v4291
        %4293 = vmatmul.f32.gmra.mxu0 %v4249
        %v4294 = vpop.f32.mrf.mxu0
        %v4295 = vadd.f32 0.0, %v4294
        %4296 = vdwg.mxu0
        %4297 = vmatpush.msra.mxu0 0.0
        %4298 = vmatpush.msra.mxu0 0.0
        %4299 = vmatpush.msra.mxu0 0.0
        %4300 = vmatpush.msra.mxu0 0.0
        %4301 = vmatpush.msra.mxu0 0.0
        %4302 = vmatpush.msra.mxu0 0.0
        %4303 = vmatpush.msra.mxu0 0.0
        %4304 = vmatpush.msra.mxu0 0.0
        %4305 = vmatpush.msra.mxu0 0.0
        %4306 = vmatpush.msra.mxu0 0.0
        %4307 = vmatpush.msra.mxu0 0.0
        %4308 = vmatpush.msra.mxu0 0.0
        %4309 = vmatpush.msra.mxu0 0.0
        %4310 = vmatpush.msra.mxu0 0.0
        %4311 = vmatpush.msra.mxu0 0.0
        %4312 = vmatpush.msra.mxu0 %v4243
        %4313 = vmatmul.f32.gmra.mxu0 %v4247
        %v4314 = vpop.f32.mrf.mxu0
        %v4315 = vadd.f32 0.0, %v4314
        %4316 = vmatmul.f32.gmra.mxu0 %v4249
        %v4317 = vpop.f32.mrf.mxu0
        %v4318 = vadd.f32 0.0, %v4317
        %4319 = vdwg.mxu0
        %v4320 = vadd.f32 %v4223, %v4269
        %v4321 = vadd.f32 %v4224, %v4292
        %v4322 = vadd.f32 %v4225, %v4315
        %v4323 = vadd.f32 %v4226, %v4272
        %v4324 = vadd.f32 %v4227, %v4295
        %v4325 = vadd.f32 %v4228, %v4318
        %4326 = vrot.lane.b32.xlu0 %v3362, 48
        %v4327 = vpop.permute.xlu0 %4326
        %4328 = vrot.lane.b32.xlu0 %v3363, 48
        %v4329 = vpop.permute.xlu0 %4328
        %4330 = vrot.lane.b32.xlu0 %v3445, 48
        %v4331 = vpop.permute.xlu0 %4330
        %4332 = vrot.lane.b32.xlu0 %v3446, 48
        %v4333 = vpop.permute.xlu0 %4332
        %4334 = vrot.lane.b32.xlu0 %v3447, 48
        %v4335 = vpop.permute.xlu0 %4334
        %4336 = vrot.lane.b32.xlu0 %v3448, 48
        %v4337 = vpop.permute.xlu0 %4336
        %v4338 = vsel %vm1241, %v4331, %v4333
        %v4339 = vsel %vm1241, %v4333, %v4335
        %v4340 = vsel %vm1241, %v4335, %v4337
        %v4344 = vsel %vm298, %v4327, 0
        %v4346 = vsel %vm298, %v4329, 0
        %4348 = vmatpush.msra.mxu0 0.0
        %4349 = vmatpush.msra.mxu0 0.0
        %4350 = vmatpush.msra.mxu0 0.0
        %4351 = vmatpush.msra.mxu0 0.0
        %4352 = vmatpush.msra.mxu0 0.0
        %4353 = vmatpush.msra.mxu0 0.0
        %4354 = vmatpush.msra.mxu0 0.0
        %4355 = vmatpush.msra.mxu0 0.0
        %4356 = vmatpush.msra.mxu0 0.0
        %4357 = vmatpush.msra.mxu0 0.0
        %4358 = vmatpush.msra.mxu0 0.0
        %4359 = vmatpush.msra.mxu0 0.0
        %4360 = vmatpush.msra.mxu0 0.0
        %4361 = vmatpush.msra.mxu0 0.0
        %4362 = vmatpush.msra.mxu0 0.0
        %4363 = vmatpush.msra.mxu0 %v4338
        %4364 = vmatmul.f32.gmra.mxu0 %v4344
        %v4365 = vpop.f32.mrf.mxu0
        %v4366 = vadd.f32 0.0, %v4365
        %4367 = vmatmul.f32.gmra.mxu0 %v4346
        %v4368 = vpop.f32.mrf.mxu0
        %v4369 = vadd.f32 0.0, %v4368
        %4370 = vdwg.mxu0
        %4371 = vmatpush.msra.mxu0 0.0
        %4372 = vmatpush.msra.mxu0 0.0
        %4373 = vmatpush.msra.mxu0 0.0
        %4374 = vmatpush.msra.mxu0 0.0
        %4375 = vmatpush.msra.mxu0 0.0
        %4376 = vmatpush.msra.mxu0 0.0
        %4377 = vmatpush.msra.mxu0 0.0
        %4378 = vmatpush.msra.mxu0 0.0
        %4379 = vmatpush.msra.mxu0 0.0
        %4380 = vmatpush.msra.mxu0 0.0
        %4381 = vmatpush.msra.mxu0 0.0
        %4382 = vmatpush.msra.mxu0 0.0
        %4383 = vmatpush.msra.mxu0 0.0
        %4384 = vmatpush.msra.mxu0 0.0
        %4385 = vmatpush.msra.mxu0 0.0
        %4386 = vmatpush.msra.mxu0 %v4339
        %4387 = vmatmul.f32.gmra.mxu0 %v4344
        %v4388 = vpop.f32.mrf.mxu0
        %v4389 = vadd.f32 0.0, %v4388
        %4390 = vmatmul.f32.gmra.mxu0 %v4346
        %v4391 = vpop.f32.mrf.mxu0
        %v4392 = vadd.f32 0.0, %v4391
        %4393 = vdwg.mxu0
        %4394 = vmatpush.msra.mxu0 0.0
        %4395 = vmatpush.msra.mxu0 0.0
        %4396 = vmatpush.msra.mxu0 0.0
        %4397 = vmatpush.msra.mxu0 0.0
        %4398 = vmatpush.msra.mxu0 0.0
        %4399 = vmatpush.msra.mxu0 0.0
        %4400 = vmatpush.msra.mxu0 0.0
        %4401 = vmatpush.msra.mxu0 0.0
        %4402 = vmatpush.msra.mxu0 0.0
        %4403 = vmatpush.msra.mxu0 0.0
        %4404 = vmatpush.msra.mxu0 0.0
        %4405 = vmatpush.msra.mxu0 0.0
        %4406 = vmatpush.msra.mxu0 0.0
        %4407 = vmatpush.msra.mxu0 0.0
        %4408 = vmatpush.msra.mxu0 0.0
        %4409 = vmatpush.msra.mxu0 %v4340
        %4410 = vmatmul.f32.gmra.mxu0 %v4344
        %v4411 = vpop.f32.mrf.mxu0
        %v4412 = vadd.f32 0.0, %v4411
        %4413 = vmatmul.f32.gmra.mxu0 %v4346
        %v4414 = vpop.f32.mrf.mxu0
        %v4415 = vadd.f32 0.0, %v4414
        %4416 = vdwg.mxu0
        %v4417 = vadd.f32 %v4320, %v4366
        %v4418 = vadd.f32 %v4321, %v4389
        %v4419 = vadd.f32 %v4322, %v4412
        %v4420 = vadd.f32 %v4323, %v4369
        %v4421 = vadd.f32 %v4324, %v4392
        %v4422 = vadd.f32 %v4325, %v4415
        %4423 = vrot.lane.b32.xlu0 %v3362, 40
        %v4424 = vpop.permute.xlu0 %4423
        %4425 = vrot.lane.b32.xlu0 %v3363, 40
        %v4426 = vpop.permute.xlu0 %4425
        %4427 = vrot.lane.b32.xlu0 %v3445, 40
        %v4428 = vpop.permute.xlu0 %4427
        %4429 = vrot.lane.b32.xlu0 %v3446, 40
        %v4430 = vpop.permute.xlu0 %4429
        %4431 = vrot.lane.b32.xlu0 %v3447, 40
        %v4432 = vpop.permute.xlu0 %4431
        %4433 = vrot.lane.b32.xlu0 %v3448, 40
        %v4434 = vpop.permute.xlu0 %4433
        %v4435 = vsel %vm1339, %v4428, %v4430
        %v4436 = vsel %vm1339, %v4430, %v4432
        %v4437 = vsel %vm1339, %v4432, %v4434
        %v4441 = vsel %vm298, %v4424, 0
        %v4443 = vsel %vm298, %v4426, 0
        %4445 = vmatpush.msra.mxu0 0.0
        %4446 = vmatpush.msra.mxu0 0.0
        %4447 = vmatpush.msra.mxu0 0.0
        %4448 = vmatpush.msra.mxu0 0.0
        %4449 = vmatpush.msra.mxu0 0.0
        %4450 = vmatpush.msra.mxu0 0.0
        %4451 = vmatpush.msra.mxu0 0.0
        %4452 = vmatpush.msra.mxu0 0.0
        %4453 = vmatpush.msra.mxu0 0.0
        %4454 = vmatpush.msra.mxu0 0.0
        %4455 = vmatpush.msra.mxu0 0.0
        %4456 = vmatpush.msra.mxu0 0.0
        %4457 = vmatpush.msra.mxu0 0.0
        %4458 = vmatpush.msra.mxu0 0.0
        %4459 = vmatpush.msra.mxu0 0.0
        %4460 = vmatpush.msra.mxu0 %v4435
        %4461 = vmatmul.f32.gmra.mxu0 %v4441
        %v4462 = vpop.f32.mrf.mxu0
        %v4463 = vadd.f32 0.0, %v4462
        %4464 = vmatmul.f32.gmra.mxu0 %v4443
        %v4465 = vpop.f32.mrf.mxu0
        %v4466 = vadd.f32 0.0, %v4465
        %4467 = vdwg.mxu0
        %4468 = vmatpush.msra.mxu0 0.0
        %4469 = vmatpush.msra.mxu0 0.0
        %4470 = vmatpush.msra.mxu0 0.0
        %4471 = vmatpush.msra.mxu0 0.0
        %4472 = vmatpush.msra.mxu0 0.0
        %4473 = vmatpush.msra.mxu0 0.0
        %4474 = vmatpush.msra.mxu0 0.0
        %4475 = vmatpush.msra.mxu0 0.0
        %4476 = vmatpush.msra.mxu0 0.0
        %4477 = vmatpush.msra.mxu0 0.0
        %4478 = vmatpush.msra.mxu0 0.0
        %4479 = vmatpush.msra.mxu0 0.0
        %4480 = vmatpush.msra.mxu0 0.0
        %4481 = vmatpush.msra.mxu0 0.0
        %4482 = vmatpush.msra.mxu0 0.0
        %4483 = vmatpush.msra.mxu0 %v4436
        %4484 = vmatmul.f32.gmra.mxu0 %v4441
        %v4485 = vpop.f32.mrf.mxu0
        %v4486 = vadd.f32 0.0, %v4485
        %4487 = vmatmul.f32.gmra.mxu0 %v4443
        %v4488 = vpop.f32.mrf.mxu0
        %v4489 = vadd.f32 0.0, %v4488
        %4490 = vdwg.mxu0
        %4491 = vmatpush.msra.mxu0 0.0
        %4492 = vmatpush.msra.mxu0 0.0
        %4493 = vmatpush.msra.mxu0 0.0
        %4494 = vmatpush.msra.mxu0 0.0
        %4495 = vmatpush.msra.mxu0 0.0
        %4496 = vmatpush.msra.mxu0 0.0
        %4497 = vmatpush.msra.mxu0 0.0
        %4498 = vmatpush.msra.mxu0 0.0
        %4499 = vmatpush.msra.mxu0 0.0
        %4500 = vmatpush.msra.mxu0 0.0
        %4501 = vmatpush.msra.mxu0 0.0
        %4502 = vmatpush.msra.mxu0 0.0
        %4503 = vmatpush.msra.mxu0 0.0
        %4504 = vmatpush.msra.mxu0 0.0
        %4505 = vmatpush.msra.mxu0 0.0
        %4506 = vmatpush.msra.mxu0 %v4437
        %4507 = vmatmul.f32.gmra.mxu0 %v4441
        %v4508 = vpop.f32.mrf.mxu0
        %v4509 = vadd.f32 0.0, %v4508
        %4510 = vmatmul.f32.gmra.mxu0 %v4443
        %v4511 = vpop.f32.mrf.mxu0
        %v4512 = vadd.f32 0.0, %v4511
        %4513 = vdwg.mxu0
        %v4514 = vadd.f32 %v4417, %v4463
        %v4515 = vadd.f32 %v4418, %v4486
        %v4516 = vadd.f32 %v4419, %v4509
        %v4517 = vadd.f32 %v4420, %v4466
        %v4518 = vadd.f32 %v4421, %v4489
        %v4519 = vadd.f32 %v4422, %v4512
        %4520 = vrot.lane.b32.xlu0 %v3362, 32
        %v4521 = vpop.permute.xlu0 %4520
        %4522 = vrot.lane.b32.xlu0 %v3363, 32
        %v4523 = vpop.permute.xlu0 %4522
        %4524 = vrot.lane.b32.xlu0 %v3445, 32
        %v4525 = vpop.permute.xlu0 %4524
        %4526 = vrot.lane.b32.xlu0 %v3446, 32
        %v4527 = vpop.permute.xlu0 %4526
        %4528 = vrot.lane.b32.xlu0 %v3447, 32
        %v4529 = vpop.permute.xlu0 %4528
        %4530 = vrot.lane.b32.xlu0 %v3448, 32
        %v4531 = vpop.permute.xlu0 %4530
        %v4532 = vsel %vm1437, %v4525, %v4527
        %v4533 = vsel %vm1437, %v4527, %v4529
        %v4534 = vsel %vm1437, %v4529, %v4531
        %v4538 = vsel %vm298, %v4521, 0
        %v4540 = vsel %vm298, %v4523, 0
        %4542 = vmatpush.msra.mxu0 0.0
        %4543 = vmatpush.msra.mxu0 0.0
        %4544 = vmatpush.msra.mxu0 0.0
        %4545 = vmatpush.msra.mxu0 0.0
        %4546 = vmatpush.msra.mxu0 0.0
        %4547 = vmatpush.msra.mxu0 0.0
        %4548 = vmatpush.msra.mxu0 0.0
        %4549 = vmatpush.msra.mxu0 0.0
        %4550 = vmatpush.msra.mxu0 0.0
        %4551 = vmatpush.msra.mxu0 0.0
        %4552 = vmatpush.msra.mxu0 0.0
        %4553 = vmatpush.msra.mxu0 0.0
        %4554 = vmatpush.msra.mxu0 0.0
        %4555 = vmatpush.msra.mxu0 0.0
        %4556 = vmatpush.msra.mxu0 0.0
        %4557 = vmatpush.msra.mxu0 %v4532
        %4558 = vmatmul.f32.gmra.mxu0 %v4538
        %v4559 = vpop.f32.mrf.mxu0
        %v4560 = vadd.f32 0.0, %v4559
        %4561 = vmatmul.f32.gmra.mxu0 %v4540
        %v4562 = vpop.f32.mrf.mxu0
        %v4563 = vadd.f32 0.0, %v4562
        %4564 = vdwg.mxu0
        %4565 = vmatpush.msra.mxu0 0.0
        %4566 = vmatpush.msra.mxu0 0.0
        %4567 = vmatpush.msra.mxu0 0.0
        %4568 = vmatpush.msra.mxu0 0.0
        %4569 = vmatpush.msra.mxu0 0.0
        %4570 = vmatpush.msra.mxu0 0.0
        %4571 = vmatpush.msra.mxu0 0.0
        %4572 = vmatpush.msra.mxu0 0.0
        %4573 = vmatpush.msra.mxu0 0.0
        %4574 = vmatpush.msra.mxu0 0.0
        %4575 = vmatpush.msra.mxu0 0.0
        %4576 = vmatpush.msra.mxu0 0.0
        %4577 = vmatpush.msra.mxu0 0.0
        %4578 = vmatpush.msra.mxu0 0.0
        %4579 = vmatpush.msra.mxu0 0.0
        %4580 = vmatpush.msra.mxu0 %v4533
        %4581 = vmatmul.f32.gmra.mxu0 %v4538
        %v4582 = vpop.f32.mrf.mxu0
        %v4583 = vadd.f32 0.0, %v4582
        %4584 = vmatmul.f32.gmra.mxu0 %v4540
        %v4585 = vpop.f32.mrf.mxu0
        %v4586 = vadd.f32 0.0, %v4585
        %4587 = vdwg.mxu0
        %4588 = vmatpush.msra.mxu0 0.0
        %4589 = vmatpush.msra.mxu0 0.0
        %4590 = vmatpush.msra.mxu0 0.0
        %4591 = vmatpush.msra.mxu0 0.0
        %4592 = vmatpush.msra.mxu0 0.0
        %4593 = vmatpush.msra.mxu0 0.0
        %4594 = vmatpush.msra.mxu0 0.0
        %4595 = vmatpush.msra.mxu0 0.0
        %4596 = vmatpush.msra.mxu0 0.0
        %4597 = vmatpush.msra.mxu0 0.0
        %4598 = vmatpush.msra.mxu0 0.0
        %4599 = vmatpush.msra.mxu0 0.0
        %4600 = vmatpush.msra.mxu0 0.0
        %4601 = vmatpush.msra.mxu0 0.0
        %4602 = vmatpush.msra.mxu0 0.0
        %4603 = vmatpush.msra.mxu0 %v4534
        %4604 = vmatmul.f32.gmra.mxu0 %v4538
        %v4605 = vpop.f32.mrf.mxu0
        %v4606 = vadd.f32 0.0, %v4605
        %4607 = vmatmul.f32.gmra.mxu0 %v4540
        %v4608 = vpop.f32.mrf.mxu0
        %v4609 = vadd.f32 0.0, %v4608
        %4610 = vdwg.mxu0
        %v4611 = vadd.f32 %v4514, %v4560
        %v4612 = vadd.f32 %v4515, %v4583
        %v4613 = vadd.f32 %v4516, %v4606
        %v4614 = vadd.f32 %v4517, %v4563
        %v4615 = vadd.f32 %v4518, %v4586
        %v4616 = vadd.f32 %v4519, %v4609
        %4617 = vrot.lane.b32.xlu0 %v3362, 24
        %v4618 = vpop.permute.xlu0 %4617
        %4619 = vrot.lane.b32.xlu0 %v3363, 24
        %v4620 = vpop.permute.xlu0 %4619
        %4621 = vrot.lane.b32.xlu0 %v3445, 24
        %v4622 = vpop.permute.xlu0 %4621
        %4623 = vrot.lane.b32.xlu0 %v3446, 24
        %v4624 = vpop.permute.xlu0 %4623
        %4625 = vrot.lane.b32.xlu0 %v3447, 24
        %v4626 = vpop.permute.xlu0 %4625
        %4627 = vrot.lane.b32.xlu0 %v3448, 24
        %v4628 = vpop.permute.xlu0 %4627
        %v4629 = vsel %vm1535, %v4622, %v4624
        %v4630 = vsel %vm1535, %v4624, %v4626
        %v4631 = vsel %vm1535, %v4626, %v4628
        %v4635 = vsel %vm298, %v4618, 0
        %v4637 = vsel %vm298, %v4620, 0
        %4639 = vmatpush.msra.mxu0 0.0
        %4640 = vmatpush.msra.mxu0 0.0
        %4641 = vmatpush.msra.mxu0 0.0
        %4642 = vmatpush.msra.mxu0 0.0
        %4643 = vmatpush.msra.mxu0 0.0
        %4644 = vmatpush.msra.mxu0 0.0
        %4645 = vmatpush.msra.mxu0 0.0
        %4646 = vmatpush.msra.mxu0 0.0
        %4647 = vmatpush.msra.mxu0 0.0
        %4648 = vmatpush.msra.mxu0 0.0
        %4649 = vmatpush.msra.mxu0 0.0
        %4650 = vmatpush.msra.mxu0 0.0
        %4651 = vmatpush.msra.mxu0 0.0
        %4652 = vmatpush.msra.mxu0 0.0
        %4653 = vmatpush.msra.mxu0 0.0
        %4654 = vmatpush.msra.mxu0 %v4629
        %4655 = vmatmul.f32.gmra.mxu0 %v4635
        %v4656 = vpop.f32.mrf.mxu0
        %v4657 = vadd.f32 0.0, %v4656
        %4658 = vmatmul.f32.gmra.mxu0 %v4637
        %v4659 = vpop.f32.mrf.mxu0
        %v4660 = vadd.f32 0.0, %v4659
        %4661 = vdwg.mxu0
        %4662 = vmatpush.msra.mxu0 0.0
        %4663 = vmatpush.msra.mxu0 0.0
        %4664 = vmatpush.msra.mxu0 0.0
        %4665 = vmatpush.msra.mxu0 0.0
        %4666 = vmatpush.msra.mxu0 0.0
        %4667 = vmatpush.msra.mxu0 0.0
        %4668 = vmatpush.msra.mxu0 0.0
        %4669 = vmatpush.msra.mxu0 0.0
        %4670 = vmatpush.msra.mxu0 0.0
        %4671 = vmatpush.msra.mxu0 0.0
        %4672 = vmatpush.msra.mxu0 0.0
        %4673 = vmatpush.msra.mxu0 0.0
        %4674 = vmatpush.msra.mxu0 0.0
        %4675 = vmatpush.msra.mxu0 0.0
        %4676 = vmatpush.msra.mxu0 0.0
        %4677 = vmatpush.msra.mxu0 %v4630
        %4678 = vmatmul.f32.gmra.mxu0 %v4635
        %v4679 = vpop.f32.mrf.mxu0
        %v4680 = vadd.f32 0.0, %v4679
        %4681 = vmatmul.f32.gmra.mxu0 %v4637
        %v4682 = vpop.f32.mrf.mxu0
        %v4683 = vadd.f32 0.0, %v4682
        %4684 = vdwg.mxu0
        %4685 = vmatpush.msra.mxu0 0.0
        %4686 = vmatpush.msra.mxu0 0.0
        %4687 = vmatpush.msra.mxu0 0.0
        %4688 = vmatpush.msra.mxu0 0.0
        %4689 = vmatpush.msra.mxu0 0.0
        %4690 = vmatpush.msra.mxu0 0.0
        %4691 = vmatpush.msra.mxu0 0.0
        %4692 = vmatpush.msra.mxu0 0.0
        %4693 = vmatpush.msra.mxu0 0.0
        %4694 = vmatpush.msra.mxu0 0.0
        %4695 = vmatpush.msra.mxu0 0.0
        %4696 = vmatpush.msra.mxu0 0.0
        %4697 = vmatpush.msra.mxu0 0.0
        %4698 = vmatpush.msra.mxu0 0.0
        %4699 = vmatpush.msra.mxu0 0.0
        %4700 = vmatpush.msra.mxu0 %v4631
        %4701 = vmatmul.f32.gmra.mxu0 %v4635
        %v4702 = vpop.f32.mrf.mxu0
        %v4703 = vadd.f32 0.0, %v4702
        %4704 = vmatmul.f32.gmra.mxu0 %v4637
        %v4705 = vpop.f32.mrf.mxu0
        %v4706 = vadd.f32 0.0, %v4705
        %4707 = vdwg.mxu0
        %v4708 = vadd.f32 %v4611, %v4657
        %v4709 = vadd.f32 %v4612, %v4680
        %v4710 = vadd.f32 %v4613, %v4703
        %v4711 = vadd.f32 %v4614, %v4660
        %v4712 = vadd.f32 %v4615, %v4683
        %v4713 = vadd.f32 %v4616, %v4706
        %4714 = vrot.lane.b32.xlu0 %v3362, 16
        %v4715 = vpop.permute.xlu0 %4714
        %4716 = vrot.lane.b32.xlu0 %v3363, 16
        %v4717 = vpop.permute.xlu0 %4716
        %4718 = vrot.lane.b32.xlu0 %v3445, 16
        %v4719 = vpop.permute.xlu0 %4718
        %4720 = vrot.lane.b32.xlu0 %v3446, 16
        %v4721 = vpop.permute.xlu0 %4720
        %4722 = vrot.lane.b32.xlu0 %v3447, 16
        %v4723 = vpop.permute.xlu0 %4722
        %4724 = vrot.lane.b32.xlu0 %v3448, 16
        %v4725 = vpop.permute.xlu0 %4724
        %v4726 = vsel %vm1633, %v4719, %v4721
        %v4727 = vsel %vm1633, %v4721, %v4723
        %v4728 = vsel %vm1633, %v4723, %v4725
        %v4732 = vsel %vm298, %v4715, 0
        %v4734 = vsel %vm298, %v4717, 0
        %4736 = vmatpush.msra.mxu0 0.0
        %4737 = vmatpush.msra.mxu0 0.0
        %4738 = vmatpush.msra.mxu0 0.0
        %4739 = vmatpush.msra.mxu0 0.0
        %4740 = vmatpush.msra.mxu0 0.0
        %4741 = vmatpush.msra.mxu0 0.0
        %4742 = vmatpush.msra.mxu0 0.0
        %4743 = vmatpush.msra.mxu0 0.0
        %4744 = vmatpush.msra.mxu0 0.0
        %4745 = vmatpush.msra.mxu0 0.0
        %4746 = vmatpush.msra.mxu0 0.0
        %4747 = vmatpush.msra.mxu0 0.0
        %4748 = vmatpush.msra.mxu0 0.0
        %4749 = vmatpush.msra.mxu0 0.0
        %4750 = vmatpush.msra.mxu0 0.0
        %4751 = vmatpush.msra.mxu0 %v4726
        %4752 = vmatmul.f32.gmra.mxu0 %v4732
        %v4753 = vpop.f32.mrf.mxu0
        %v4754 = vadd.f32 0.0, %v4753
        %4755 = vmatmul.f32.gmra.mxu0 %v4734
        %v4756 = vpop.f32.mrf.mxu0
        %v4757 = vadd.f32 0.0, %v4756
        %4758 = vdwg.mxu0
        %4759 = vmatpush.msra.mxu0 0.0
        %4760 = vmatpush.msra.mxu0 0.0
        %4761 = vmatpush.msra.mxu0 0.0
        %4762 = vmatpush.msra.mxu0 0.0
        %4763 = vmatpush.msra.mxu0 0.0
        %4764 = vmatpush.msra.mxu0 0.0
        %4765 = vmatpush.msra.mxu0 0.0
        %4766 = vmatpush.msra.mxu0 0.0
        %4767 = vmatpush.msra.mxu0 0.0
        %4768 = vmatpush.msra.mxu0 0.0
        %4769 = vmatpush.msra.mxu0 0.0
        %4770 = vmatpush.msra.mxu0 0.0
        %4771 = vmatpush.msra.mxu0 0.0
        %4772 = vmatpush.msra.mxu0 0.0
        %4773 = vmatpush.msra.mxu0 0.0
        %4774 = vmatpush.msra.mxu0 %v4727
        %4775 = vmatmul.f32.gmra.mxu0 %v4732
        %v4776 = vpop.f32.mrf.mxu0
        %v4777 = vadd.f32 0.0, %v4776
        %4778 = vmatmul.f32.gmra.mxu0 %v4734
        %v4779 = vpop.f32.mrf.mxu0
        %v4780 = vadd.f32 0.0, %v4779
        %4781 = vdwg.mxu0
        %4782 = vmatpush.msra.mxu0 0.0
        %4783 = vmatpush.msra.mxu0 0.0
        %4784 = vmatpush.msra.mxu0 0.0
        %4785 = vmatpush.msra.mxu0 0.0
        %4786 = vmatpush.msra.mxu0 0.0
        %4787 = vmatpush.msra.mxu0 0.0
        %4788 = vmatpush.msra.mxu0 0.0
        %4789 = vmatpush.msra.mxu0 0.0
        %4790 = vmatpush.msra.mxu0 0.0
        %4791 = vmatpush.msra.mxu0 0.0
        %4792 = vmatpush.msra.mxu0 0.0
        %4793 = vmatpush.msra.mxu0 0.0
        %4794 = vmatpush.msra.mxu0 0.0
        %4795 = vmatpush.msra.mxu0 0.0
        %4796 = vmatpush.msra.mxu0 0.0
        %4797 = vmatpush.msra.mxu0 %v4728
        %4798 = vmatmul.f32.gmra.mxu0 %v4732
        %v4799 = vpop.f32.mrf.mxu0
        %v4800 = vadd.f32 0.0, %v4799
        %4801 = vmatmul.f32.gmra.mxu0 %v4734
        %v4802 = vpop.f32.mrf.mxu0
        %v4803 = vadd.f32 0.0, %v4802
        %4804 = vdwg.mxu0
        %v4805 = vadd.f32 %v4708, %v4754
        %v4806 = vadd.f32 %v4709, %v4777
        %v4807 = vadd.f32 %v4710, %v4800
        %v4808 = vadd.f32 %v4711, %v4757
        %v4809 = vadd.f32 %v4712, %v4780
        %v4810 = vadd.f32 %v4713, %v4803
        %4811 = vrot.lane.b32.xlu0 %v3362, 8
        %v4812 = vpop.permute.xlu0 %4811
        %4813 = vrot.lane.b32.xlu0 %v3363, 8
        %v4814 = vpop.permute.xlu0 %4813
        %4815 = vrot.lane.b32.xlu0 %v3445, 8
        %v4816 = vpop.permute.xlu0 %4815
        %4817 = vrot.lane.b32.xlu0 %v3446, 8
        %v4818 = vpop.permute.xlu0 %4817
        %4819 = vrot.lane.b32.xlu0 %v3447, 8
        %v4820 = vpop.permute.xlu0 %4819
        %4821 = vrot.lane.b32.xlu0 %v3448, 8
        %v4822 = vpop.permute.xlu0 %4821
        %v4823 = vsel %vm298, %v4816, %v4818
        %v4824 = vsel %vm298, %v4818, %v4820
        %v4825 = vsel %vm298, %v4820, %v4822
        %v4829 = vsel %vm298, %v4812, 0
        %v4831 = vsel %vm298, %v4814, 0
        %4833 = vmatpush.msra.mxu0 0.0
        %4834 = vmatpush.msra.mxu0 0.0
        %4835 = vmatpush.msra.mxu0 0.0
        %4836 = vmatpush.msra.mxu0 0.0
        %4837 = vmatpush.msra.mxu0 0.0
        %4838 = vmatpush.msra.mxu0 0.0
        %4839 = vmatpush.msra.mxu0 0.0
        %4840 = vmatpush.msra.mxu0 0.0
        %4841 = vmatpush.msra.mxu0 0.0
        %4842 = vmatpush.msra.mxu0 0.0
        %4843 = vmatpush.msra.mxu0 0.0
        %4844 = vmatpush.msra.mxu0 0.0
        %4845 = vmatpush.msra.mxu0 0.0
        %4846 = vmatpush.msra.mxu0 0.0
        %4847 = vmatpush.msra.mxu0 0.0
        %4848 = vmatpush.msra.mxu0 %v4823
        %4849 = vmatmul.f32.gmra.mxu0 %v4829
        %v4850 = vpop.f32.mrf.mxu0
        %v4851 = vadd.f32 0.0, %v4850
        %4852 = vmatmul.f32.gmra.mxu0 %v4831
        %v4853 = vpop.f32.mrf.mxu0
        %v4854 = vadd.f32 0.0, %v4853
        %4855 = vdwg.mxu0
        %4856 = vmatpush.msra.mxu0 0.0
        %4857 = vmatpush.msra.mxu0 0.0
        %4858 = vmatpush.msra.mxu0 0.0
        %4859 = vmatpush.msra.mxu0 0.0
        %4860 = vmatpush.msra.mxu0 0.0
        %4861 = vmatpush.msra.mxu0 0.0
        %4862 = vmatpush.msra.mxu0 0.0
        %4863 = vmatpush.msra.mxu0 0.0
        %4864 = vmatpush.msra.mxu0 0.0
        %4865 = vmatpush.msra.mxu0 0.0
        %4866 = vmatpush.msra.mxu0 0.0
        %4867 = vmatpush.msra.mxu0 0.0
        %4868 = vmatpush.msra.mxu0 0.0
        %4869 = vmatpush.msra.mxu0 0.0
        %4870 = vmatpush.msra.mxu0 0.0
        %4871 = vmatpush.msra.mxu0 %v4824
        %4872 = vmatmul.f32.gmra.mxu0 %v4829
        %v4873 = vpop.f32.mrf.mxu0
        %v4874 = vadd.f32 0.0, %v4873
        %4875 = vmatmul.f32.gmra.mxu0 %v4831
        %v4876 = vpop.f32.mrf.mxu0
        %v4877 = vadd.f32 0.0, %v4876
        %4878 = vdwg.mxu0
        %4879 = vmatpush.msra.mxu0 0.0
        %4880 = vmatpush.msra.mxu0 0.0
        %4881 = vmatpush.msra.mxu0 0.0
        %4882 = vmatpush.msra.mxu0 0.0
        %4883 = vmatpush.msra.mxu0 0.0
        %4884 = vmatpush.msra.mxu0 0.0
        %4885 = vmatpush.msra.mxu0 0.0
        %4886 = vmatpush.msra.mxu0 0.0
        %4887 = vmatpush.msra.mxu0 0.0
        %4888 = vmatpush.msra.mxu0 0.0
        %4889 = vmatpush.msra.mxu0 0.0
        %4890 = vmatpush.msra.mxu0 0.0
        %4891 = vmatpush.msra.mxu0 0.0
        %4892 = vmatpush.msra.mxu0 0.0
        %4893 = vmatpush.msra.mxu0 0.0
        %4894 = vmatpush.msra.mxu0 %v4825
        %4895 = vmatmul.f32.gmra.mxu0 %v4829
        %v4896 = vpop.f32.mrf.mxu0
        %v4897 = vadd.f32 0.0, %v4896
        %4898 = vmatmul.f32.gmra.mxu0 %v4831
        %v4899 = vpop.f32.mrf.mxu0
        %v4900 = vadd.f32 0.0, %v4899
        %4901 = vdwg.mxu0
        %v4902 = vadd.f32 %v4805, %v4851
        %v4903 = vadd.f32 %v4806, %v4874
        %v4904 = vadd.f32 %v4807, %v4897
        %v4905 = vadd.f32 %v4808, %v4854
        %v4906 = vadd.f32 %v4809, %v4877
        %v4907 = vadd.f32 %v4810, %v4900
        %v4908 = vld [vmem:[#allocation3 + $0x18] sm:$0xff]
        %v4909 = vld [vmem:[#allocation3 + $0x38] sm:$0xff]
        %v4911 = vsel %vm298, %v4908, 0
        %v4914 = vsel %vm298, %v4909, 0
        %4916 = vmatpush.msra.mxu0 0.0
        %4917 = vmatpush.msra.mxu0 0.0
        %4918 = vmatpush.msra.mxu0 0.0
        %4919 = vmatpush.msra.mxu0 0.0
        %4920 = vmatpush.msra.mxu0 0.0
        %4921 = vmatpush.msra.mxu0 0.0
        %4922 = vmatpush.msra.mxu0 0.0
        %4923 = vmatpush.msra.mxu0 0.0
        %4924 = vmatpush.msra.mxu0 0.0
        %4925 = vmatpush.msra.mxu0 0.0
        %4926 = vmatpush.msra.mxu0 0.0
        %4927 = vmatpush.msra.mxu0 0.0
        %4928 = vmatpush.msra.mxu0 0.0
        %4929 = vmatpush.msra.mxu0 0.0
        %4930 = vmatpush.msra.mxu0 0.0
        %4931 = vmatpush.msra.mxu0 %v3446
        %4932 = vmatmul.f32.gmra.mxu0 %v4911
        %v4933 = vpop.f32.mrf.mxu0
        %v4934 = vadd.f32 0.0, %v4933
        %4935 = vmatmul.f32.gmra.mxu0 %v4914
        %v4936 = vpop.f32.mrf.mxu0
        %v4937 = vadd.f32 0.0, %v4936
        %4938 = vdwg.mxu0
        %4939 = vmatpush.msra.mxu0 0.0
        %4940 = vmatpush.msra.mxu0 0.0
        %4941 = vmatpush.msra.mxu0 0.0
        %4942 = vmatpush.msra.mxu0 0.0
        %4943 = vmatpush.msra.mxu0 0.0
        %4944 = vmatpush.msra.mxu0 0.0
        %4945 = vmatpush.msra.mxu0 0.0
        %4946 = vmatpush.msra.mxu0 0.0
        %4947 = vmatpush.msra.mxu0 0.0
        %4948 = vmatpush.msra.mxu0 0.0
        %4949 = vmatpush.msra.mxu0 0.0
        %4950 = vmatpush.msra.mxu0 0.0
        %4951 = vmatpush.msra.mxu0 0.0
        %4952 = vmatpush.msra.mxu0 0.0
        %4953 = vmatpush.msra.mxu0 0.0
        %4954 = vmatpush.msra.mxu0 %v3447
        %4955 = vmatmul.f32.gmra.mxu0 %v4911
        %v4956 = vpop.f32.mrf.mxu0
        %v4957 = vadd.f32 0.0, %v4956
        %4958 = vmatmul.f32.gmra.mxu0 %v4914
        %v4959 = vpop.f32.mrf.mxu0
        %v4960 = vadd.f32 0.0, %v4959
        %4961 = vdwg.mxu0
        %4962 = vmatpush.msra.mxu0 0.0
        %4963 = vmatpush.msra.mxu0 0.0
        %4964 = vmatpush.msra.mxu0 0.0
        %4965 = vmatpush.msra.mxu0 0.0
        %4966 = vmatpush.msra.mxu0 0.0
        %4967 = vmatpush.msra.mxu0 0.0
        %4968 = vmatpush.msra.mxu0 0.0
        %4969 = vmatpush.msra.mxu0 0.0
        %4970 = vmatpush.msra.mxu0 0.0
        %4971 = vmatpush.msra.mxu0 0.0
        %4972 = vmatpush.msra.mxu0 0.0
        %4973 = vmatpush.msra.mxu0 0.0
        %4974 = vmatpush.msra.mxu0 0.0
        %4975 = vmatpush.msra.mxu0 0.0
        %4976 = vmatpush.msra.mxu0 0.0
        %4977 = vmatpush.msra.mxu0 %v3448
        %4978 = vmatmul.f32.gmra.mxu0 %v4911
        %v4979 = vpop.f32.mrf.mxu0
        %v4980 = vadd.f32 0.0, %v4979
        %4981 = vmatmul.f32.gmra.mxu0 %v4914
        %v4982 = vpop.f32.mrf.mxu0
        %v4983 = vadd.f32 0.0, %v4982
        %4984 = vdwg.mxu0
        %v4985 = vadd.f32 %v4902, %v4934
        %v4986 = vadd.f32 %v4903, %v4957
        %v4987 = vadd.f32 %v4904, %v4980
        %v4988 = vadd.f32 %v4905, %v4937
        %v4989 = vadd.f32 %v4906, %v4960
        %v4990 = vadd.f32 %v4907, %v4983
        %v4991 = vld [vmem:[#allocation2 + $0x18] sm:$0xff]
        %v4992 = vld [vmem:[#allocation2 + $0x20] sm:$0xff]
        %v4993 = vld [vmem:[#allocation2 + $0x28] sm:$0xff]
        %v4994 = vld [vmem:[#allocation2 + $0x30] sm:$0xff]
        %4995 = vrot.lane.b32.xlu0 %v4908, 120
        %v4996 = vpop.permute.xlu0 %4995
        %4997 = vrot.lane.b32.xlu0 %v4909, 120
        %v4998 = vpop.permute.xlu0 %4997
        %5003 = vrot.lane.b32.xlu0 %v4991, 120
        %v5004 = vpop.permute.xlu0 %5003
        %5005 = vrot.lane.b32.xlu0 %v4992, 120
        %v5006 = vpop.permute.xlu0 %5005
        %5007 = vrot.lane.b32.xlu0 %v4993, 120
        %v5008 = vpop.permute.xlu0 %5007
        %5009 = vrot.lane.b32.xlu0 %v4994, 120
        %v5010 = vpop.permute.xlu0 %5009
        %v5011 = vsel %vm291, %v5004, %v5006
        %v5012 = vsel %vm291, %v5006, %v5008
        %v5013 = vsel %vm291, %v5008, %v5010
        %v5017 = vsel %vm298, %v4996, 0
        %v5019 = vsel %vm298, %v4998, 0
        %5021 = vmatpush.msra.mxu0 0.0
        %5022 = vmatpush.msra.mxu0 0.0
        %5023 = vmatpush.msra.mxu0 0.0
        %5024 = vmatpush.msra.mxu0 0.0
        %5025 = vmatpush.msra.mxu0 0.0
        %5026 = vmatpush.msra.mxu0 0.0
        %5027 = vmatpush.msra.mxu0 0.0
        %5028 = vmatpush.msra.mxu0 0.0
        %5029 = vmatpush.msra.mxu0 0.0
        %5030 = vmatpush.msra.mxu0 0.0
        %5031 = vmatpush.msra.mxu0 0.0
        %5032 = vmatpush.msra.mxu0 0.0
        %5033 = vmatpush.msra.mxu0 0.0
        %5034 = vmatpush.msra.mxu0 0.0
        %5035 = vmatpush.msra.mxu0 0.0
        %5036 = vmatpush.msra.mxu0 %v5011
        %5037 = vmatmul.f32.gmra.mxu0 %v5017
        %v5038 = vpop.f32.mrf.mxu0
        %v5039 = vadd.f32 0.0, %v5038
        %5040 = vmatmul.f32.gmra.mxu0 %v5019
        %v5041 = vpop.f32.mrf.mxu0
        %v5042 = vadd.f32 0.0, %v5041
        %5043 = vdwg.mxu0
        %5044 = vmatpush.msra.mxu0 0.0
        %5045 = vmatpush.msra.mxu0 0.0
        %5046 = vmatpush.msra.mxu0 0.0
        %5047 = vmatpush.msra.mxu0 0.0
        %5048 = vmatpush.msra.mxu0 0.0
        %5049 = vmatpush.msra.mxu0 0.0
        %5050 = vmatpush.msra.mxu0 0.0
        %5051 = vmatpush.msra.mxu0 0.0
        %5052 = vmatpush.msra.mxu0 0.0
        %5053 = vmatpush.msra.mxu0 0.0
        %5054 = vmatpush.msra.mxu0 0.0
        %5055 = vmatpush.msra.mxu0 0.0
        %5056 = vmatpush.msra.mxu0 0.0
        %5057 = vmatpush.msra.mxu0 0.0
        %5058 = vmatpush.msra.mxu0 0.0
        %5059 = vmatpush.msra.mxu0 %v5012
        %5060 = vmatmul.f32.gmra.mxu0 %v5017
        %v5061 = vpop.f32.mrf.mxu0
        %v5062 = vadd.f32 0.0, %v5061
        %5063 = vmatmul.f32.gmra.mxu0 %v5019
        %v5064 = vpop.f32.mrf.mxu0
        %v5065 = vadd.f32 0.0, %v5064
        %5066 = vdwg.mxu0
        %5067 = vmatpush.msra.mxu0 0.0
        %5068 = vmatpush.msra.mxu0 0.0
        %5069 = vmatpush.msra.mxu0 0.0
        %5070 = vmatpush.msra.mxu0 0.0
        %5071 = vmatpush.msra.mxu0 0.0
        %5072 = vmatpush.msra.mxu0 0.0
        %5073 = vmatpush.msra.mxu0 0.0
        %5074 = vmatpush.msra.mxu0 0.0
        %5075 = vmatpush.msra.mxu0 0.0
        %5076 = vmatpush.msra.mxu0 0.0
        %5077 = vmatpush.msra.mxu0 0.0
        %5078 = vmatpush.msra.mxu0 0.0
        %5079 = vmatpush.msra.mxu0 0.0
        %5080 = vmatpush.msra.mxu0 0.0
        %5081 = vmatpush.msra.mxu0 0.0
        %5082 = vmatpush.msra.mxu0 %v5013
        %5083 = vmatmul.f32.gmra.mxu0 %v5017
        %v5084 = vpop.f32.mrf.mxu0
        %v5085 = vadd.f32 0.0, %v5084
        %5086 = vmatmul.f32.gmra.mxu0 %v5019
        %v5087 = vpop.f32.mrf.mxu0
        %v5088 = vadd.f32 0.0, %v5087
        %5089 = vdwg.mxu0
        %v5090 = vadd.f32 %v4985, %v5039
        %v5091 = vadd.f32 %v4986, %v5062
        %v5092 = vadd.f32 %v4987, %v5085
        %v5093 = vadd.f32 %v4988, %v5042
        %v5094 = vadd.f32 %v4989, %v5065
        %v5095 = vadd.f32 %v4990, %v5088
        %v5096 = vld [vmem:[%s2] sm:$0xff]
        %v5097 = vld [vmem:[%s2 + $0x8] sm:$0xff]
        %5099 = vset.pattern.permute.xlu0 0
        %5100 = vperm.xlu0 %5099, %v5096
        %v5101 = vpop.permute.xlu0 %5100
        %5104 = vset.pattern.permute.xlu0 0
        %5105 = vperm.xlu0 %5104, %v5097
        %v5106 = vpop.permute.xlu0 %5105
        %v5108 = vadd.f32 %v5090, %v5101
        %v5109 = vadd.f32 %v5091, %v5101
        %v5110 = vadd.f32 %v5092, %v5101
        %v5111 = vadd.f32 %v5093, %v5106
        %v5112 = vadd.f32 %v5094, %v5106
        %v5113 = vadd.f32 %v5095, %v5106
        %v5114 = vmul.f32 %v5108, %v5108
        %v5115 = vmul.f32 %v5109, %v5109
        %v5116 = vmul.f32 %v5110, %v5110
        %v5117 = vmul.f32 %v5111, %v5111
        %v5118 = vmul.f32 %v5112, %v5112
        %v5119 = vmul.f32 %v5113, %v5113
        %v5120 = vadd.f32 %v5114, %v5117
        %v5121 = vadd.f32 %v5115, %v5118
        %v5122 = vadd.f32 %v5116, %v5119
        %5123 = vst [vmem:[%s178] sm:$0xff] %v5120
        %5124 = vst [vmem:[%s178 + $0x8] sm:$0xff] %v5121
        %5125 = vst [vmem:[%s178 + $0x10] sm:$0xff] %v5122
        %s5126 = sand.u32 %s94, 1
        %s5127 = scalar_lea.sflag [#allocation5], %s5126
        %s5128 = sand.u32 %s94, 1
        %s5129 = smul.addr %s5128, 24
        %s5130 = scalar_lea.vmem [#allocation6], %s5129
        // Predicated region
        $region37: #{tpu_custom_call.1} parent=31 // pred_check
          %p5131 = pneg %p104
        $region38: #{tpu_custom_call.1} parent=31 // pred_check_branch
          %5133 = sbr.rel (%p5131) target = $region40
        $region39: #{tpu_custom_call.1} parent=31 // pred_region
          %5135 = vsyncadd %s5127, 0
          %s5136 = smul.addr %s18, 3
          %s5137 = smul.addr %s5136, 8
          %s5138 = scalar_lea.hbm %s3, %s5137
          %s5140 = sshll.u32 %s5130, 4
          %s5141 = int_to_ptr.vmem [resolvable:$true] %s5140
          %s5142 = sshll.u32 %s5138, 4
          %s5143 = int_to_ptr.hbm [resolvable:$true] %s5142
          %5145 = dma.vmem_to_hbm [thread:$0]  %s5141, 384, %s5143, %s5127
        $region40: #{tpu_custom_call.1} parent=31 // pred_fallthru
          _
      $region32: #{tpu_custom_call.1} parent=5 // pred_fallthru
        _
      %p5146 = scmp.le.s32.totalorder 2, %s13
      // Predicated region
      $region41: #{tpu_custom_call.1} parent=5 // pred_check
        %p5147 = pneg %p5146
      $region42: #{tpu_custom_call.1} parent=5 // pred_check_branch
        %5149 = sbr.rel (%p5147) target = $region44
      $region43: #{tpu_custom_call.1} parent=5 // pred_region
        %s5150 = ssub.s32 %s13, 2
        // Predicated region
        $region45: #{tpu_custom_call.1} parent=43 // pred_check
          %p5151 = pneg %p110
        $region46: #{tpu_custom_call.1} parent=43 // pred_check_branch
          %5153 = sbr.rel (%p5151) target = $region48
        $region47: #{tpu_custom_call.1} parent=43 // pred_region
          %s5154 = sand.u32 %s95, 1
          %s5155 = scalar_lea.sflag [#allocation5], %s5154
          %s5156 = sand.u32 %s95, 1
          %s5157 = smul.addr %s5156, 24
          %s5158 = scalar_lea.vmem [#allocation6], %s5157
          %5160 = dma.done %s5155, 384
        $region48: #{tpu_custom_call.1} parent=43 // pred_fallthru
          _
      $region44: #{tpu_custom_call.1} parent=5 // pred_fallthru
        _
    $region6: #{tpu_custom_call.1} parent=1 // loop_footer
      %s17 = sadd.s32 1, %s13
    $region7: #{tpu_custom_call.1} parent=1 // loop_footer_branch
      %12 = sbr.rel target = $region3
    $region8: #{tpu_custom_call.1} parent=1 // loop_exit
      _
    %5161 = vsyncpa [#allocation4], 1
    %s5162 = scalar_lea.sflag [#allocation4], 1
    %5163 = vsyncpa %s5162, 1
    %5164 = vsyncpa [#allocation5], 1
    %s5165 = scalar_lea.sflag [#allocation5], 1
    %5166 = vsyncpa %s5165, 1

</llo_original>
